<compile_context>
chip_gen: v7x
topology: tpu7x:2x2x1
jax: 0.10.0
libtpu: 0.0.40
codegen_flags: <defaults>
</compile_context>

<pallas_src>
import functools

import jax
import jax.numpy as jnp
from jax import lax
from jax.experimental import pallas as pl
from jax.experimental.pallas import tpu as pltpu


# -----------------------------------------------------------------------------
# Slab layout helpers (shared by the wrapper-side packer and the kernel)
# -----------------------------------------------------------------------------
def _round_up(n, m):
    return ((n + m - 1) // m) * m


def _slab_offsets(in_dim, out_dim):
    """Column offsets of the four weight blocks inside the packed weight slab.

    Every segment starts on a 128-lane boundary so the in-kernel static slices
    are tile-aligned views.
    """
    c_w1 = 0                                               # fused head layer-1
    c_w2 = c_w1 + _round_up(4 * in_dim, 128)               # block-diag layer-2
    c_d1 = c_w2 + _round_up(4 * out_dim, 128)              # aot_diff layer-1
    c_d2 = c_d1 + _round_up(in_dim, 128)                   # aot_diff layer-2
    cols = c_d2 + _round_up(out_dim, 128)
    return c_w1, c_w2, c_d1, c_d2, cols


def pack_params(params, in_dim, out_dim):
    """Pack the 20 nn.Linear tensors into one weight slab and one bias slab."""
    (vclr_w1, vclr_b1, vclr_w2, vclr_b2,
     vaot_w1, vaot_b1, vaot_w2, vaot_b2,
     aclr_w1, aclr_b1, aclr_w2, aclr_b2,
     aaot_w1, aaot_b1, aaot_w2, aaot_b2,
     diff_w1, diff_b1, diff_w2, diff_b2) = params
    f32 = jnp.float32

    # Fused first layer of the four heads: (in_dim, 4*in_dim)
    w1f = jnp.concatenate([vclr_w1, vaot_w1, aclr_w1, aaot_w1], axis=1)
    b1f = jnp.concatenate([vclr_b1, vaot_b1, aclr_b1, aaot_b1], axis=1)
    # Block-diagonal second layer: (4*in_dim, 4*out_dim)
    w2bd = jax.scipy.linalg.block_diag(vclr_w2, vaot_w2, aclr_w2, aaot_w2)
    b2f = jnp.concatenate([vclr_b2, vaot_b2, aclr_b2, aaot_b2], axis=1)

    c_w1, c_w2, c_d1, c_d2, cols = _slab_offsets(in_dim, out_dim)
    rows = _round_up(max(4 * in_dim, in_dim, out_dim), 8)

    w_slab = jnp.zeros((rows, cols), f32)
    w_slab = w_slab.at[:in_dim,     c_w1:c_w1 + 4 * in_dim].set(w1f.astype(f32))
    w_slab = w_slab.at[:4 * in_dim, c_w2:c_w2 + 4 * out_dim].set(w2bd.astype(f32))
    w_slab = w_slab.at[:out_dim,    c_d1:c_d1 + in_dim].set(diff_w1.astype(f32))
    w_slab = w_slab.at[:in_dim,     c_d2:c_d2 + out_dim].set(diff_w2.astype(f32))

    bw = _round_up(max(4 * in_dim, 4 * out_dim), 128)
    b_slab = jnp.zeros((4, bw), f32)
    b_slab = b_slab.at[0, :4 * in_dim].set(b1f[0].astype(f32))
    b_slab = b_slab.at[1, :4 * out_dim].set(b2f[0].astype(f32))
    b_slab = b_slab.at[2, :in_dim].set(diff_b1[0].astype(f32))
    b_slab = b_slab.at[3, :out_dim].set(diff_b2[0].astype(f32))
    return w_slab, b_slab


# -----------------------------------------------------------------------------
# Pallas kernel: fused projection heads + arrow-of-time loss + contrastive loss
# -----------------------------------------------------------------------------
def ssrl_kernel(bs, in_dim, out_dim, temperature, aot_coeff, clr_coeff,
                x_ref, w_ref, b_ref, out_ref):
    f32 = jnp.float32
    c_w1, c_w2, c_d1, c_d2, _ = _slab_offsets(in_dim, out_dim)
    nv = 2 * bs

    x = x_ref[...]                                        # (3*bs, in_dim): [xv_l; xv_r; xa]
    # Static, tile-aligned views into the packed slabs.
    w1f = w_ref[0:in_dim,     c_w1:c_w1 + 4 * in_dim]     # (in, 4*in)
    w2bd = w_ref[0:4 * in_dim, c_w2:c_w2 + 4 * out_dim]   # (4*in, 4*out)
    dw1 = w_ref[0:out_dim,    c_d1:c_d1 + in_dim]         # (out, in)
    dw2 = w_ref[0:in_dim,     c_d2:c_d2 + out_dim]        # (in, out)
    b1f = b_ref[0:1, 0:4 * in_dim]
    b2f = b_ref[1:2, 0:4 * out_dim]
    db1 = b_ref[2:3, 0:in_dim]
    db2 = b_ref[3:4, 0:out_dim]

    def l2norm(v):
        # F.normalize(p=2, dim=-1, eps=1e-12) == v * rsqrt(max(sum(v^2), eps^2))
        ss = jnp.sum(v * v, axis=-1, keepdims=True)
        return v * lax.rsqrt(jnp.maximum(ss, 1e-24))

    # ---- all four projection heads in two matmuls --------------------------
    h = jnp.maximum(jnp.dot(x, w1f, preferred_element_type=f32) + b1f, 0.0)   # (3bs, 4*in)
    y = jnp.dot(h, w2bd, preferred_element_type=f32) + b2f                    # (3bs, 4*out)

    yv = y[0:nv]                 # video rows (row split at 2*bs: tile aligned for bs=4)
    ya = y[nv:3 * bs]            # audio rows
    xv_clr = l2norm(yv[:, 0 * out_dim:1 * out_dim])       # (2bs, out)
    xv_aot = yv[:, 1 * out_dim:2 * out_dim]               # (2bs, out)
    xa_clr = l2norm(ya[:, 2 * out_dim:3 * out_dim])       # (bs, out)
    xa_aot = ya[:, 3 * out_dim:4 * out_dim]               # (bs, out)

    # ---- contrastive loss: one similarity matmul, both CE directions -------
    s = lax.dot_general(xv_clr, xa_clr, (((1,), (1,)), ((), ())),
                        preferred_element_type=f32) / temperature             # (2bs, bs)
    r = lax.broadcasted_iota(jnp.int32, (nv, bs), 0)
    c = lax.broadcasted_iota(jnp.int32, (nv, bs), 1)
    diag_mask = (r == c) | (r == c + bs)                  # ground-truth entries
    diag_sum = jnp.sum(jnp.where(diag_mask, s, 0.0))

    # video -> audio: row-wise logsumexp over the full row
    m_row = jnp.max(s, axis=1, keepdims=True)
    lse_row = jnp.log(jnp.sum(jnp.exp(s - m_row), axis=1, keepdims=True)) + m_row
    loss_va = (jnp.sum(lse_row) - diag_sum) / nv

    # audio -> video: column-wise logsumexp over each row-half (L / R)
    is_l = r < bs
    s_l = jnp.where(is_l, s, -jnp.inf)
    s_r = jnp.where(is_l, -jnp.inf, s)
    m_l = jnp.max(s_l, axis=0, keepdims=True)
    m_r = jnp.max(s_r, axis=0, keepdims=True)
    lse_l = jnp.log(jnp.sum(jnp.exp(s_l - m_l), axis=0, keepdims=True)) + m_l
    lse_r = jnp.log(jnp.sum(jnp.exp(s_r - m_r), axis=0, keepdims=True)) + m_r
    loss_av = (jnp.sum(lse_l) + jnp.sum(lse_r) - diag_sum) / nv

    clr_loss = 0.5 * (loss_va + loss_av)

    # ---- arrow-of-time loss -------------------------------------------------
    # Build the stacked difference [xv_r - xv_l ; xv_l - xv_r] with a tiny
    # swap/sign matrix on the MXU (avoids mid-tile sublane slices), then run
    # the aot_diff MLP once on the whole stack.
    r2 = lax.broadcasted_iota(jnp.int32, (nv, nv), 0)
    c2 = lax.broadcasted_iota(jnp.int32, (nv, nv), 1)
    swap = (jnp.where((c2 == r2 + bs) | (c2 == r2 - bs), 1.0, 0.0)
            - jnp.where(c2 == r2, 1.0, 0.0))
    dd = jnp.dot(swap, xv_aot, preferred_element_type=f32)                    # (2bs, out)
    hd = jnp.maximum(jnp.dot(dd, dw1, preferred_element_type=f32) + db1, 0.0) # (2bs, in)
    diff = l2norm(jnp.dot(hd, dw2, preferred_element_type=f32) + db2)         # (2bs, out)

    xa_n = l2norm(xa_aot)                                                     # (bs, out)
    # scores[j] = <diff[j], xa_n[j mod bs]>; pick it out of diff @ xa_n^T with
    # the same diagonal mask used for the contrastive loss.
    p = lax.dot_general(diff, xa_n, (((1,), (1,)), ((), ())),
                        preferred_element_type=f32)                           # (2bs, bs)
    scores = jnp.sum(jnp.where(diag_mask, p, 0.0), axis=1, keepdims=True) * 5.0  # /0.2
    row = lax.broadcasted_iota(jnp.int32, (nv, 1), 0)
    sgn = jnp.where(row < bs, -1.0, 1.0)   # label 1 -> softplus(-x); label 0 -> softplus(x)
    aot_loss = jnp.mean(jnp.logaddexp(0.0, sgn * scores))

    total = aot_coeff * aot_loss + clr_coeff * clr_loss

    # Single lane-padded output row: [total, clr, aot, 0, ...]
    lane = lax.broadcasted_iota(jnp.int32, (1, 128), 1)
    out_ref[...] = (jnp.where(lane == 0, total, 0.0)
                    + jnp.where(lane == 1, clr_loss, 0.0)
                    + jnp.where(lane == 2, aot_loss, 0.0))


# -----------------------------------------------------------------------------
# Wrappers
# -----------------------------------------------------------------------------
def ssrl_pallas(x, w_slab, b_slab, *, bs, in_dim, out_dim,
                temperature, aot_coeff, clr_coeff):
    kernel = functools.partial(ssrl_kernel, bs, in_dim, out_dim,
                               temperature, aot_coeff, clr_coeff)
    vmem = pl.BlockSpec(memory_space=pltpu.MemorySpace.VMEM)
    out = pl.pallas_call(
        kernel,
        out_shape=jax.ShapeDtypeStruct((1, 128), jnp.float32),
        in_specs=[vmem, vmem, vmem],
        out_specs=vmem,
    )(x, w_slab, b_slab)
    return out[0, 0], out[0, 1], out[0, 2]


def ssrl_forward(video_l, video_r, audio, params, *, in_dim, out_dim,
                 temperature=0.07, aot_coeff=0.5, clr_coeff=0.5):
    """Mirrors SSRL_audiopeak_aotv2.forward with synthetic backbones."""
    bs = video_l[0].shape[0]
    # backbone['video']: global average pool over (T, H, W)
    video_lr = jnp.concatenate([video_l[0], video_r[0]], axis=0)      # (2bs, C, T, H, W)
    xv = jnp.mean(video_lr.reshape(2 * bs, in_dim, -1), axis=-1)      # (2bs, in_dim)
    # backbone['audio']: identity; AdaptiveMaxPool2d((1,1)) hoisted out of the kernel
    xa = jnp.max(audio[0].reshape(bs, in_dim, -1), axis=-1)           # (bs, in_dim)
    x = jnp.concatenate([xv, xa], axis=0)                             # (3bs, in_dim)

    w_slab, b_slab = pack_params(params, in_dim, out_dim)
    total, clr, aot = ssrl_pallas(x, w_slab, b_slab, bs=bs,
                                  in_dim=in_dim, out_dim=out_dim,
                                  temperature=temperature,
                                  aot_coeff=aot_coeff, clr_coeff=clr_coeff)
    # TODO(synk): concat_all_gather is the identity here (single device); a
    # multi-device version would all-gather xa_clr / xv_clr before the kernel.
    return total, {"clr_loss": clr, "aot_loss": aot}


# Pure-JAX reference (same math, unpacked params) used only for validation.
def ssrl_reference(xv, xa_sp, params, *, bs, temperature, aot_coeff, clr_coeff):
    (vclr_w1, vclr_b1, vclr_w2, vclr_b2,
     vaot_w1, vaot_b1, vaot_w2, vaot_b2,
     aclr_w1, aclr_b1, aclr_w2, aclr_b2,
     aaot_w1, aaot_b1, aaot_w2, aaot_b2,
     diff_w1, diff_b1, diff_w2, diff_b2) = params

    def mlp(x, w1, b1, w2, b2):
        return jnp.maximum(x @ w1 + b1, 0.0) @ w2 + b2

    def l2norm(x):
        return x / jnp.maximum(jnp.linalg.norm(x, axis=-1, keepdims=True), 1e-12)

    def ce_diag(logits):
        lse = jax.nn.logsumexp(logits, axis=-1)
        diag = jnp.diagonal(logits)
        return jnp.mean(lse - diag)

    xa = jnp.max(xa_sp, axis=-1)
    xv_clr = l2norm(mlp(xv, vclr_w1, vclr_b1, vclr_w2, vclr_b2))
    xv_aot = mlp(xv, vaot_w1, vaot_b1, vaot_w2, vaot_b2)
    xa_clr = l2norm(mlp(xa, aclr_w1, aclr_b1, aclr_w2, aclr_b2))
    xa_aot = mlp(xa, aaot_w1, aaot_b1, aaot_w2, aaot_b2)
    xv_l_clr, xv_r_clr = xv_clr[:bs], xv_clr[bs:]
    xv_l_aot, xv_r_aot = xv_aot[:bs], xv_aot[bs:]

    d1 = l2norm(mlp(xv_r_aot - xv_l_aot, diff_w1, diff_b1, diff_w2, diff_b2))
    d0 = l2norm(mlp(xv_l_aot - xv_r_aot, diff_w1, diff_b1, diff_w2, diff_b2))
    xan = l2norm(xa_aot)
    ones = jnp.sum(d1 * xan, -1) / 0.2
    zeros = jnp.sum(d0 * xan, -1) / 0.2
    aot_loss = 0.5 * (jnp.mean(jnp.logaddexp(0.0, -ones)) +
                      jnp.mean(jnp.logaddexp(0.0, zeros)))

    sva_l = xv_l_clr @ xa_clr.T / temperature
    sva_r = xv_r_clr @ xa_clr.T / temperature
    sav_l = xa_clr @ xv_l_clr.T / temperature
    sav_r = xa_clr @ xv_r_clr.T / temperature
    clr_loss = 0.5 * (0.5 * (ce_diag(sva_l) + ce_diag(sva_r)) +
                      0.5 * (ce_diag(sav_l) + ce_diag(sav_r)))
    return aot_coeff * aot_loss + clr_coeff * clr_loss, clr_loss, aot_loss


# -----------------------------------------------------------------------------
# Deterministic parameter initialization (shapes from the module's __init__)
# -----------------------------------------------------------------------------
def init_params(key, in_dim, out_dim):
    def linear(kw, kb, fan_in, fan_out):
        a = (6.0 / (fan_in + fan_out)) ** 0.5          # xavier_uniform_
        w = jax.random.uniform(kw, (fan_in, fan_out), jnp.float32, -a, a)
        bb = 1.0 / (fan_in ** 0.5)                     # default nn.Linear bias init
        b = jax.random.uniform(kb, (1, fan_out), jnp.float32, -bb, bb)
        return w, b

    keys = jax.random.split(key, 20)
    params, i = [], 0
    # video_clr, video_aot, audio_clr, audio_aot: Linear(in,in) -> ReLU -> Linear(in,out)
    for _ in range(4):
        w1, b1 = linear(keys[i], keys[i + 1], in_dim, in_dim); i += 2
        w2, b2 = linear(keys[i], keys[i + 1], in_dim, out_dim); i += 2
        params += [w1, b1, w2, b2]
    # aot_diff: Linear(out,in) -> ReLU -> Linear(in,out)
    w1, b1 = linear(keys[i], keys[i + 1], out_dim, in_dim); i += 2
    w2, b2 = linear(keys[i], keys[i + 1], in_dim, out_dim); i += 2
    params += [w1, b1, w2, b2]
    return params


# -----------------------------------------------------------------------------
if __name__ == "__main__":
    jax.config.update("jax_default_matmul_precision", "highest")

    bs, in_dim, out_dim = 4, 32, 16
    t_frames, vh, vw = 2, 8, 8
    ah, aw = 8, 8

    key = jax.random.PRNGKey(0)
    k1, k2, k3, kp = jax.random.split(key, 4)
    # Inputs mirror the PyTorch call: List[video_l], List[video_r], List[audio]
    video_l = [jax.random.normal(k1, (bs, in_dim, t_frames, vh, vw), jnp.float32)]
    video_r = [jax.random.normal(k2, (bs, in_dim, t_frames, vh, vw), jnp.float32)]
    audio = [jax.random.normal(k3, (bs, in_dim, ah, aw), jnp.float32)]
    params = init_params(kp, in_dim, out_dim)

    total, stats = ssrl_forward(video_l, video_r, audio, params,
                                in_dim=in_dim, out_dim=out_dim,
                                temperature=0.07, aot_coeff=0.5, clr_coeff=0.5)
    jax.block_until_ready(total)

    # Validate against a pure-JAX reference of the same math.
    video_lr = jnp.concatenate([video_l[0], video_r[0]], axis=0)
    xv = jnp.mean(video_lr.reshape(2 * bs, in_dim, -1), axis=-1)
    xa_sp = audio[0].reshape(bs, in_dim, -1)
    ref_total, ref_clr, ref_aot = ssrl_reference(
        xv, xa_sp, params, bs=bs, temperature=0.07, aot_coeff=0.5, clr_coeff=0.5)

    assert bool(jnp.isfinite(total)), "non-finite total loss"
    assert bool(jnp.allclose(total, ref_total, rtol=5e-2, atol=5e-3)), \
        f"total mismatch: {total} vs {ref_total}"
    assert bool(jnp.allclose(stats["clr_loss"], ref_clr, rtol=5e-2, atol=5e-3)), \
        f"clr mismatch: {stats['clr_loss']} vs {ref_clr}"
    assert bool(jnp.allclose(stats["aot_loss"], ref_aot, rtol=5e-2, atol=5e-3)), \
        f"aot mismatch: {stats['aot_loss']} vs {ref_aot}"

    print("KERNEL_OK")
</pallas_src>

<mosaic_0001>
module attributes {stable_mosaic.version = 11 : i64} {
  func.func @ssrl_kernel(%arg0: memref<12x32xf32, #tpu.memory_space<vmem>>, %arg1: memref<128x512xf32, #tpu.memory_space<vmem>>, %arg2: memref<4x128xf32, #tpu.memory_space<vmem>>, %arg3: memref<1x128xf32, #tpu.memory_space<vmem>>) attributes {dimension_semantics = [], scalar_prefetch = 0 : i64, scratch_operands = 0 : i64, tpu.core_type = #tpu.core_type<tc>} {
    %c0 = arith.constant 0 : index
    %c0_0 = arith.constant 0 : index
    %0 = vector.load %arg0[%c0, %c0_0] : memref<12x32xf32, #tpu.memory_space<vmem>>, vector<12x32xf32>
    %c0_1 = arith.constant 0 : index
    %c0_2 = arith.constant 0 : index
    %1 = vector.load %arg1[%c0_1, %c0_2] : memref<128x512xf32, #tpu.memory_space<vmem>>, vector<32x128xf32>
    %c0_3 = arith.constant 0 : index
    %c128 = arith.constant 128 : index
    %2 = vector.load %arg1[%c0_3, %c128] : memref<128x512xf32, #tpu.memory_space<vmem>>, vector<128x64xf32>
    %c0_4 = arith.constant 0 : index
    %c256 = arith.constant 256 : index
    %3 = vector.load %arg1[%c0_4, %c256] : memref<128x512xf32, #tpu.memory_space<vmem>>, vector<16x32xf32>
    %c0_5 = arith.constant 0 : index
    %c384 = arith.constant 384 : index
    %4 = vector.load %arg1[%c0_5, %c384] : memref<128x512xf32, #tpu.memory_space<vmem>>, vector<32x16xf32>
    %c0_6 = arith.constant 0 : index
    %c0_7 = arith.constant 0 : index
    %5 = vector.load %arg2[%c0_6, %c0_7] : memref<4x128xf32, #tpu.memory_space<vmem>>, vector<1x128xf32>
    %c1 = arith.constant 1 : index
    %c0_8 = arith.constant 0 : index
    %6 = vector.load %arg2[%c1, %c0_8] : memref<4x128xf32, #tpu.memory_space<vmem>>, vector<1x64xf32>
    %c2 = arith.constant 2 : index
    %c0_9 = arith.constant 0 : index
    %7 = vector.load %arg2[%c2, %c0_9] : memref<4x128xf32, #tpu.memory_space<vmem>>, vector<1x32xf32>
    %c3 = arith.constant 3 : index
    %c0_10 = arith.constant 0 : index
    %8 = vector.load %arg2[%c3, %c0_10] : memref<4x128xf32, #tpu.memory_space<vmem>>, vector<1x16xf32>
    %cst = arith.constant dense<0.000000e+00> : vector<12x128xf32>
    %9 = tpu.matmul %0, %1, %cst {dimension_numbers = #tpu.dot_dimension_numbers<[1], [0], [0], [1], [0, 0, 1, 1], [], []>, precision = #tpu.contract_precision<fp32>} : vector<12x32xf32>, vector<32x128xf32>, vector<12x128xf32> -> vector<12x128xf32>
    %10 = vector.broadcast %5 : vector<1x128xf32> to vector<12x128xf32>
    %11 = arith.addf %9, %10 : vector<12x128xf32>
    %cst_11 = arith.constant 0.000000e+00 : f32
    %12 = vector.broadcast %cst_11 : f32 to vector<12x128xf32>
    %13 = arith.maximumf %11, %12 : vector<12x128xf32>
    %cst_12 = arith.constant dense<0.000000e+00> : vector<12x64xf32>
    %14 = tpu.matmul %13, %2, %cst_12 {dimension_numbers = #tpu.dot_dimension_numbers<[1], [0], [0], [1], [0, 0, 1, 1], [], []>, precision = #tpu.contract_precision<fp32>} : vector<12x128xf32>, vector<128x64xf32>, vector<12x64xf32> -> vector<12x64xf32>
    %15 = vector.broadcast %6 : vector<1x64xf32> to vector<12x64xf32>
    %16 = arith.addf %14, %15 : vector<12x64xf32>
    %17 = vector.extract_strided_slice %16 {offsets = [0, 0], sizes = [8, 64], strides = [1, 1]} : vector<12x64xf32> to vector<8x64xf32>
    %18 = vector.extract_strided_slice %16 {offsets = [8, 0], sizes = [4, 64], strides = [1, 1]} : vector<12x64xf32> to vector<4x64xf32>
    %19 = vector.extract_strided_slice %17 {offsets = [0, 0], sizes = [8, 16], strides = [1, 1]} : vector<8x64xf32> to vector<8x16xf32>
    %20 = arith.mulf %19, %19 : vector<8x16xf32>
    %cst_13 = arith.constant dense<0.000000e+00> : vector<8xf32>
    %21 = vector.multi_reduction <add>, %20, %cst_13 [1] : vector<8x16xf32> to vector<8xf32>
    %22 = vector.shape_cast %21 : vector<8xf32> to vector<8x1xf32>
    %cst_14 = arith.constant 1.000000e-24 : f32
    %23 = vector.broadcast %cst_14 : f32 to vector<8x1xf32>
    %24 = arith.maximumf %22, %23 : vector<8x1xf32>
    %25 = math.rsqrt %24 : vector<8x1xf32>
    %26 = vector.broadcast %25 : vector<8x1xf32> to vector<8x16xf32>
    %27 = arith.mulf %19, %26 : vector<8x16xf32>
    %28 = vector.extract_strided_slice %17 {offsets = [0, 16], sizes = [8, 16], strides = [1, 1]} : vector<8x64xf32> to vector<8x16xf32>
    %29 = vector.extract_strided_slice %18 {offsets = [0, 32], sizes = [4, 16], strides = [1, 1]} : vector<4x64xf32> to vector<4x16xf32>
    %30 = arith.mulf %29, %29 : vector<4x16xf32>
    %cst_15 = arith.constant dense<0.000000e+00> : vector<4xf32>
    %31 = vector.multi_reduction <add>, %30, %cst_15 [1] : vector<4x16xf32> to vector<4xf32>
    %32 = vector.shape_cast %31 : vector<4xf32> to vector<4x1xf32>
    %cst_16 = arith.constant 1.000000e-24 : f32
    %33 = vector.broadcast %cst_16 : f32 to vector<4x1xf32>
    %34 = arith.maximumf %32, %33 : vector<4x1xf32>
    %35 = math.rsqrt %34 : vector<4x1xf32>
    %36 = vector.broadcast %35 : vector<4x1xf32> to vector<4x16xf32>
    %37 = arith.mulf %29, %36 : vector<4x16xf32>
    %38 = vector.extract_strided_slice %18 {offsets = [0, 48], sizes = [4, 16], strides = [1, 1]} : vector<4x64xf32> to vector<4x16xf32>
    %cst_17 = arith.constant dense<0.000000e+00> : vector<8x4xf32>
    %39 = tpu.matmul %27, %37, %cst_17 {dimension_numbers = #tpu.dot_dimension_numbers<[1], [1], [0], [0], [0, 0, 1, 0], [], []>, precision = #tpu.contract_precision<fp32>} : vector<8x16xf32>, vector<4x16xf32>, vector<8x4xf32> -> vector<8x4xf32>
    %cst_18 = arith.constant 7.000000e-02 : f32
    %40 = vector.broadcast %cst_18 : f32 to vector<8x4xf32>
    %41 = arith.divf %39, %40 : vector<8x4xf32>
    %42 = tpu.iota {dimensions = array<i32: 0>} : vector<8x4xi32>
    %43 = tpu.iota {dimensions = array<i32: 1>} : vector<8x4xi32>
    %44 = arith.cmpi eq, %42, %43 : vector<8x4xi32>
    %c4_i32 = arith.constant 4 : i32
    %45 = vector.broadcast %c4_i32 : i32 to vector<8x4xi32>
    %46 = arith.addi %43, %45 : vector<8x4xi32>
    %47 = arith.cmpi eq, %42, %46 : vector<8x4xi32>
    %48 = arith.ori %44, %47 : vector<8x4xi1>
    %cst_19 = arith.constant 0.000000e+00 : f32
    %49 = vector.broadcast %cst_19 : f32 to vector<8x4xf32>
    %50 = arith.select %48, %41, %49 : vector<8x4xi1>, vector<8x4xf32>
    %51 = vector.shape_cast %50 : vector<8x4xf32> to vector<1x8x4xf32>
    %cst_20 = arith.constant dense<0.000000e+00> : vector<1xf32>
    %52 = vector.multi_reduction <add>, %51, %cst_20 [1, 2] : vector<1x8x4xf32> to vector<1xf32>
    %53 = vector.shape_cast %52 : vector<1xf32> to vector<1x1x1xf32>
    %54 = vector.extract %53[0, 0, 0] : f32 from vector<1x1x1xf32>
    %cst_21 = arith.constant dense<0xFF800000> : vector<8xf32>
    %55 = vector.multi_reduction <maximumf>, %41, %cst_21 [1] : vector<8x4xf32> to vector<8xf32>
    %56 = vector.shape_cast %55 : vector<8xf32> to vector<8x1xf32>
    %57 = vector.broadcast %56 : vector<8x1xf32> to vector<8x4xf32>
    %58 = arith.subf %41, %57 : vector<8x4xf32>
    %59 = math.exp %58 : vector<8x4xf32>
    %cst_22 = arith.constant dense<0.000000e+00> : vector<8xf32>
    %60 = vector.multi_reduction <add>, %59, %cst_22 [1] : vector<8x4xf32> to vector<8xf32>
    %61 = vector.shape_cast %60 : vector<8xf32> to vector<8x1xf32>
    %62 = math.log %61 : vector<8x1xf32>
    %63 = arith.addf %62, %56 : vector<8x1xf32>
    %64 = vector.shape_cast %63 : vector<8x1xf32> to vector<1x8x1xf32>
    %cst_23 = arith.constant dense<0.000000e+00> : vector<1xf32>
    %65 = vector.multi_reduction <add>, %64, %cst_23 [1, 2] : vector<1x8x1xf32> to vector<1xf32>
    %66 = vector.shape_cast %65 : vector<1xf32> to vector<1x1x1xf32>
    %67 = vector.extract %66[0, 0, 0] : f32 from vector<1x1x1xf32>
    %68 = arith.subf %67, %54 : f32
    %cst_24 = arith.constant 8.000000e+00 : f32
    %69 = arith.divf %68, %cst_24 : f32
    %c4_i32_25 = arith.constant 4 : i32
    %70 = vector.broadcast %c4_i32_25 : i32 to vector<8x4xi32>
    %71 = arith.cmpi slt, %42, %70 : vector<8x4xi32>
    %cst_26 = arith.constant 0xFF800000 : f32
    %72 = vector.broadcast %cst_26 : f32 to vector<8x4xf32>
    %73 = arith.select %71, %41, %72 : vector<8x4xi1>, vector<8x4xf32>
    %cst_27 = arith.constant 0xFF800000 : f32
    %74 = vector.broadcast %cst_27 : f32 to vector<8x4xf32>
    %75 = arith.select %71, %74, %41 : vector<8x4xi1>, vector<8x4xf32>
    %cst_28 = arith.constant dense<0xFF800000> : vector<4xf32>
    %76 = vector.multi_reduction <maximumf>, %73, %cst_28 [0] : vector<8x4xf32> to vector<4xf32>
    %77 = vector.shape_cast %76 : vector<4xf32> to vector<1x4xf32>
    %cst_29 = arith.constant dense<0xFF800000> : vector<4xf32>
    %78 = vector.multi_reduction <maximumf>, %75, %cst_29 [0] : vector<8x4xf32> to vector<4xf32>
    %79 = vector.shape_cast %78 : vector<4xf32> to vector<1x4xf32>
    %80 = vector.broadcast %77 : vector<1x4xf32> to vector<8x4xf32>
    %81 = arith.subf %73, %80 : vector<8x4xf32>
    %82 = math.exp %81 : vector<8x4xf32>
    %cst_30 = arith.constant dense<0.000000e+00> : vector<4xf32>
    %83 = vector.multi_reduction <add>, %82, %cst_30 [0] : vector<8x4xf32> to vector<4xf32>
    %84 = vector.shape_cast %83 : vector<4xf32> to vector<1x4xf32>
    %85 = math.log %84 : vector<1x4xf32>
    %86 = arith.addf %85, %77 : vector<1x4xf32>
    %87 = vector.broadcast %79 : vector<1x4xf32> to vector<8x4xf32>
    %88 = arith.subf %75, %87 : vector<8x4xf32>
    %89 = math.exp %88 : vector<8x4xf32>
    %cst_31 = arith.constant dense<0.000000e+00> : vector<4xf32>
    %90 = vector.multi_reduction <add>, %89, %cst_31 [0] : vector<8x4xf32> to vector<4xf32>
    %91 = vector.shape_cast %90 : vector<4xf32> to vector<1x4xf32>
    %92 = math.log %91 : vector<1x4xf32>
    %93 = arith.addf %92, %79 : vector<1x4xf32>
    %94 = vector.shape_cast %86 : vector<1x4xf32> to vector<1x1x4xf32>
    %cst_32 = arith.constant dense<0.000000e+00> : vector<1xf32>
    %95 = vector.multi_reduction <add>, %94, %cst_32 [1, 2] : vector<1x1x4xf32> to vector<1xf32>
    %96 = vector.shape_cast %95 : vector<1xf32> to vector<1x1x1xf32>
    %97 = vector.extract %96[0, 0, 0] : f32 from vector<1x1x1xf32>
    %98 = vector.shape_cast %93 : vector<1x4xf32> to vector<1x1x4xf32>
    %cst_33 = arith.constant dense<0.000000e+00> : vector<1xf32>
    %99 = vector.multi_reduction <add>, %98, %cst_33 [1, 2] : vector<1x1x4xf32> to vector<1xf32>
    %100 = vector.shape_cast %99 : vector<1xf32> to vector<1x1x1xf32>
    %101 = vector.extract %100[0, 0, 0] : f32 from vector<1x1x1xf32>
    %102 = arith.addf %97, %101 : f32
    %103 = arith.subf %102, %54 : f32
    %cst_34 = arith.constant 8.000000e+00 : f32
    %104 = arith.divf %103, %cst_34 : f32
    %105 = arith.addf %69, %104 : f32
    %cst_35 = arith.constant 5.000000e-01 : f32
    %106 = arith.mulf %cst_35, %105 : f32
    %107 = tpu.iota {dimensions = array<i32: 0>} : vector<8x8xi32>
    %108 = tpu.iota {dimensions = array<i32: 1>} : vector<8x8xi32>
    %c4_i32_36 = arith.constant 4 : i32
    %109 = vector.broadcast %c4_i32_36 : i32 to vector<8x8xi32>
    %110 = arith.addi %107, %109 : vector<8x8xi32>
    %111 = arith.cmpi eq, %108, %110 : vector<8x8xi32>
    %c4_i32_37 = arith.constant 4 : i32
    %112 = vector.broadcast %c4_i32_37 : i32 to vector<8x8xi32>
    %113 = arith.subi %107, %112 : vector<8x8xi32>
    %114 = arith.cmpi eq, %108, %113 : vector<8x8xi32>
    %115 = arith.ori %111, %114 : vector<8x8xi1>
    %cst_38 = arith.constant 1.000000e+00 : f32
    %cst_39 = arith.constant 0.000000e+00 : f32
    %116 = vector.broadcast %cst_38 : f32 to vector<8x8xf32>
    %117 = vector.broadcast %cst_39 : f32 to vector<8x8xf32>
    %118 = arith.select %115, %116, %117 : vector<8x8xi1>, vector<8x8xf32>
    %119 = arith.cmpi eq, %108, %107 : vector<8x8xi32>
    %cst_40 = arith.constant 1.000000e+00 : f32
    %cst_41 = arith.constant 0.000000e+00 : f32
    %120 = vector.broadcast %cst_40 : f32 to vector<8x8xf32>
    %121 = vector.broadcast %cst_41 : f32 to vector<8x8xf32>
    %122 = arith.select %119, %120, %121 : vector<8x8xi1>, vector<8x8xf32>
    %123 = arith.subf %118, %122 : vector<8x8xf32>
    %cst_42 = arith.constant dense<0.000000e+00> : vector<8x16xf32>
    %124 = tpu.matmul %123, %28, %cst_42 {dimension_numbers = #tpu.dot_dimension_numbers<[1], [0], [0], [1], [0, 0, 1, 1], [], []>, precision = #tpu.contract_precision<fp32>} : vector<8x8xf32>, vector<8x16xf32>, vector<8x16xf32> -> vector<8x16xf32>
    %cst_43 = arith.constant dense<0.000000e+00> : vector<8x32xf32>
    %125 = tpu.matmul %124, %3, %cst_43 {dimension_numbers = #tpu.dot_dimension_numbers<[1], [0], [0], [1], [0, 0, 1, 1], [], []>, precision = #tpu.contract_precision<fp32>} : vector<8x16xf32>, vector<16x32xf32>, vector<8x32xf32> -> vector<8x32xf32>
    %126 = vector.broadcast %7 : vector<1x32xf32> to vector<8x32xf32>
    %127 = arith.addf %125, %126 : vector<8x32xf32>
    %cst_44 = arith.constant 0.000000e+00 : f32
    %128 = vector.broadcast %cst_44 : f32 to vector<8x32xf32>
    %129 = arith.maximumf %127, %128 : vector<8x32xf32>
    %cst_45 = arith.constant dense<0.000000e+00> : vector<8x16xf32>
    %130 = tpu.matmul %129, %4, %cst_45 {dimension_numbers = #tpu.dot_dimension_numbers<[1], [0], [0], [1], [0, 0, 1, 1], [], []>, precision = #tpu.contract_precision<fp32>} : vector<8x32xf32>, vector<32x16xf32>, vector<8x16xf32> -> vector<8x16xf32>
    %131 = vector.broadcast %8 : vector<1x16xf32> to vector<8x16xf32>
    %132 = arith.addf %130, %131 : vector<8x16xf32>
    %133 = arith.mulf %132, %132 : vector<8x16xf32>
    %cst_46 = arith.constant dense<0.000000e+00> : vector<8xf32>
    %134 = vector.multi_reduction <add>, %133, %cst_46 [1] : vector<8x16xf32> to vector<8xf32>
    %135 = vector.shape_cast %134 : vector<8xf32> to vector<8x1xf32>
    %cst_47 = arith.constant 1.000000e-24 : f32
    %136 = vector.broadcast %cst_47 : f32 to vector<8x1xf32>
    %137 = arith.maximumf %135, %136 : vector<8x1xf32>
    %138 = math.rsqrt %137 : vector<8x1xf32>
    %139 = vector.broadcast %138 : vector<8x1xf32> to vector<8x16xf32>
    %140 = arith.mulf %132, %139 : vector<8x16xf32>
    %141 = arith.mulf %38, %38 : vector<4x16xf32>
    %cst_48 = arith.constant dense<0.000000e+00> : vector<4xf32>
    %142 = vector.multi_reduction <add>, %141, %cst_48 [1] : vector<4x16xf32> to vector<4xf32>
    %143 = vector.shape_cast %142 : vector<4xf32> to vector<4x1xf32>
    %cst_49 = arith.constant 1.000000e-24 : f32
    %144 = vector.broadcast %cst_49 : f32 to vector<4x1xf32>
    %145 = arith.maximumf %143, %144 : vector<4x1xf32>
    %146 = math.rsqrt %145 : vector<4x1xf32>
    %147 = vector.broadcast %146 : vector<4x1xf32> to vector<4x16xf32>
    %148 = arith.mulf %38, %147 : vector<4x16xf32>
    %cst_50 = arith.constant dense<0.000000e+00> : vector<8x4xf32>
    %149 = tpu.matmul %140, %148, %cst_50 {dimension_numbers = #tpu.dot_dimension_numbers<[1], [1], [0], [0], [0, 0, 1, 0], [], []>, precision = #tpu.contract_precision<fp32>} : vector<8x16xf32>, vector<4x16xf32>, vector<8x4xf32> -> vector<8x4xf32>
    %cst_51 = arith.constant 0.000000e+00 : f32
    %150 = vector.broadcast %cst_51 : f32 to vector<8x4xf32>
    %151 = arith.select %48, %149, %150 : vector<8x4xi1>, vector<8x4xf32>
    %cst_52 = arith.constant dense<0.000000e+00> : vector<8xf32>
    %152 = vector.multi_reduction <add>, %151, %cst_52 [1] : vector<8x4xf32> to vector<8xf32>
    %153 = vector.shape_cast %152 : vector<8xf32> to vector<8x1xf32>
    %cst_53 = arith.constant 5.000000e+00 : f32
    %154 = vector.broadcast %cst_53 : f32 to vector<8x1xf32>
    %155 = arith.mulf %153, %154 : vector<8x1xf32>
    %156 = tpu.iota {dimensions = array<i32: 0>} : vector<8x1xi32>
    %c4_i32_54 = arith.constant 4 : i32
    %157 = vector.broadcast %c4_i32_54 : i32 to vector<8x1xi32>
    %158 = arith.cmpi slt, %156, %157 : vector<8x1xi32>
    %cst_55 = arith.constant -1.000000e+00 : f32
    %cst_56 = arith.constant 1.000000e+00 : f32
    %159 = vector.broadcast %cst_55 : f32 to vector<8x1xf32>
    %160 = vector.broadcast %cst_56 : f32 to vector<8x1xf32>
    %161 = arith.select %158, %159, %160 : vector<8x1xi1>, vector<8x1xf32>
    %162 = arith.mulf %161, %155 : vector<8x1xf32>
    %cst_57 = arith.constant 0.000000e+00 : f32
    %163 = vector.broadcast %cst_57 : f32 to vector<8x1xf32>
    %164 = arith.maximumf %163, %162 : vector<8x1xf32>
    %165 = vector.broadcast %cst_57 : f32 to vector<8x1xf32>
    %166 = arith.subf %165, %162 : vector<8x1xf32>
    %167 = arith.cmpf one, %166, %166 : vector<8x1xf32>
    %168 = vector.broadcast %cst_57 : f32 to vector<8x1xf32>
    %169 = arith.addf %168, %162 : vector<8x1xf32>
    %170 = math.absf %166 : vector<8x1xf32>
    %cst_58 = arith.constant 0.000000e+00 : f32
    %171 = vector.broadcast %cst_58 : f32 to vector<8x1xf32>
    %172 = arith.subf %171, %170 : vector<8x1xf32>
    %173 = math.exp %172 : vector<8x1xf32>
    %174 = math.log1p %173 : vector<8x1xf32>
    %175 = arith.addf %164, %174 : vector<8x1xf32>
    %176 = arith.select %167, %169, %175 : vector<8x1xi1>, vector<8x1xf32>
    %177 = vector.shape_cast %176 : vector<8x1xf32> to vector<1x8x1xf32>
    %cst_59 = arith.constant dense<0.000000e+00> : vector<1xf32>
    %178 = vector.multi_reduction <add>, %177, %cst_59 [1, 2] : vector<1x8x1xf32> to vector<1xf32>
    %179 = vector.shape_cast %178 : vector<1xf32> to vector<1x1x1xf32>
    %180 = vector.extract %179[0, 0, 0] : f32 from vector<1x1x1xf32>
    %cst_60 = arith.constant 8.000000e+00 : f32
    %181 = arith.divf %180, %cst_60 : f32
    %cst_61 = arith.constant 5.000000e-01 : f32
    %182 = arith.mulf %cst_61, %181 : f32
    %cst_62 = arith.constant 5.000000e-01 : f32
    %183 = arith.mulf %cst_62, %106 : f32
    %184 = arith.addf %182, %183 : f32
    %185 = tpu.iota {dimensions = array<i32: 1>} : vector<1x128xi32>
    %c0_i32 = arith.constant 0 : i32
    %186 = vector.broadcast %c0_i32 : i32 to vector<1x128xi32>
    %187 = arith.cmpi eq, %185, %186 : vector<1x128xi32>
    %cst_63 = arith.constant 0.000000e+00 : f32
    %188 = vector.broadcast %184 : f32 to vector<1x128xf32>
    %189 = vector.broadcast %cst_63 : f32 to vector<1x128xf32>
    %190 = arith.select %187, %188, %189 : vector<1x128xi1>, vector<1x128xf32>
    %c1_i32 = arith.constant 1 : i32
    %191 = vector.broadcast %c1_i32 : i32 to vector<1x128xi32>
    %192 = arith.cmpi eq, %185, %191 : vector<1x128xi32>
    %cst_64 = arith.constant 0.000000e+00 : f32
    %193 = vector.broadcast %106 : f32 to vector<1x128xf32>
    %194 = vector.broadcast %cst_64 : f32 to vector<1x128xf32>
    %195 = arith.select %192, %193, %194 : vector<1x128xi1>, vector<1x128xf32>
    %196 = arith.addf %190, %195 : vector<1x128xf32>
    %c2_i32 = arith.constant 2 : i32
    %197 = vector.broadcast %c2_i32 : i32 to vector<1x128xi32>
    %198 = arith.cmpi eq, %185, %197 : vector<1x128xi32>
    %cst_65 = arith.constant 0.000000e+00 : f32
    %199 = vector.broadcast %181 : f32 to vector<1x128xf32>
    %200 = vector.broadcast %cst_65 : f32 to vector<1x128xf32>
    %201 = arith.select %198, %199, %200 : vector<1x128xi1>, vector<1x128xf32>
    %202 = arith.addf %196, %201 : vector<1x128xf32>
    %c0_66 = arith.constant 0 : index
    %c0_67 = arith.constant 0 : index
    %203 = vector.load %arg3[%c0_66, %c0_67] : memref<1x128xf32, #tpu.memory_space<vmem>>, vector<1x128xf32>
    tpu.vector_store %arg3[%c0_66, %c0_67], %202 {strides = array<i32>} : memref<1x128xf32, #tpu.memory_space<vmem>>, vector<1x128xf32>,
    return
  }
}

</mosaic_0001>

<llo_original>
// kernel: tpu_custom_call.1
$region0: #{tpu_custom_call.1}
  #allocation0 [shape = 'u32[]', space=smem, size = 0x4, offset = 0x4, fixed_abs, tag = 'smem constant byte address 0x4 - core index']
  #allocation1 [shape = 'u32[144,128]{1,0:T(1,128)}', space=vmem, size = 0x12000, scoped, tag = 'internal scratch']
  %s0 = inlined_call_operand.hbm [shape: f32[12,32], index: 0, kind: input, shape index: {}]
  %s1 = inlined_call_operand.hbm [shape: f32[128,512], index: 1, kind: input, shape index: {}]
  %s2 = inlined_call_operand.vmem [shape: f32[4,128], index: 2, kind: input, shape index: {}]
  %s3 = inlined_call_operand.hbm [shape: f32[1,128], index: 3, kind: output, shape index: {}]
  %s4 = sld [smem:[#allocation0]]
  $region30: #{tpu_custom_call.1} parent=0
    _
  %s6 = ssub.s32 1, %s4
  %s7 = scalar_select 0, %s6, %s4
  $region1: #{tpu_custom_call.1} parent=0
    #allocation2 [shape = 'u8[8192]{0}', space=vmem, size = 0x2000, scoped, tag = 'input window, operand 0, single buffered']
    #allocation3 [shape = 's32[1]{0}', space=sflag, size = 0x4, scoped, tag = 'scoped memory for tpu_custom_call.1']
    #allocation4 [shape = 's32[1]{0}', space=sflag, size = 0x4, scoped, tag = 'scoped memory for tpu_custom_call.1']
    #allocation5 [shape = 'u8[262144]{0}', space=vmem, size = 0x40000, scoped, tag = 'input window, operand 1, single buffered']
    #allocation6 [shape = 's32[1]{0}', space=sflag, size = 0x4, scoped, tag = 'scoped memory for tpu_custom_call.1']
    #allocation7 [shape = 'u8[512]{0}', space=vmem, size = 0x400, scoped, tag = 'output window, operand 0, single buffered']
    %8 = vsyncpa [#allocation3], 0
    %9 = vsyncpa [#allocation6], 0
    %10 = vsyncpa [#allocation4], 0
    // Predicated region
    $region2: #{tpu_custom_call.1} parent=1 // pred_check
      _
    $region3: #{tpu_custom_call.1} parent=1 // pred_check_branch
      %12 = sbr.rel (0) target = $region5
    $region4: #{tpu_custom_call.1} parent=1 // pred_region
      %s14 = ssub.s32 256, 256
      %15 = vsyncadd [#allocation3], %s14
      %s16 = sshll.u32 [#allocation2], 4
      %s17 = int_to_ptr.vmem [resolvable:$true] %s16
      %22 = dma.hbm_to_vmem [thread:$0]  %s0, 256, %s17, [#allocation3], 128, 128, 8
    $region5: #{tpu_custom_call.1} parent=1 // pred_fallthru
      _
    // Predicated region
    $region6: #{tpu_custom_call.1} parent=1 // pred_check
      _
    $region7: #{tpu_custom_call.1} parent=1 // pred_check_branch
      %24 = sbr.rel (0) target = $region9
    $region8: #{tpu_custom_call.1} parent=1 // pred_region
      %s26 = ssub.s32 8192, 8192
      %27 = vsyncadd [#allocation6], %s26
      %s28 = sshll.u32 [#allocation5], 4
      %s29 = int_to_ptr.vmem [resolvable:$true] %s28
      %34 = dma.hbm_to_vmem [thread:$0]  %s1, 8192, %s29, [#allocation6], 512, 512, 32
    $region9: #{tpu_custom_call.1} parent=1 // pred_fallthru
      _
    // Predicated region
    $region10: #{tpu_custom_call.1} parent=1 // pred_check
      _
    $region11: #{tpu_custom_call.1} parent=1 // pred_check_branch
      %36 = sbr.rel (0) target = $region13
    $region12: #{tpu_custom_call.1} parent=1 // pred_region
      _
    $region13: #{tpu_custom_call.1} parent=1 // pred_fallthru
      _
    // Predicated region
    $region14: #{tpu_custom_call.1} parent=1 // pred_check
      _
    $region15: #{tpu_custom_call.1} parent=1 // pred_check_branch
      %38 = sbr.rel (0) target = $region17
    $region16: #{tpu_custom_call.1} parent=1 // pred_region
      %39 = dma.done [#allocation3], 256
    $region17: #{tpu_custom_call.1} parent=1 // pred_fallthru
      _
    // Predicated region
    $region18: #{tpu_custom_call.1} parent=1 // pred_check
      _
    $region19: #{tpu_custom_call.1} parent=1 // pred_check_branch
      %41 = sbr.rel (0) target = $region21
    $region20: #{tpu_custom_call.1} parent=1 // pred_region
      %42 = dma.done [#allocation6], 8192
    $region21: #{tpu_custom_call.1} parent=1 // pred_fallthru
      _
    %v43 = vld [vmem:[#allocation2] sm:$0xff]
    %v44 = vld [vmem:[#allocation2 + $0x8] sm:$0xf]
    %v45 = vld [vmem:[#allocation5] sm:$0xff]
    %v46 = vld [vmem:[#allocation5 + $0x20] sm:$0xff]
    %v47 = vld [vmem:[#allocation5 + $0x40] sm:$0xff]
    %v48 = vld [vmem:[#allocation5 + $0x60] sm:$0xff]
    %v49 = vld [vmem:[#allocation5 + $0x8] sm:$0xff]
    %v50 = vld [vmem:[#allocation5 + $0x28] sm:$0xff]
    %v51 = vld [vmem:[#allocation5 + $0x48] sm:$0xff]
    %v52 = vld [vmem:[#allocation5 + $0x68] sm:$0xff]
    %v53 = vld [vmem:[#allocation5 + $0x88] sm:$0xff]
    %v54 = vld [vmem:[#allocation5 + $0xa8] sm:$0xff]
    %v55 = vld [vmem:[#allocation5 + $0xc8] sm:$0xff]
    %v56 = vld [vmem:[#allocation5 + $0xe8] sm:$0xff]
    %v57 = vld [vmem:[#allocation5 + $0x108] sm:$0xff]
    %v58 = vld [vmem:[#allocation5 + $0x128] sm:$0xff]
    %v59 = vld [vmem:[#allocation5 + $0x148] sm:$0xff]
    %v60 = vld [vmem:[#allocation5 + $0x168] sm:$0xff]
    %v61 = vld [vmem:[#allocation5 + $0x188] sm:$0xff]
    %v62 = vld [vmem:[#allocation5 + $0x1a8] sm:$0xff]
    %v63 = vld [vmem:[#allocation5 + $0x1c8] sm:$0xff]
    %v64 = vld [vmem:[#allocation5 + $0x1e8] sm:$0xff]
    %v65 = vld [vmem:[#allocation5 + $0x10] sm:$0xff]
    %v66 = vld [vmem:[#allocation5 + $0x30] sm:$0xff]
    %v67 = vld [vmem:[#allocation5 + $0x18] sm:$0xff]
    %v68 = vld [vmem:[#allocation5 + $0x38] sm:$0xff]
    %v69 = vld [vmem:[#allocation5 + $0x58] sm:$0xff]
    %v70 = vld [vmem:[#allocation5 + $0x78] sm:$0xff]
    %v71 = vld [vmem:[%s2] sm:$0x1]
    %v72 = vld [vmem:[%s2 + $0x1] sm:$0x1]
    %v73 = vld [vmem:[%s2 + $0x2] sm:$0x1]
    %v74 = vld [vmem:[%s2 + $0x3] sm:$0x1]
    %v75 = vlaneseq
    %v76 = vshrl.u32 %v75, 7
    %v77 = vsub.s32 0, %v76
    %v78 = vrot.slane %v71, %v77
    %vm79 = vcmask 261120
    %v81 = vsel %vm79, %v43, 0
    %v84 = vsel %vm79, %v44, 0
    %86 = vmatprep.subr.mxu0 0.0
    %v87 = vand.u32 %v45, 4294901760
    %88 = vmatpush1.msra.mxu0 %v87
    %89 = vmatprep.subr.mxu0 0.0
    %v90 = vand.u32 %v46, 4294901760
    %91 = vmatpush1.msra.mxu0 %v90
    %92 = vmatprep.subr.mxu0 0.0
    %v93 = vand.u32 %v47, 4294901760
    %94 = vmatpush1.msra.mxu0 %v93
    %95 = vmatprep.subr.mxu0 0.0
    %v96 = vand.u32 %v48, 4294901760
    %97 = vmatpush1.msra.mxu0 %v96
    %98 = vmatprep.subr.mxu0 0.0
    %99 = vmatpush1.msra.mxu0 0.0
    %100 = vmatprep.subr.mxu0 0.0
    %101 = vmatpush1.msra.mxu0 0.0
    %102 = vmatprep.subr.mxu0 0.0
    %103 = vmatpush1.msra.mxu0 0.0
    %104 = vmatprep.subr.mxu0 0.0
    %105 = vmatpush1.msra.mxu0 0.0
    %106 = vmatprep.subr.mxu0 0.0
    %107 = vmatpush1.msra.mxu0 0.0
    %108 = vmatprep.subr.mxu0 0.0
    %109 = vmatpush1.msra.mxu0 0.0
    %110 = vmatprep.subr.mxu0 0.0
    %111 = vmatpush1.msra.mxu0 0.0
    %112 = vmatprep.subr.mxu0 0.0
    %113 = vmatpush1.msra.mxu0 0.0
    %114 = vmatprep.subr.mxu0 0.0
    %115 = vmatpush1.msra.mxu0 0.0
    %116 = vmatprep.subr.mxu0 0.0
    %117 = vmatpush1.msra.mxu0 0.0
    %118 = vmatprep.subr.mxu0 0.0
    %119 = vmatpush1.msra.mxu0 0.0
    %120 = vmatprep.subr.mxu0 0.0
    %121 = vmatpush1.msra.mxu0 0.0
    %122 = vmatprep.subr.mxu0 0.0
    %123 = vmatpush1.msra.mxu0 0.0
    %124 = vmatprep.subr.mxu0 0.0
    %125 = vmatpush1.msra.mxu0 0.0
    %126 = vmatprep.subr.mxu0 0.0
    %127 = vmatpush1.msra.mxu0 0.0
    %128 = vmatprep.subr.mxu0 0.0
    %129 = vmatpush1.msra.mxu0 0.0
    %130 = vmatprep.subr.mxu0 0.0
    %131 = vmatpush1.msra.mxu0 0.0
    %132 = vmatprep.subr.mxu0 0.0
    %133 = vmatpush1.msra.mxu0 0.0
    %134 = vmatprep.subr.mxu0 0.0
    %135 = vmatpush1.msra.mxu0 0.0
    %136 = vmatprep.subr.mxu0 0.0
    %137 = vmatpush1.msra.mxu0 0.0
    %138 = vmatprep.subr.mxu0 0.0
    %139 = vmatpush1.msra.mxu0 0.0
    %140 = vmatprep.subr.mxu0 0.0
    %141 = vmatpush1.msra.mxu0 0.0
    %142 = vmatprep.subr.mxu0 0.0
    %143 = vmatpush1.msra.mxu0 0.0
    %144 = vmatprep.subr.mxu0 0.0
    %145 = vmatpush1.msra.mxu0 0.0
    %146 = vmatprep.subr.mxu0 0.0
    %147 = vmatpush1.msra.mxu0 0.0
    %148 = vmatprep.subr.mxu0 0.0
    %149 = vmatpush1.msra.mxu0 0.0
    %150 = vmatprep.subr.mxu0 0.0
    %151 = vmatpush1.msra.mxu0 0.0
    %152 = vmatprep.subr.mxu0 0.0
    %153 = vmatpush1.msra.mxu0 0.0
    %154 = vmatprep.mubr.f32.mxu0 0.0
    %v155 = vand.u32 %v81, 4294901760
    %v156 = vsub.f32 %v81, %v155
    %v157 = vand.u32 %v156, 4294901760
    %v158 = vsub.f32 %v156, %v157
    %v159 = vand.u32 %v158, 4294901760
    %160 = vmatmul.mubr.f32.gmra.mrb[0].mxu0 %v159
    %v161 = vpop.f32.mrb[0].mxu0
    %v162 = vadd.f32 %v78, %v161
    %v163 = vpop.f32.mrb[0].mxu0
    %164 = vmatprep.mubr.f32.mxu0 0.0
    %v165 = vand.u32 %v84, 4294901760
    %v166 = vsub.f32 %v84, %v165
    %v167 = vand.u32 %v166, 4294901760
    %v168 = vsub.f32 %v166, %v167
    %v169 = vand.u32 %v168, 4294901760
    %170 = vmatmul.mubr.f32.gmra.mrb[0].mxu0 %v169
    %v171 = vpop.f32.mrb[0].mxu0
    %v172 = vadd.f32 %v78, %v171
    %v173 = vpop.f32.mrb[0].mxu0
    %174 = vdwg.mxu0
    %175 = vmatprep.subr.mxu0 0.0
    %v176 = vand.u32 %v45, 4294901760
    %v177 = vsub.f32 %v45, %v176
    %v178 = vand.u32 %v177, 4294901760
    %v179 = vsub.f32 %v177, %v178
    %v180 = vand.u32 %v179, 4294901760
    %181 = vmatpush1.msra.mxu0 %v180
    %182 = vmatprep.subr.mxu0 0.0
    %v183 = vand.u32 %v46, 4294901760
    %v184 = vsub.f32 %v46, %v183
    %v185 = vand.u32 %v184, 4294901760
    %v186 = vsub.f32 %v184, %v185
    %v187 = vand.u32 %v186, 4294901760
    %188 = vmatpush1.msra.mxu0 %v187
    %189 = vmatprep.subr.mxu0 0.0
    %v190 = vand.u32 %v47, 4294901760
    %v191 = vsub.f32 %v47, %v190
    %v192 = vand.u32 %v191, 4294901760
    %v193 = vsub.f32 %v191, %v192
    %v194 = vand.u32 %v193, 4294901760
    %195 = vmatpush1.msra.mxu0 %v194
    %196 = vmatprep.subr.mxu0 0.0
    %v197 = vand.u32 %v48, 4294901760
    %v198 = vsub.f32 %v48, %v197
    %v199 = vand.u32 %v198, 4294901760
    %v200 = vsub.f32 %v198, %v199
    %v201 = vand.u32 %v200, 4294901760
    %202 = vmatpush1.msra.mxu0 %v201
    %203 = vmatprep.subr.mxu0 0.0
    %204 = vmatpush1.msra.mxu0 0.0
    %205 = vmatprep.subr.mxu0 0.0
    %206 = vmatpush1.msra.mxu0 0.0
    %207 = vmatprep.subr.mxu0 0.0
    %208 = vmatpush1.msra.mxu0 0.0
    %209 = vmatprep.subr.mxu0 0.0
    %210 = vmatpush1.msra.mxu0 0.0
    %211 = vmatprep.subr.mxu0 0.0
    %212 = vmatpush1.msra.mxu0 0.0
    %213 = vmatprep.subr.mxu0 0.0
    %214 = vmatpush1.msra.mxu0 0.0
    %215 = vmatprep.subr.mxu0 0.0
    %216 = vmatpush1.msra.mxu0 0.0
    %217 = vmatprep.subr.mxu0 0.0
    %218 = vmatpush1.msra.mxu0 0.0
    %219 = vmatprep.subr.mxu0 0.0
    %220 = vmatpush1.msra.mxu0 0.0
    %221 = vmatprep.subr.mxu0 0.0
    %222 = vmatpush1.msra.mxu0 0.0
    %223 = vmatprep.subr.mxu0 0.0
    %224 = vmatpush1.msra.mxu0 0.0
    %225 = vmatprep.subr.mxu0 0.0
    %226 = vmatpush1.msra.mxu0 0.0
    %227 = vmatprep.subr.mxu0 0.0
    %228 = vmatpush1.msra.mxu0 0.0
    %229 = vmatprep.subr.mxu0 0.0
    %230 = vmatpush1.msra.mxu0 0.0
    %231 = vmatprep.subr.mxu0 0.0
    %232 = vmatpush1.msra.mxu0 0.0
    %233 = vmatprep.subr.mxu0 0.0
    %234 = vmatpush1.msra.mxu0 0.0
    %235 = vmatprep.subr.mxu0 0.0
    %236 = vmatpush1.msra.mxu0 0.0
    %237 = vmatprep.subr.mxu0 0.0
    %238 = vmatpush1.msra.mxu0 0.0
    %239 = vmatprep.subr.mxu0 0.0
    %240 = vmatpush1.msra.mxu0 0.0
    %241 = vmatprep.subr.mxu0 0.0
    %242 = vmatpush1.msra.mxu0 0.0
    %243 = vmatprep.subr.mxu0 0.0
    %244 = vmatpush1.msra.mxu0 0.0
    %245 = vmatprep.subr.mxu0 0.0
    %246 = vmatpush1.msra.mxu0 0.0
    %247 = vmatprep.subr.mxu0 0.0
    %248 = vmatpush1.msra.mxu0 0.0
    %249 = vmatprep.subr.mxu0 0.0
    %250 = vmatpush1.msra.mxu0 0.0
    %251 = vmatprep.subr.mxu0 0.0
    %252 = vmatpush1.msra.mxu0 0.0
    %253 = vmatprep.subr.mxu0 0.0
    %254 = vmatpush1.msra.mxu0 0.0
    %255 = vmatprep.subr.mxu0 0.0
    %256 = vmatpush1.msra.mxu0 0.0
    %257 = vmatprep.subr.mxu0 0.0
    %258 = vmatpush1.msra.mxu0 0.0
    %259 = vmatprep.mubr.f32.mxu0 0.0
    %v260 = vand.u32 %v81, 4294901760
    %261 = vmatmul.mubr.f32.gmra.mrb[0].mxu0 %v260
    %v262 = vpop.f32.mrb[0].mxu0
    %v263 = vadd.f32 %v162, %v262
    %v264 = vpop.f32.mrb[0].mxu0
    %265 = vmatprep.mubr.f32.mxu0 0.0
    %v266 = vand.u32 %v84, 4294901760
    %267 = vmatmul.mubr.f32.gmra.mrb[0].mxu0 %v266
    %v268 = vpop.f32.mrb[0].mxu0
    %v269 = vadd.f32 %v172, %v268
    %v270 = vpop.f32.mrb[0].mxu0
    %271 = vdwg.mxu0
    %272 = vmatprep.subr.mxu0 0.0
    %v273 = vand.u32 %v45, 4294901760
    %v274 = vsub.f32 %v45, %v273
    %275 = vmatpush1.msra.mxu0 %v274
    %276 = vmatprep.subr.mxu0 0.0
    %v277 = vand.u32 %v46, 4294901760
    %v278 = vsub.f32 %v46, %v277
    %279 = vmatpush1.msra.mxu0 %v278
    %280 = vmatprep.subr.mxu0 0.0
    %v281 = vand.u32 %v47, 4294901760
    %v282 = vsub.f32 %v47, %v281
    %283 = vmatpush1.msra.mxu0 %v282
    %284 = vmatprep.subr.mxu0 0.0
    %v285 = vand.u32 %v48, 4294901760
    %v286 = vsub.f32 %v48, %v285
    %287 = vmatpush1.msra.mxu0 %v286
    %288 = vmatprep.subr.mxu0 0.0
    %289 = vmatpush1.msra.mxu0 0.0
    %290 = vmatprep.subr.mxu0 0.0
    %291 = vmatpush1.msra.mxu0 0.0
    %292 = vmatprep.subr.mxu0 0.0
    %293 = vmatpush1.msra.mxu0 0.0
    %294 = vmatprep.subr.mxu0 0.0
    %295 = vmatpush1.msra.mxu0 0.0
    %296 = vmatprep.subr.mxu0 0.0
    %297 = vmatpush1.msra.mxu0 0.0
    %298 = vmatprep.subr.mxu0 0.0
    %299 = vmatpush1.msra.mxu0 0.0
    %300 = vmatprep.subr.mxu0 0.0
    %301 = vmatpush1.msra.mxu0 0.0
    %302 = vmatprep.subr.mxu0 0.0
    %303 = vmatpush1.msra.mxu0 0.0
    %304 = vmatprep.subr.mxu0 0.0
    %305 = vmatpush1.msra.mxu0 0.0
    %306 = vmatprep.subr.mxu0 0.0
    %307 = vmatpush1.msra.mxu0 0.0
    %308 = vmatprep.subr.mxu0 0.0
    %309 = vmatpush1.msra.mxu0 0.0
    %310 = vmatprep.subr.mxu0 0.0
    %311 = vmatpush1.msra.mxu0 0.0
    %312 = vmatprep.subr.mxu0 0.0
    %313 = vmatpush1.msra.mxu0 0.0
    %314 = vmatprep.subr.mxu0 0.0
    %315 = vmatpush1.msra.mxu0 0.0
    %316 = vmatprep.subr.mxu0 0.0
    %317 = vmatpush1.msra.mxu0 0.0
    %318 = vmatprep.subr.mxu0 0.0
    %319 = vmatpush1.msra.mxu0 0.0
    %320 = vmatprep.subr.mxu0 0.0
    %321 = vmatpush1.msra.mxu0 0.0
    %322 = vmatprep.subr.mxu0 0.0
    %323 = vmatpush1.msra.mxu0 0.0
    %324 = vmatprep.subr.mxu0 0.0
    %325 = vmatpush1.msra.mxu0 0.0
    %326 = vmatprep.subr.mxu0 0.0
    %327 = vmatpush1.msra.mxu0 0.0
    %328 = vmatprep.subr.mxu0 0.0
    %329 = vmatpush1.msra.mxu0 0.0
    %330 = vmatprep.subr.mxu0 0.0
    %331 = vmatpush1.msra.mxu0 0.0
    %332 = vmatprep.subr.mxu0 0.0
    %333 = vmatpush1.msra.mxu0 0.0
    %334 = vmatprep.subr.mxu0 0.0
    %335 = vmatpush1.msra.mxu0 0.0
    %336 = vmatprep.subr.mxu0 0.0
    %337 = vmatpush1.msra.mxu0 0.0
    %338 = vmatprep.subr.mxu0 0.0
    %339 = vmatpush1.msra.mxu0 0.0
    %340 = vmatprep.subr.mxu0 0.0
    %341 = vmatpush1.msra.mxu0 0.0
    %342 = vmatprep.subr.mxu0 0.0
    %343 = vmatpush1.msra.mxu0 0.0
    %344 = vmatprep.mubr.f32.mxu0 0.0
    %v345 = vand.u32 %v81, 4294901760
    %v346 = vsub.f32 %v81, %v345
    %347 = vmatmul.mubr.f32.gmra.mrb[0].mxu0 %v346
    %v348 = vpop.f32.mrb[0].mxu0
    %v349 = vadd.f32 %v263, %v348
    %v350 = vpop.f32.mrb[0].mxu0
    %351 = vmatprep.mubr.f32.mxu0 0.0
    %v352 = vand.u32 %v84, 4294901760
    %v353 = vsub.f32 %v84, %v352
    %354 = vmatmul.mubr.f32.gmra.mrb[0].mxu0 %v353
    %v355 = vpop.f32.mrb[0].mxu0
    %v356 = vadd.f32 %v269, %v355
    %v357 = vpop.f32.mrb[0].mxu0
    %358 = vdwg.mxu0
    %359 = vmatprep.subr.mxu0 0.0
    %v360 = vand.u32 %v45, 4294901760
    %361 = vmatpush1.msra.mxu0 %v360
    %362 = vmatprep.subr.mxu0 0.0
    %v363 = vand.u32 %v46, 4294901760
    %364 = vmatpush1.msra.mxu0 %v363
    %365 = vmatprep.subr.mxu0 0.0
    %v366 = vand.u32 %v47, 4294901760
    %367 = vmatpush1.msra.mxu0 %v366
    %368 = vmatprep.subr.mxu0 0.0
    %v369 = vand.u32 %v48, 4294901760
    %370 = vmatpush1.msra.mxu0 %v369
    %371 = vmatprep.subr.mxu0 0.0
    %372 = vmatpush1.msra.mxu0 0.0
    %373 = vmatprep.subr.mxu0 0.0
    %374 = vmatpush1.msra.mxu0 0.0
    %375 = vmatprep.subr.mxu0 0.0
    %376 = vmatpush1.msra.mxu0 0.0
    %377 = vmatprep.subr.mxu0 0.0
    %378 = vmatpush1.msra.mxu0 0.0
    %379 = vmatprep.subr.mxu0 0.0
    %380 = vmatpush1.msra.mxu0 0.0
    %381 = vmatprep.subr.mxu0 0.0
    %382 = vmatpush1.msra.mxu0 0.0
    %383 = vmatprep.subr.mxu0 0.0
    %384 = vmatpush1.msra.mxu0 0.0
    %385 = vmatprep.subr.mxu0 0.0
    %386 = vmatpush1.msra.mxu0 0.0
    %387 = vmatprep.subr.mxu0 0.0
    %388 = vmatpush1.msra.mxu0 0.0
    %389 = vmatprep.subr.mxu0 0.0
    %390 = vmatpush1.msra.mxu0 0.0
    %391 = vmatprep.subr.mxu0 0.0
    %392 = vmatpush1.msra.mxu0 0.0
    %393 = vmatprep.subr.mxu0 0.0
    %394 = vmatpush1.msra.mxu0 0.0
    %395 = vmatprep.subr.mxu0 0.0
    %396 = vmatpush1.msra.mxu0 0.0
    %397 = vmatprep.subr.mxu0 0.0
    %398 = vmatpush1.msra.mxu0 0.0
    %399 = vmatprep.subr.mxu0 0.0
    %400 = vmatpush1.msra.mxu0 0.0
    %401 = vmatprep.subr.mxu0 0.0
    %402 = vmatpush1.msra.mxu0 0.0
    %403 = vmatprep.subr.mxu0 0.0
    %404 = vmatpush1.msra.mxu0 0.0
    %405 = vmatprep.subr.mxu0 0.0
    %406 = vmatpush1.msra.mxu0 0.0
    %407 = vmatprep.subr.mxu0 0.0
    %408 = vmatpush1.msra.mxu0 0.0
    %409 = vmatprep.subr.mxu0 0.0
    %410 = vmatpush1.msra.mxu0 0.0
    %411 = vmatprep.subr.mxu0 0.0
    %412 = vmatpush1.msra.mxu0 0.0
    %413 = vmatprep.subr.mxu0 0.0
    %414 = vmatpush1.msra.mxu0 0.0
    %415 = vmatprep.subr.mxu0 0.0
    %416 = vmatpush1.msra.mxu0 0.0
    %417 = vmatprep.subr.mxu0 0.0
    %418 = vmatpush1.msra.mxu0 0.0
    %419 = vmatprep.subr.mxu0 0.0
    %420 = vmatpush1.msra.mxu0 0.0
    %421 = vmatprep.subr.mxu0 0.0
    %422 = vmatpush1.msra.mxu0 0.0
    %423 = vmatprep.subr.mxu0 0.0
    %424 = vmatpush1.msra.mxu0 0.0
    %425 = vmatprep.subr.mxu0 0.0
    %426 = vmatpush1.msra.mxu0 0.0
    %427 = vmatprep.mubr.f32.mxu0 0.0
    %v428 = vand.u32 %v81, 4294901760
    %v429 = vsub.f32 %v81, %v428
    %v430 = vand.u32 %v429, 4294901760
    %431 = vmatmul.mubr.f32.gmra.mrb[0].mxu0 %v430
    %v432 = vpop.f32.mrb[0].mxu0
    %v433 = vadd.f32 %v349, %v432
    %v434 = vpop.f32.mrb[0].mxu0
    %435 = vmatprep.mubr.f32.mxu0 0.0
    %v436 = vand.u32 %v84, 4294901760
    %v437 = vsub.f32 %v84, %v436
    %v438 = vand.u32 %v437, 4294901760
    %439 = vmatmul.mubr.f32.gmra.mrb[0].mxu0 %v438
    %v440 = vpop.f32.mrb[0].mxu0
    %v441 = vadd.f32 %v356, %v440
    %v442 = vpop.f32.mrb[0].mxu0
    %443 = vdwg.mxu0
    %444 = vmatprep.subr.mxu0 0.0
    %v445 = vand.u32 %v45, 4294901760
    %v446 = vsub.f32 %v45, %v445
    %v447 = vand.u32 %v446, 4294901760
    %448 = vmatpush1.msra.mxu0 %v447
    %449 = vmatprep.subr.mxu0 0.0
    %v450 = vand.u32 %v46, 4294901760
    %v451 = vsub.f32 %v46, %v450
    %v452 = vand.u32 %v451, 4294901760
    %453 = vmatpush1.msra.mxu0 %v452
    %454 = vmatprep.subr.mxu0 0.0
    %v455 = vand.u32 %v47, 4294901760
    %v456 = vsub.f32 %v47, %v455
    %v457 = vand.u32 %v456, 4294901760
    %458 = vmatpush1.msra.mxu0 %v457
    %459 = vmatprep.subr.mxu0 0.0
    %v460 = vand.u32 %v48, 4294901760
    %v461 = vsub.f32 %v48, %v460
    %v462 = vand.u32 %v461, 4294901760
    %463 = vmatpush1.msra.mxu0 %v462
    %464 = vmatprep.subr.mxu0 0.0
    %465 = vmatpush1.msra.mxu0 0.0
    %466 = vmatprep.subr.mxu0 0.0
    %467 = vmatpush1.msra.mxu0 0.0
    %468 = vmatprep.subr.mxu0 0.0
    %469 = vmatpush1.msra.mxu0 0.0
    %470 = vmatprep.subr.mxu0 0.0
    %471 = vmatpush1.msra.mxu0 0.0
    %472 = vmatprep.subr.mxu0 0.0
    %473 = vmatpush1.msra.mxu0 0.0
    %474 = vmatprep.subr.mxu0 0.0
    %475 = vmatpush1.msra.mxu0 0.0
    %476 = vmatprep.subr.mxu0 0.0
    %477 = vmatpush1.msra.mxu0 0.0
    %478 = vmatprep.subr.mxu0 0.0
    %479 = vmatpush1.msra.mxu0 0.0
    %480 = vmatprep.subr.mxu0 0.0
    %481 = vmatpush1.msra.mxu0 0.0
    %482 = vmatprep.subr.mxu0 0.0
    %483 = vmatpush1.msra.mxu0 0.0
    %484 = vmatprep.subr.mxu0 0.0
    %485 = vmatpush1.msra.mxu0 0.0
    %486 = vmatprep.subr.mxu0 0.0
    %487 = vmatpush1.msra.mxu0 0.0
    %488 = vmatprep.subr.mxu0 0.0
    %489 = vmatpush1.msra.mxu0 0.0
    %490 = vmatprep.subr.mxu0 0.0
    %491 = vmatpush1.msra.mxu0 0.0
    %492 = vmatprep.subr.mxu0 0.0
    %493 = vmatpush1.msra.mxu0 0.0
    %494 = vmatprep.subr.mxu0 0.0
    %495 = vmatpush1.msra.mxu0 0.0
    %496 = vmatprep.subr.mxu0 0.0
    %497 = vmatpush1.msra.mxu0 0.0
    %498 = vmatprep.subr.mxu0 0.0
    %499 = vmatpush1.msra.mxu0 0.0
    %500 = vmatprep.subr.mxu0 0.0
    %501 = vmatpush1.msra.mxu0 0.0
    %502 = vmatprep.subr.mxu0 0.0
    %503 = vmatpush1.msra.mxu0 0.0
    %504 = vmatprep.subr.mxu0 0.0
    %505 = vmatpush1.msra.mxu0 0.0
    %506 = vmatprep.subr.mxu0 0.0
    %507 = vmatpush1.msra.mxu0 0.0
    %508 = vmatprep.subr.mxu0 0.0
    %509 = vmatpush1.msra.mxu0 0.0
    %510 = vmatprep.subr.mxu0 0.0
    %511 = vmatpush1.msra.mxu0 0.0
    %512 = vmatprep.subr.mxu0 0.0
    %513 = vmatpush1.msra.mxu0 0.0
    %514 = vmatprep.subr.mxu0 0.0
    %515 = vmatpush1.msra.mxu0 0.0
    %516 = vmatprep.subr.mxu0 0.0
    %517 = vmatpush1.msra.mxu0 0.0
    %518 = vmatprep.subr.mxu0 0.0
    %519 = vmatpush1.msra.mxu0 0.0
    %520 = vmatprep.mubr.f32.mxu0 0.0
    %v521 = vand.u32 %v81, 4294901760
    %522 = vmatmul.mubr.f32.gmra.mrb[0].mxu0 %v521
    %v523 = vpop.f32.mrb[0].mxu0
    %v524 = vadd.f32 %v433, %v523
    %v525 = vpop.f32.mrb[0].mxu0
    %526 = vmatprep.mubr.f32.mxu0 0.0
    %v527 = vand.u32 %v84, 4294901760
    %528 = vmatmul.mubr.f32.gmra.mrb[0].mxu0 %v527
    %v529 = vpop.f32.mrb[0].mxu0
    %v530 = vadd.f32 %v441, %v529
    %v531 = vpop.f32.mrb[0].mxu0
    %532 = vdwg.mxu0
    %533 = vmatprep.subr.mxu0 0.0
    %v534 = vand.u32 %v45, 4294901760
    %535 = vmatpush1.msra.mxu0 %v534
    %536 = vmatprep.subr.mxu0 0.0
    %v537 = vand.u32 %v46, 4294901760
    %538 = vmatpush1.msra.mxu0 %v537
    %539 = vmatprep.subr.mxu0 0.0
    %v540 = vand.u32 %v47, 4294901760
    %541 = vmatpush1.msra.mxu0 %v540
    %542 = vmatprep.subr.mxu0 0.0
    %v543 = vand.u32 %v48, 4294901760
    %544 = vmatpush1.msra.mxu0 %v543
    %545 = vmatprep.subr.mxu0 0.0
    %546 = vmatpush1.msra.mxu0 0.0
    %547 = vmatprep.subr.mxu0 0.0
    %548 = vmatpush1.msra.mxu0 0.0
    %549 = vmatprep.subr.mxu0 0.0
    %550 = vmatpush1.msra.mxu0 0.0
    %551 = vmatprep.subr.mxu0 0.0
    %552 = vmatpush1.msra.mxu0 0.0
    %553 = vmatprep.subr.mxu0 0.0
    %554 = vmatpush1.msra.mxu0 0.0
    %555 = vmatprep.subr.mxu0 0.0
    %556 = vmatpush1.msra.mxu0 0.0
    %557 = vmatprep.subr.mxu0 0.0
    %558 = vmatpush1.msra.mxu0 0.0
    %559 = vmatprep.subr.mxu0 0.0
    %560 = vmatpush1.msra.mxu0 0.0
    %561 = vmatprep.subr.mxu0 0.0
    %562 = vmatpush1.msra.mxu0 0.0
    %563 = vmatprep.subr.mxu0 0.0
    %564 = vmatpush1.msra.mxu0 0.0
    %565 = vmatprep.subr.mxu0 0.0
    %566 = vmatpush1.msra.mxu0 0.0
    %567 = vmatprep.subr.mxu0 0.0
    %568 = vmatpush1.msra.mxu0 0.0
    %569 = vmatprep.subr.mxu0 0.0
    %570 = vmatpush1.msra.mxu0 0.0
    %571 = vmatprep.subr.mxu0 0.0
    %572 = vmatpush1.msra.mxu0 0.0
    %573 = vmatprep.subr.mxu0 0.0
    %574 = vmatpush1.msra.mxu0 0.0
    %575 = vmatprep.subr.mxu0 0.0
    %576 = vmatpush1.msra.mxu0 0.0
    %577 = vmatprep.subr.mxu0 0.0
    %578 = vmatpush1.msra.mxu0 0.0
    %579 = vmatprep.subr.mxu0 0.0
    %580 = vmatpush1.msra.mxu0 0.0
    %581 = vmatprep.subr.mxu0 0.0
    %582 = vmatpush1.msra.mxu0 0.0
    %583 = vmatprep.subr.mxu0 0.0
    %584 = vmatpush1.msra.mxu0 0.0
    %585 = vmatprep.subr.mxu0 0.0
    %586 = vmatpush1.msra.mxu0 0.0
    %587 = vmatprep.subr.mxu0 0.0
    %588 = vmatpush1.msra.mxu0 0.0
    %589 = vmatprep.subr.mxu0 0.0
    %590 = vmatpush1.msra.mxu0 0.0
    %591 = vmatprep.subr.mxu0 0.0
    %592 = vmatpush1.msra.mxu0 0.0
    %593 = vmatprep.subr.mxu0 0.0
    %594 = vmatpush1.msra.mxu0 0.0
    %595 = vmatprep.subr.mxu0 0.0
    %596 = vmatpush1.msra.mxu0 0.0
    %597 = vmatprep.subr.mxu0 0.0
    %598 = vmatpush1.msra.mxu0 0.0
    %599 = vmatprep.subr.mxu0 0.0
    %600 = vmatpush1.msra.mxu0 0.0
    %601 = vmatprep.mubr.f32.mxu0 0.0
    %v602 = vand.u32 %v81, 4294901760
    %603 = vmatmul.mubr.f32.gmra.mrb[0].mxu0 %v602
    %v604 = vpop.f32.mrb[0].mxu0
    %v605 = vadd.f32 %v524, %v604
    %v606 = vpop.f32.mrb[0].mxu0
    %607 = vmatprep.mubr.f32.mxu0 0.0
    %v608 = vand.u32 %v84, 4294901760
    %609 = vmatmul.mubr.f32.gmra.mrb[0].mxu0 %v608
    %v610 = vpop.f32.mrb[0].mxu0
    %v611 = vadd.f32 %v530, %v610
    %v612 = vpop.f32.mrb[0].mxu0
    %613 = vdwg.mxu0
    %v614 = vmax.f32 %v605, 0.0
    %v615 = vmax.f32 %v611, 0.0
    %v616 = vlaneseq
    %v617 = vshrl.u32 %v616, 7
    %v618 = vsub.s32 0, %v617
    %v619 = vrot.slane %v72, %v618
    %620 = vmatprep.subr.mxu0 0.0
    %v621 = vand.u32 %v49, 4294901760
    %622 = vmatpush1.msra.mxu0 %v621
    %623 = vmatprep.subr.mxu0 0.0
    %v624 = vand.u32 %v50, 4294901760
    %625 = vmatpush1.msra.mxu0 %v624
    %626 = vmatprep.subr.mxu0 0.0
    %v627 = vand.u32 %v51, 4294901760
    %628 = vmatpush1.msra.mxu0 %v627
    %629 = vmatprep.subr.mxu0 0.0
    %v630 = vand.u32 %v52, 4294901760
    %631 = vmatpush1.msra.mxu0 %v630
    %632 = vmatprep.subr.mxu0 0.0
    %v633 = vand.u32 %v53, 4294901760
    %634 = vmatpush1.msra.mxu0 %v633
    %635 = vmatprep.subr.mxu0 0.0
    %v636 = vand.u32 %v54, 4294901760
    %637 = vmatpush1.msra.mxu0 %v636
    %638 = vmatprep.subr.mxu0 0.0
    %v639 = vand.u32 %v55, 4294901760
    %640 = vmatpush1.msra.mxu0 %v639
    %641 = vmatprep.subr.mxu0 0.0
    %v642 = vand.u32 %v56, 4294901760
    %643 = vmatpush1.msra.mxu0 %v642
    %644 = vmatprep.subr.mxu0 0.0
    %v645 = vand.u32 %v57, 4294901760
    %646 = vmatpush1.msra.mxu0 %v645
    %647 = vmatprep.subr.mxu0 0.0
    %v648 = vand.u32 %v58, 4294901760
    %649 = vmatpush1.msra.mxu0 %v648
    %650 = vmatprep.subr.mxu0 0.0
    %v651 = vand.u32 %v59, 4294901760
    %652 = vmatpush1.msra.mxu0 %v651
    %653 = vmatprep.subr.mxu0 0.0
    %v654 = vand.u32 %v60, 4294901760
    %655 = vmatpush1.msra.mxu0 %v654
    %656 = vmatprep.subr.mxu0 0.0
    %v657 = vand.u32 %v61, 4294901760
    %658 = vmatpush1.msra.mxu0 %v657
    %659 = vmatprep.subr.mxu0 0.0
    %v660 = vand.u32 %v62, 4294901760
    %661 = vmatpush1.msra.mxu0 %v660
    %662 = vmatprep.subr.mxu0 0.0
    %v663 = vand.u32 %v63, 4294901760
    %664 = vmatpush1.msra.mxu0 %v663
    %665 = vmatprep.subr.mxu0 0.0
    %v666 = vand.u32 %v64, 4294901760
    %667 = vmatpush1.msra.mxu0 %v666
    %668 = vmatprep.subr.mxu0 0.0
    %669 = vmatpush1.msra.mxu0 0.0
    %670 = vmatprep.subr.mxu0 0.0
    %671 = vmatpush1.msra.mxu0 0.0
    %672 = vmatprep.subr.mxu0 0.0
    %673 = vmatpush1.msra.mxu0 0.0
    %674 = vmatprep.subr.mxu0 0.0
    %675 = vmatpush1.msra.mxu0 0.0
    %676 = vmatprep.subr.mxu0 0.0
    %677 = vmatpush1.msra.mxu0 0.0
    %678 = vmatprep.subr.mxu0 0.0
    %679 = vmatpush1.msra.mxu0 0.0
    %680 = vmatprep.subr.mxu0 0.0
    %681 = vmatpush1.msra.mxu0 0.0
    %682 = vmatprep.subr.mxu0 0.0
    %683 = vmatpush1.msra.mxu0 0.0
    %684 = vmatprep.subr.mxu0 0.0
    %685 = vmatpush1.msra.mxu0 0.0
    %686 = vmatprep.subr.mxu0 0.0
    %687 = vmatpush1.msra.mxu0 0.0
    %688 = vmatprep.subr.mxu0 0.0
    %689 = vmatpush1.msra.mxu0 0.0
    %690 = vmatprep.subr.mxu0 0.0
    %691 = vmatpush1.msra.mxu0 0.0
    %692 = vmatprep.subr.mxu0 0.0
    %693 = vmatpush1.msra.mxu0 0.0
    %694 = vmatprep.subr.mxu0 0.0
    %695 = vmatpush1.msra.mxu0 0.0
    %696 = vmatprep.subr.mxu0 0.0
    %697 = vmatpush1.msra.mxu0 0.0
    %698 = vmatprep.subr.mxu0 0.0
    %699 = vmatpush1.msra.mxu0 0.0
    %700 = vmatprep.mubr.f32.mxu0 0.0
    %v701 = vand.u32 %v614, 4294901760
    %v702 = vsub.f32 %v614, %v701
    %v703 = vand.u32 %v702, 4294901760
    %v704 = vsub.f32 %v702, %v703
    %v705 = vand.u32 %v704, 4294901760
    %706 = vmatmul.mubr.f32.gmra.mrb[0].mxu0 %v705
    %v707 = vpop.f32.mrb[0].mxu0
    %v708 = vadd.f32 %v619, %v707
    %v709 = vpop.f32.mrb[0].mxu0
    %710 = vmatprep.mubr.f32.mxu0 0.0
    %v711 = vand.u32 %v615, 4294901760
    %v712 = vsub.f32 %v615, %v711
    %v713 = vand.u32 %v712, 4294901760
    %v714 = vsub.f32 %v712, %v713
    %v715 = vand.u32 %v714, 4294901760
    %716 = vmatmul.mubr.f32.gmra.mrb[0].mxu0 %v715
    %v717 = vpop.f32.mrb[0].mxu0
    %v718 = vadd.f32 %v619, %v717
    %v719 = vpop.f32.mrb[0].mxu0
    %720 = vdwg.mxu0
    %721 = vmatprep.subr.mxu0 0.0
    %v722 = vand.u32 %v49, 4294901760
    %v723 = vsub.f32 %v49, %v722
    %v724 = vand.u32 %v723, 4294901760
    %v725 = vsub.f32 %v723, %v724
    %v726 = vand.u32 %v725, 4294901760
    %727 = vmatpush1.msra.mxu0 %v726
    %728 = vmatprep.subr.mxu0 0.0
    %v729 = vand.u32 %v50, 4294901760
    %v730 = vsub.f32 %v50, %v729
    %v731 = vand.u32 %v730, 4294901760
    %v732 = vsub.f32 %v730, %v731
    %v733 = vand.u32 %v732, 4294901760
    %734 = vmatpush1.msra.mxu0 %v733
    %735 = vmatprep.subr.mxu0 0.0
    %v736 = vand.u32 %v51, 4294901760
    %v737 = vsub.f32 %v51, %v736
    %v738 = vand.u32 %v737, 4294901760
    %v739 = vsub.f32 %v737, %v738
    %v740 = vand.u32 %v739, 4294901760
    %741 = vmatpush1.msra.mxu0 %v740
    %742 = vmatprep.subr.mxu0 0.0
    %v743 = vand.u32 %v52, 4294901760
    %v744 = vsub.f32 %v52, %v743
    %v745 = vand.u32 %v744, 4294901760
    %v746 = vsub.f32 %v744, %v745
    %v747 = vand.u32 %v746, 4294901760
    %748 = vmatpush1.msra.mxu0 %v747
    %749 = vmatprep.subr.mxu0 0.0
    %v750 = vand.u32 %v53, 4294901760
    %v751 = vsub.f32 %v53, %v750
    %v752 = vand.u32 %v751, 4294901760
    %v753 = vsub.f32 %v751, %v752
    %v754 = vand.u32 %v753, 4294901760
    %755 = vmatpush1.msra.mxu0 %v754
    %756 = vmatprep.subr.mxu0 0.0
    %v757 = vand.u32 %v54, 4294901760
    %v758 = vsub.f32 %v54, %v757
    %v759 = vand.u32 %v758, 4294901760
    %v760 = vsub.f32 %v758, %v759
    %v761 = vand.u32 %v760, 4294901760
    %762 = vmatpush1.msra.mxu0 %v761
    %763 = vmatprep.subr.mxu0 0.0
    %v764 = vand.u32 %v55, 4294901760
    %v765 = vsub.f32 %v55, %v764
    %v766 = vand.u32 %v765, 4294901760
    %v767 = vsub.f32 %v765, %v766
    %v768 = vand.u32 %v767, 4294901760
    %769 = vmatpush1.msra.mxu0 %v768
    %770 = vmatprep.subr.mxu0 0.0
    %v771 = vand.u32 %v56, 4294901760
    %v772 = vsub.f32 %v56, %v771
    %v773 = vand.u32 %v772, 4294901760
    %v774 = vsub.f32 %v772, %v773
    %v775 = vand.u32 %v774, 4294901760
    %776 = vmatpush1.msra.mxu0 %v775
    %777 = vmatprep.subr.mxu0 0.0
    %v778 = vand.u32 %v57, 4294901760
    %v779 = vsub.f32 %v57, %v778
    %v780 = vand.u32 %v779, 4294901760
    %v781 = vsub.f32 %v779, %v780
    %v782 = vand.u32 %v781, 4294901760
    %783 = vmatpush1.msra.mxu0 %v782
    %784 = vmatprep.subr.mxu0 0.0
    %v785 = vand.u32 %v58, 4294901760
    %v786 = vsub.f32 %v58, %v785
    %v787 = vand.u32 %v786, 4294901760
    %v788 = vsub.f32 %v786, %v787
    %v789 = vand.u32 %v788, 4294901760
    %790 = vmatpush1.msra.mxu0 %v789
    %791 = vmatprep.subr.mxu0 0.0
    %v792 = vand.u32 %v59, 4294901760
    %v793 = vsub.f32 %v59, %v792
    %v794 = vand.u32 %v793, 4294901760
    %v795 = vsub.f32 %v793, %v794
    %v796 = vand.u32 %v795, 4294901760
    %797 = vmatpush1.msra.mxu0 %v796
    %798 = vmatprep.subr.mxu0 0.0
    %v799 = vand.u32 %v60, 4294901760
    %v800 = vsub.f32 %v60, %v799
    %v801 = vand.u32 %v800, 4294901760
    %v802 = vsub.f32 %v800, %v801
    %v803 = vand.u32 %v802, 4294901760
    %804 = vmatpush1.msra.mxu0 %v803
    %805 = vmatprep.subr.mxu0 0.0
    %v806 = vand.u32 %v61, 4294901760
    %v807 = vsub.f32 %v61, %v806
    %v808 = vand.u32 %v807, 4294901760
    %v809 = vsub.f32 %v807, %v808
    %v810 = vand.u32 %v809, 4294901760
    %811 = vmatpush1.msra.mxu0 %v810
    %812 = vmatprep.subr.mxu0 0.0
    %v813 = vand.u32 %v62, 4294901760
    %v814 = vsub.f32 %v62, %v813
    %v815 = vand.u32 %v814, 4294901760
    %v816 = vsub.f32 %v814, %v815
    %v817 = vand.u32 %v816, 4294901760
    %818 = vmatpush1.msra.mxu0 %v817
    %819 = vmatprep.subr.mxu0 0.0
    %v820 = vand.u32 %v63, 4294901760
    %v821 = vsub.f32 %v63, %v820
    %v822 = vand.u32 %v821, 4294901760
    %v823 = vsub.f32 %v821, %v822
    %v824 = vand.u32 %v823, 4294901760
    %825 = vmatpush1.msra.mxu0 %v824
    %826 = vmatprep.subr.mxu0 0.0
    %v827 = vand.u32 %v64, 4294901760
    %v828 = vsub.f32 %v64, %v827
    %v829 = vand.u32 %v828, 4294901760
    %v830 = vsub.f32 %v828, %v829
    %v831 = vand.u32 %v830, 4294901760
    %832 = vmatpush1.msra.mxu0 %v831
    %833 = vmatprep.subr.mxu0 0.0
    %834 = vmatpush1.msra.mxu0 0.0
    %835 = vmatprep.subr.mxu0 0.0
    %836 = vmatpush1.msra.mxu0 0.0
    %837 = vmatprep.subr.mxu0 0.0
    %838 = vmatpush1.msra.mxu0 0.0
    %839 = vmatprep.subr.mxu0 0.0
    %840 = vmatpush1.msra.mxu0 0.0
    %841 = vmatprep.subr.mxu0 0.0
    %842 = vmatpush1.msra.mxu0 0.0
    %843 = vmatprep.subr.mxu0 0.0
    %844 = vmatpush1.msra.mxu0 0.0
    %845 = vmatprep.subr.mxu0 0.0
    %846 = vmatpush1.msra.mxu0 0.0
    %847 = vmatprep.subr.mxu0 0.0
    %848 = vmatpush1.msra.mxu0 0.0
    %849 = vmatprep.subr.mxu0 0.0
    %850 = vmatpush1.msra.mxu0 0.0
    %851 = vmatprep.subr.mxu0 0.0
    %852 = vmatpush1.msra.mxu0 0.0
    %853 = vmatprep.subr.mxu0 0.0
    %854 = vmatpush1.msra.mxu0 0.0
    %855 = vmatprep.subr.mxu0 0.0
    %856 = vmatpush1.msra.mxu0 0.0
    %857 = vmatprep.subr.mxu0 0.0
    %858 = vmatpush1.msra.mxu0 0.0
    %859 = vmatprep.subr.mxu0 0.0
    %860 = vmatpush1.msra.mxu0 0.0
    %861 = vmatprep.subr.mxu0 0.0
    %862 = vmatpush1.msra.mxu0 0.0
    %863 = vmatprep.subr.mxu0 0.0
    %864 = vmatpush1.msra.mxu0 0.0
    %865 = vmatprep.mubr.f32.mxu0 0.0
    %v866 = vand.u32 %v614, 4294901760
    %867 = vmatmul.mubr.f32.gmra.mrb[0].mxu0 %v866
    %v868 = vpop.f32.mrb[0].mxu0
    %v869 = vadd.f32 %v708, %v868
    %v870 = vpop.f32.mrb[0].mxu0
    %871 = vmatprep.mubr.f32.mxu0 0.0
    %v872 = vand.u32 %v615, 4294901760
    %873 = vmatmul.mubr.f32.gmra.mrb[0].mxu0 %v872
    %v874 = vpop.f32.mrb[0].mxu0
    %v875 = vadd.f32 %v718, %v874
    %v876 = vpop.f32.mrb[0].mxu0
    %877 = vdwg.mxu0
    %878 = vmatprep.subr.mxu0 0.0
    %v879 = vand.u32 %v49, 4294901760
    %v880 = vsub.f32 %v49, %v879
    %881 = vmatpush1.msra.mxu0 %v880
    %882 = vmatprep.subr.mxu0 0.0
    %v883 = vand.u32 %v50, 4294901760
    %v884 = vsub.f32 %v50, %v883
    %885 = vmatpush1.msra.mxu0 %v884
    %886 = vmatprep.subr.mxu0 0.0
    %v887 = vand.u32 %v51, 4294901760
    %v888 = vsub.f32 %v51, %v887
    %889 = vmatpush1.msra.mxu0 %v888
    %890 = vmatprep.subr.mxu0 0.0
    %v891 = vand.u32 %v52, 4294901760
    %v892 = vsub.f32 %v52, %v891
    %893 = vmatpush1.msra.mxu0 %v892
    %894 = vmatprep.subr.mxu0 0.0
    %v895 = vand.u32 %v53, 4294901760
    %v896 = vsub.f32 %v53, %v895
    %897 = vmatpush1.msra.mxu0 %v896
    %898 = vmatprep.subr.mxu0 0.0
    %v899 = vand.u32 %v54, 4294901760
    %v900 = vsub.f32 %v54, %v899
    %901 = vmatpush1.msra.mxu0 %v900
    %902 = vmatprep.subr.mxu0 0.0
    %v903 = vand.u32 %v55, 4294901760
    %v904 = vsub.f32 %v55, %v903
    %905 = vmatpush1.msra.mxu0 %v904
    %906 = vmatprep.subr.mxu0 0.0
    %v907 = vand.u32 %v56, 4294901760
    %v908 = vsub.f32 %v56, %v907
    %909 = vmatpush1.msra.mxu0 %v908
    %910 = vmatprep.subr.mxu0 0.0
    %v911 = vand.u32 %v57, 4294901760
    %v912 = vsub.f32 %v57, %v911
    %913 = vmatpush1.msra.mxu0 %v912
    %914 = vmatprep.subr.mxu0 0.0
    %v915 = vand.u32 %v58, 4294901760
    %v916 = vsub.f32 %v58, %v915
    %917 = vmatpush1.msra.mxu0 %v916
    %918 = vmatprep.subr.mxu0 0.0
    %v919 = vand.u32 %v59, 4294901760
    %v920 = vsub.f32 %v59, %v919
    %921 = vmatpush1.msra.mxu0 %v920
    %922 = vmatprep.subr.mxu0 0.0
    %v923 = vand.u32 %v60, 4294901760
    %v924 = vsub.f32 %v60, %v923
    %925 = vmatpush1.msra.mxu0 %v924
    %926 = vmatprep.subr.mxu0 0.0
    %v927 = vand.u32 %v61, 4294901760
    %v928 = vsub.f32 %v61, %v927
    %929 = vmatpush1.msra.mxu0 %v928
    %930 = vmatprep.subr.mxu0 0.0
    %v931 = vand.u32 %v62, 4294901760
    %v932 = vsub.f32 %v62, %v931
    %933 = vmatpush1.msra.mxu0 %v932
    %934 = vmatprep.subr.mxu0 0.0
    %v935 = vand.u32 %v63, 4294901760
    %v936 = vsub.f32 %v63, %v935
    %937 = vmatpush1.msra.mxu0 %v936
    %938 = vmatprep.subr.mxu0 0.0
    %v939 = vand.u32 %v64, 4294901760
    %v940 = vsub.f32 %v64, %v939
    %941 = vmatpush1.msra.mxu0 %v940
    %942 = vmatprep.subr.mxu0 0.0
    %943 = vmatpush1.msra.mxu0 0.0
    %944 = vmatprep.subr.mxu0 0.0
    %945 = vmatpush1.msra.mxu0 0.0
    %946 = vmatprep.subr.mxu0 0.0
    %947 = vmatpush1.msra.mxu0 0.0
    %948 = vmatprep.subr.mxu0 0.0
    %949 = vmatpush1.msra.mxu0 0.0
    %950 = vmatprep.subr.mxu0 0.0
    %951 = vmatpush1.msra.mxu0 0.0
    %952 = vmatprep.subr.mxu0 0.0
    %953 = vmatpush1.msra.mxu0 0.0
    %954 = vmatprep.subr.mxu0 0.0
    %955 = vmatpush1.msra.mxu0 0.0
    %956 = vmatprep.subr.mxu0 0.0
    %957 = vmatpush1.msra.mxu0 0.0
    %958 = vmatprep.subr.mxu0 0.0
    %959 = vmatpush1.msra.mxu0 0.0
    %960 = vmatprep.subr.mxu0 0.0
    %961 = vmatpush1.msra.mxu0 0.0
    %962 = vmatprep.subr.mxu0 0.0
    %963 = vmatpush1.msra.mxu0 0.0
    %964 = vmatprep.subr.mxu0 0.0
    %965 = vmatpush1.msra.mxu0 0.0
    %966 = vmatprep.subr.mxu0 0.0
    %967 = vmatpush1.msra.mxu0 0.0
    %968 = vmatprep.subr.mxu0 0.0
    %969 = vmatpush1.msra.mxu0 0.0
    %970 = vmatprep.subr.mxu0 0.0
    %971 = vmatpush1.msra.mxu0 0.0
    %972 = vmatprep.subr.mxu0 0.0
    %973 = vmatpush1.msra.mxu0 0.0
    %974 = vmatprep.mubr.f32.mxu0 0.0
    %v975 = vand.u32 %v614, 4294901760
    %v976 = vsub.f32 %v614, %v975
    %977 = vmatmul.mubr.f32.gmra.mrb[0].mxu0 %v976
    %v978 = vpop.f32.mrb[0].mxu0
    %v979 = vadd.f32 %v869, %v978
    %v980 = vpop.f32.mrb[0].mxu0
    %981 = vmatprep.mubr.f32.mxu0 0.0
    %v982 = vand.u32 %v615, 4294901760
    %v983 = vsub.f32 %v615, %v982
    %984 = vmatmul.mubr.f32.gmra.mrb[0].mxu0 %v983
    %v985 = vpop.f32.mrb[0].mxu0
    %v986 = vadd.f32 %v875, %v985
    %v987 = vpop.f32.mrb[0].mxu0
    %988 = vdwg.mxu0
    %989 = vmatprep.subr.mxu0 0.0
    %v990 = vand.u32 %v49, 4294901760
    %991 = vmatpush1.msra.mxu0 %v990
    %992 = vmatprep.subr.mxu0 0.0
    %v993 = vand.u32 %v50, 4294901760
    %994 = vmatpush1.msra.mxu0 %v993
    %995 = vmatprep.subr.mxu0 0.0
    %v996 = vand.u32 %v51, 4294901760
    %997 = vmatpush1.msra.mxu0 %v996
    %998 = vmatprep.subr.mxu0 0.0
    %v999 = vand.u32 %v52, 4294901760
    %1000 = vmatpush1.msra.mxu0 %v999
    %1001 = vmatprep.subr.mxu0 0.0
    %v1002 = vand.u32 %v53, 4294901760
    %1003 = vmatpush1.msra.mxu0 %v1002
    %1004 = vmatprep.subr.mxu0 0.0
    %v1005 = vand.u32 %v54, 4294901760
    %1006 = vmatpush1.msra.mxu0 %v1005
    %1007 = vmatprep.subr.mxu0 0.0
    %v1008 = vand.u32 %v55, 4294901760
    %1009 = vmatpush1.msra.mxu0 %v1008
    %1010 = vmatprep.subr.mxu0 0.0
    %v1011 = vand.u32 %v56, 4294901760
    %1012 = vmatpush1.msra.mxu0 %v1011
    %1013 = vmatprep.subr.mxu0 0.0
    %v1014 = vand.u32 %v57, 4294901760
    %1015 = vmatpush1.msra.mxu0 %v1014
    %1016 = vmatprep.subr.mxu0 0.0
    %v1017 = vand.u32 %v58, 4294901760
    %1018 = vmatpush1.msra.mxu0 %v1017
    %1019 = vmatprep.subr.mxu0 0.0
    %v1020 = vand.u32 %v59, 4294901760
    %1021 = vmatpush1.msra.mxu0 %v1020
    %1022 = vmatprep.subr.mxu0 0.0
    %v1023 = vand.u32 %v60, 4294901760
    %1024 = vmatpush1.msra.mxu0 %v1023
    %1025 = vmatprep.subr.mxu0 0.0
    %v1026 = vand.u32 %v61, 4294901760
    %1027 = vmatpush1.msra.mxu0 %v1026
    %1028 = vmatprep.subr.mxu0 0.0
    %v1029 = vand.u32 %v62, 4294901760
    %1030 = vmatpush1.msra.mxu0 %v1029
    %1031 = vmatprep.subr.mxu0 0.0
    %v1032 = vand.u32 %v63, 4294901760
    %1033 = vmatpush1.msra.mxu0 %v1032
    %1034 = vmatprep.subr.mxu0 0.0
    %v1035 = vand.u32 %v64, 4294901760
    %1036 = vmatpush1.msra.mxu0 %v1035
    %1037 = vmatprep.subr.mxu0 0.0
    %1038 = vmatpush1.msra.mxu0 0.0
    %1039 = vmatprep.subr.mxu0 0.0
    %1040 = vmatpush1.msra.mxu0 0.0
    %1041 = vmatprep.subr.mxu0 0.0
    %1042 = vmatpush1.msra.mxu0 0.0
    %1043 = vmatprep.subr.mxu0 0.0
    %1044 = vmatpush1.msra.mxu0 0.0
    %1045 = vmatprep.subr.mxu0 0.0
    %1046 = vmatpush1.msra.mxu0 0.0
    %1047 = vmatprep.subr.mxu0 0.0
    %1048 = vmatpush1.msra.mxu0 0.0
    %1049 = vmatprep.subr.mxu0 0.0
    %1050 = vmatpush1.msra.mxu0 0.0
    %1051 = vmatprep.subr.mxu0 0.0
    %1052 = vmatpush1.msra.mxu0 0.0
    %1053 = vmatprep.subr.mxu0 0.0
    %1054 = vmatpush1.msra.mxu0 0.0
    %1055 = vmatprep.subr.mxu0 0.0
    %1056 = vmatpush1.msra.mxu0 0.0
    %1057 = vmatprep.subr.mxu0 0.0
    %1058 = vmatpush1.msra.mxu0 0.0
    %1059 = vmatprep.subr.mxu0 0.0
    %1060 = vmatpush1.msra.mxu0 0.0
    %1061 = vmatprep.subr.mxu0 0.0
    %1062 = vmatpush1.msra.mxu0 0.0
    %1063 = vmatprep.subr.mxu0 0.0
    %1064 = vmatpush1.msra.mxu0 0.0
    %1065 = vmatprep.subr.mxu0 0.0
    %1066 = vmatpush1.msra.mxu0 0.0
    %1067 = vmatprep.subr.mxu0 0.0
    %1068 = vmatpush1.msra.mxu0 0.0
    %1069 = vmatprep.mubr.f32.mxu0 0.0
    %v1070 = vand.u32 %v614, 4294901760
    %v1071 = vsub.f32 %v614, %v1070
    %v1072 = vand.u32 %v1071, 4294901760
    %1073 = vmatmul.mubr.f32.gmra.mrb[0].mxu0 %v1072
    %v1074 = vpop.f32.mrb[0].mxu0
    %v1075 = vadd.f32 %v979, %v1074
    %v1076 = vpop.f32.mrb[0].mxu0
    %1077 = vmatprep.mubr.f32.mxu0 0.0
    %v1078 = vand.u32 %v615, 4294901760
    %v1079 = vsub.f32 %v615, %v1078
    %v1080 = vand.u32 %v1079, 4294901760
    %1081 = vmatmul.mubr.f32.gmra.mrb[0].mxu0 %v1080
    %v1082 = vpop.f32.mrb[0].mxu0
    %v1083 = vadd.f32 %v986, %v1082
    %v1084 = vpop.f32.mrb[0].mxu0
    %1085 = vdwg.mxu0
    %1086 = vmatprep.subr.mxu0 0.0
    %v1087 = vand.u32 %v49, 4294901760
    %v1088 = vsub.f32 %v49, %v1087
    %v1089 = vand.u32 %v1088, 4294901760
    %1090 = vmatpush1.msra.mxu0 %v1089
    %1091 = vmatprep.subr.mxu0 0.0
    %v1092 = vand.u32 %v50, 4294901760
    %v1093 = vsub.f32 %v50, %v1092
    %v1094 = vand.u32 %v1093, 4294901760
    %1095 = vmatpush1.msra.mxu0 %v1094
    %1096 = vmatprep.subr.mxu0 0.0
    %v1097 = vand.u32 %v51, 4294901760
    %v1098 = vsub.f32 %v51, %v1097
    %v1099 = vand.u32 %v1098, 4294901760
    %1100 = vmatpush1.msra.mxu0 %v1099
    %1101 = vmatprep.subr.mxu0 0.0
    %v1102 = vand.u32 %v52, 4294901760
    %v1103 = vsub.f32 %v52, %v1102
    %v1104 = vand.u32 %v1103, 4294901760
    %1105 = vmatpush1.msra.mxu0 %v1104
    %1106 = vmatprep.subr.mxu0 0.0
    %v1107 = vand.u32 %v53, 4294901760
    %v1108 = vsub.f32 %v53, %v1107
    %v1109 = vand.u32 %v1108, 4294901760
    %1110 = vmatpush1.msra.mxu0 %v1109
    %1111 = vmatprep.subr.mxu0 0.0
    %v1112 = vand.u32 %v54, 4294901760
    %v1113 = vsub.f32 %v54, %v1112
    %v1114 = vand.u32 %v1113, 4294901760
    %1115 = vmatpush1.msra.mxu0 %v1114
    %1116 = vmatprep.subr.mxu0 0.0
    %v1117 = vand.u32 %v55, 4294901760
    %v1118 = vsub.f32 %v55, %v1117
    %v1119 = vand.u32 %v1118, 4294901760
    %1120 = vmatpush1.msra.mxu0 %v1119
    %1121 = vmatprep.subr.mxu0 0.0
    %v1122 = vand.u32 %v56, 4294901760
    %v1123 = vsub.f32 %v56, %v1122
    %v1124 = vand.u32 %v1123, 4294901760
    %1125 = vmatpush1.msra.mxu0 %v1124
    %1126 = vmatprep.subr.mxu0 0.0
    %v1127 = vand.u32 %v57, 4294901760
    %v1128 = vsub.f32 %v57, %v1127
    %v1129 = vand.u32 %v1128, 4294901760
    %1130 = vmatpush1.msra.mxu0 %v1129
    %1131 = vmatprep.subr.mxu0 0.0
    %v1132 = vand.u32 %v58, 4294901760
    %v1133 = vsub.f32 %v58, %v1132
    %v1134 = vand.u32 %v1133, 4294901760
    %1135 = vmatpush1.msra.mxu0 %v1134
    %1136 = vmatprep.subr.mxu0 0.0
    %v1137 = vand.u32 %v59, 4294901760
    %v1138 = vsub.f32 %v59, %v1137
    %v1139 = vand.u32 %v1138, 4294901760
    %1140 = vmatpush1.msra.mxu0 %v1139
    %1141 = vmatprep.subr.mxu0 0.0
    %v1142 = vand.u32 %v60, 4294901760
    %v1143 = vsub.f32 %v60, %v1142
    %v1144 = vand.u32 %v1143, 4294901760
    %1145 = vmatpush1.msra.mxu0 %v1144
    %1146 = vmatprep.subr.mxu0 0.0
    %v1147 = vand.u32 %v61, 4294901760
    %v1148 = vsub.f32 %v61, %v1147
    %v1149 = vand.u32 %v1148, 4294901760
    %1150 = vmatpush1.msra.mxu0 %v1149
    %1151 = vmatprep.subr.mxu0 0.0
    %v1152 = vand.u32 %v62, 4294901760
    %v1153 = vsub.f32 %v62, %v1152
    %v1154 = vand.u32 %v1153, 4294901760
    %1155 = vmatpush1.msra.mxu0 %v1154
    %1156 = vmatprep.subr.mxu0 0.0
    %v1157 = vand.u32 %v63, 4294901760
    %v1158 = vsub.f32 %v63, %v1157
    %v1159 = vand.u32 %v1158, 4294901760
    %1160 = vmatpush1.msra.mxu0 %v1159
    %1161 = vmatprep.subr.mxu0 0.0
    %v1162 = vand.u32 %v64, 4294901760
    %v1163 = vsub.f32 %v64, %v1162
    %v1164 = vand.u32 %v1163, 4294901760
    %1165 = vmatpush1.msra.mxu0 %v1164
    %1166 = vmatprep.subr.mxu0 0.0
    %1167 = vmatpush1.msra.mxu0 0.0
    %1168 = vmatprep.subr.mxu0 0.0
    %1169 = vmatpush1.msra.mxu0 0.0
    %1170 = vmatprep.subr.mxu0 0.0
    %1171 = vmatpush1.msra.mxu0 0.0
    %1172 = vmatprep.subr.mxu0 0.0
    %1173 = vmatpush1.msra.mxu0 0.0
    %1174 = vmatprep.subr.mxu0 0.0
    %1175 = vmatpush1.msra.mxu0 0.0
    %1176 = vmatprep.subr.mxu0 0.0
    %1177 = vmatpush1.msra.mxu0 0.0
    %1178 = vmatprep.subr.mxu0 0.0
    %1179 = vmatpush1.msra.mxu0 0.0
    %1180 = vmatprep.subr.mxu0 0.0
    %1181 = vmatpush1.msra.mxu0 0.0
    %1182 = vmatprep.subr.mxu0 0.0
    %1183 = vmatpush1.msra.mxu0 0.0
    %1184 = vmatprep.subr.mxu0 0.0
    %1185 = vmatpush1.msra.mxu0 0.0
    %1186 = vmatprep.subr.mxu0 0.0
    %1187 = vmatpush1.msra.mxu0 0.0
    %1188 = vmatprep.subr.mxu0 0.0
    %1189 = vmatpush1.msra.mxu0 0.0
    %1190 = vmatprep.subr.mxu0 0.0
    %1191 = vmatpush1.msra.mxu0 0.0
    %1192 = vmatprep.subr.mxu0 0.0
    %1193 = vmatpush1.msra.mxu0 0.0
    %1194 = vmatprep.subr.mxu0 0.0
    %1195 = vmatpush1.msra.mxu0 0.0
    %1196 = vmatprep.subr.mxu0 0.0
    %1197 = vmatpush1.msra.mxu0 0.0
    %1198 = vmatprep.mubr.f32.mxu0 0.0
    %v1199 = vand.u32 %v614, 4294901760
    %1200 = vmatmul.mubr.f32.gmra.mrb[0].mxu0 %v1199
    %v1201 = vpop.f32.mrb[0].mxu0
    %v1202 = vadd.f32 %v1075, %v1201
    %v1203 = vpop.f32.mrb[0].mxu0
    %1204 = vmatprep.mubr.f32.mxu0 0.0
    %v1205 = vand.u32 %v615, 4294901760
    %1206 = vmatmul.mubr.f32.gmra.mrb[0].mxu0 %v1205
    %v1207 = vpop.f32.mrb[0].mxu0
    %v1208 = vadd.f32 %v1083, %v1207
    %v1209 = vpop.f32.mrb[0].mxu0
    %1210 = vdwg.mxu0
    %1211 = vmatprep.subr.mxu0 0.0
    %v1212 = vand.u32 %v49, 4294901760
    %1213 = vmatpush1.msra.mxu0 %v1212
    %1214 = vmatprep.subr.mxu0 0.0
    %v1215 = vand.u32 %v50, 4294901760
    %1216 = vmatpush1.msra.mxu0 %v1215
    %1217 = vmatprep.subr.mxu0 0.0
    %v1218 = vand.u32 %v51, 4294901760
    %1219 = vmatpush1.msra.mxu0 %v1218
    %1220 = vmatprep.subr.mxu0 0.0
    %v1221 = vand.u32 %v52, 4294901760
    %1222 = vmatpush1.msra.mxu0 %v1221
    %1223 = vmatprep.subr.mxu0 0.0
    %v1224 = vand.u32 %v53, 4294901760
    %1225 = vmatpush1.msra.mxu0 %v1224
    %1226 = vmatprep.subr.mxu0 0.0
    %v1227 = vand.u32 %v54, 4294901760
    %1228 = vmatpush1.msra.mxu0 %v1227
    %1229 = vmatprep.subr.mxu0 0.0
    %v1230 = vand.u32 %v55, 4294901760
    %1231 = vmatpush1.msra.mxu0 %v1230
    %1232 = vmatprep.subr.mxu0 0.0
    %v1233 = vand.u32 %v56, 4294901760
    %1234 = vmatpush1.msra.mxu0 %v1233
    %1235 = vmatprep.subr.mxu0 0.0
    %v1236 = vand.u32 %v57, 4294901760
    %1237 = vmatpush1.msra.mxu0 %v1236
    %1238 = vmatprep.subr.mxu0 0.0
    %v1239 = vand.u32 %v58, 4294901760
    %1240 = vmatpush1.msra.mxu0 %v1239
    %1241 = vmatprep.subr.mxu0 0.0
    %v1242 = vand.u32 %v59, 4294901760
    %1243 = vmatpush1.msra.mxu0 %v1242
    %1244 = vmatprep.subr.mxu0 0.0
    %v1245 = vand.u32 %v60, 4294901760
    %1246 = vmatpush1.msra.mxu0 %v1245
    %1247 = vmatprep.subr.mxu0 0.0
    %v1248 = vand.u32 %v61, 4294901760
    %1249 = vmatpush1.msra.mxu0 %v1248
    %1250 = vmatprep.subr.mxu0 0.0
    %v1251 = vand.u32 %v62, 4294901760
    %1252 = vmatpush1.msra.mxu0 %v1251
    %1253 = vmatprep.subr.mxu0 0.0
    %v1254 = vand.u32 %v63, 4294901760
    %1255 = vmatpush1.msra.mxu0 %v1254
    %1256 = vmatprep.subr.mxu0 0.0
    %v1257 = vand.u32 %v64, 4294901760
    %1258 = vmatpush1.msra.mxu0 %v1257
    %1259 = vmatprep.subr.mxu0 0.0
    %1260 = vmatpush1.msra.mxu0 0.0
    %1261 = vmatprep.subr.mxu0 0.0
    %1262 = vmatpush1.msra.mxu0 0.0
    %1263 = vmatprep.subr.mxu0 0.0
    %1264 = vmatpush1.msra.mxu0 0.0
    %1265 = vmatprep.subr.mxu0 0.0
    %1266 = vmatpush1.msra.mxu0 0.0
    %1267 = vmatprep.subr.mxu0 0.0
    %1268 = vmatpush1.msra.mxu0 0.0
    %1269 = vmatprep.subr.mxu0 0.0
    %1270 = vmatpush1.msra.mxu0 0.0
    %1271 = vmatprep.subr.mxu0 0.0
    %1272 = vmatpush1.msra.mxu0 0.0
    %1273 = vmatprep.subr.mxu0 0.0
    %1274 = vmatpush1.msra.mxu0 0.0
    %1275 = vmatprep.subr.mxu0 0.0
    %1276 = vmatpush1.msra.mxu0 0.0
    %1277 = vmatprep.subr.mxu0 0.0
    %1278 = vmatpush1.msra.mxu0 0.0
    %1279 = vmatprep.subr.mxu0 0.0
    %1280 = vmatpush1.msra.mxu0 0.0
    %1281 = vmatprep.subr.mxu0 0.0
    %1282 = vmatpush1.msra.mxu0 0.0
    %1283 = vmatprep.subr.mxu0 0.0
    %1284 = vmatpush1.msra.mxu0 0.0
    %1285 = vmatprep.subr.mxu0 0.0
    %1286 = vmatpush1.msra.mxu0 0.0
    %1287 = vmatprep.subr.mxu0 0.0
    %1288 = vmatpush1.msra.mxu0 0.0
    %1289 = vmatprep.subr.mxu0 0.0
    %1290 = vmatpush1.msra.mxu0 0.0
    %1291 = vmatprep.mubr.f32.mxu0 0.0
    %v1292 = vand.u32 %v614, 4294901760
    %1293 = vmatmul.mubr.f32.gmra.mrb[0].mxu0 %v1292
    %v1294 = vpop.f32.mrb[0].mxu0
    %v1295 = vadd.f32 %v1202, %v1294
    %v1296 = vpop.f32.mrb[0].mxu0
    %1297 = vmatprep.mubr.f32.mxu0 0.0
    %v1298 = vand.u32 %v615, 4294901760
    %1299 = vmatmul.mubr.f32.gmra.mrb[0].mxu0 %v1298
    %v1300 = vpop.f32.mrb[0].mxu0
    %v1301 = vadd.f32 %v1208, %v1300
    %v1302 = vpop.f32.mrb[0].mxu0
    %1303 = vdwg.mxu0
    %v1304 = vmul.f32 %v1295, %v1295
    %vm1305 = vcmask 130048
    %v1306 = vsel %vm1305, %v1304, 0.0
    %1307 = vadd.xlane.f32.xlu0 %v1306
    %v1308 = vpop.xlane.xlu0 %1307
    %v1309 = vmax.f32 %v1308, 1e-24
    %v1310 = vrsqrt.pop %v1309
    %v1311 = vmul.f32 %v1295, %v1310
    %v1312 = vmul.f32 %v1301, %v1301
    %1314 = vrot.lane.b32.xlu0 %v1312, 96
    %v1315 = vpop.permute.xlu0 %1314
    %vm1317 = vcmask 125952
    %v1318 = vsel %vm1317, %v1315, 0.0
    %1319 = vadd.xlane.f32.xlu0 %v1318
    %v1320 = vpop.xlane.xlu0 %1319
    %v1321 = vmax.f32 %v1320, 1e-24
    %v1322 = vrsqrt.pop %v1321
    %v1323 = vmul.f32 %v1301, %v1322
    %1325 = vrot.lane.b32.xlu0 %v1323, 96
    %v1326 = vpop.permute.xlu0 %1325
    %v1328 = vsel %vm1305, %v1311, 0
    %v1330 = vsel %vm1305, %v1326, 0
    %1332 = vmatprep.subr.mxu0 0.0
    %v1333 = vand.u32 %v1330, 4294901760
    %1334 = vmatpush1.xpose.msra.mxu0 %v1333
    %1335 = vmatprep.subr.mxu0 0.0
    %1336 = vmatpush1.xpose.msra.mxu0 0.0
    %1337 = vmatprep.subr.mxu0 0.0
    %1338 = vmatpush1.xpose.msra.mxu0 0.0
    %1339 = vmatprep.subr.mxu0 0.0
    %1340 = vmatpush1.xpose.msra.mxu0 0.0
    %1341 = vmatprep.subr.mxu0 0.0
    %1342 = vmatpush1.xpose.msra.mxu0 0.0
    %1343 = vmatprep.subr.mxu0 0.0
    %1344 = vmatpush1.xpose.msra.mxu0 0.0
    %1345 = vmatprep.subr.mxu0 0.0
    %1346 = vmatpush1.xpose.msra.mxu0 0.0
    %1347 = vmatprep.subr.mxu0 0.0
    %1348 = vmatpush1.xpose.msra.mxu0 0.0
    %1349 = vmatprep.subr.mxu0 0.0
    %1350 = vmatpush1.xpose.msra.mxu0 0.0
    %1351 = vmatprep.subr.mxu0 0.0
    %1352 = vmatpush1.xpose.msra.mxu0 0.0
    %1353 = vmatprep.subr.mxu0 0.0
    %1354 = vmatpush1.xpose.msra.mxu0 0.0
    %1355 = vmatprep.subr.mxu0 0.0
    %1356 = vmatpush1.xpose.msra.mxu0 0.0
    %1357 = vmatprep.subr.mxu0 0.0
    %1358 = vmatpush1.xpose.msra.mxu0 0.0
    %1359 = vmatprep.subr.mxu0 0.0
    %1360 = vmatpush1.xpose.msra.mxu0 0.0
    %1361 = vmatprep.subr.mxu0 0.0
    %1362 = vmatpush1.xpose.msra.mxu0 0.0
    %1363 = vmatprep.subr.mxu0 0.0
    %1364 = vmatpush1.xpose.msra.mxu0 0.0
    %1365 = vmatprep.subr.mxu0 0.0
    %1366 = vmatpush1.xpose.msra.mxu0 0.0
    %1367 = vmatprep.subr.mxu0 0.0
    %1368 = vmatpush1.xpose.msra.mxu0 0.0
    %1369 = vmatprep.subr.mxu0 0.0
    %1370 = vmatpush1.xpose.msra.mxu0 0.0
    %1371 = vmatprep.subr.mxu0 0.0
    %1372 = vmatpush1.xpose.msra.mxu0 0.0
    %1373 = vmatprep.subr.mxu0 0.0
    %1374 = vmatpush1.xpose.msra.mxu0 0.0
    %1375 = vmatprep.subr.mxu0 0.0
    %1376 = vmatpush1.xpose.msra.mxu0 0.0
    %1377 = vmatprep.subr.mxu0 0.0
    %1378 = vmatpush1.xpose.msra.mxu0 0.0
    %1379 = vmatprep.subr.mxu0 0.0
    %1380 = vmatpush1.xpose.msra.mxu0 0.0
    %1381 = vmatprep.subr.mxu0 0.0
    %1382 = vmatpush1.xpose.msra.mxu0 0.0
    %1383 = vmatprep.subr.mxu0 0.0
    %1384 = vmatpush1.xpose.msra.mxu0 0.0
    %1385 = vmatprep.subr.mxu0 0.0
    %1386 = vmatpush1.xpose.msra.mxu0 0.0
    %1387 = vmatprep.subr.mxu0 0.0
    %1388 = vmatpush1.xpose.msra.mxu0 0.0
    %1389 = vmatprep.subr.mxu0 0.0
    %1390 = vmatpush1.xpose.msra.mxu0 0.0
    %1391 = vmatprep.subr.mxu0 0.0
    %1392 = vmatpush1.xpose.msra.mxu0 0.0
    %1393 = vmatprep.subr.mxu0 0.0
    %1394 = vmatpush1.xpose.msra.mxu0 0.0
    %1395 = vmatprep.subr.mxu0 0.0
    %1396 = vmatpush1.xpose.msra.mxu0 0.0
    %1397 = vmatprep.mubr.f32.mxu0 0.0
    %v1398 = vand.u32 %v1328, 4294901760
    %v1399 = vsub.f32 %v1328, %v1398
    %v1400 = vand.u32 %v1399, 4294901760
    %v1401 = vsub.f32 %v1399, %v1400
    %v1402 = vand.u32 %v1401, 4294901760
    %1403 = vmatmul.mubr.f32.gmra.mrb[0].mxu0 %v1402
    %v1404 = vpop.f32.mrb[0].mxu0
    %v1405 = vadd.f32 0.0, %v1404
    %v1406 = vpop.f32.mrb[0].mxu0
    %1407 = vdwg.mxu0
    %1408 = vmatprep.subr.mxu0 0.0
    %v1409 = vand.u32 %v1330, 4294901760
    %v1410 = vsub.f32 %v1330, %v1409
    %v1411 = vand.u32 %v1410, 4294901760
    %v1412 = vsub.f32 %v1410, %v1411
    %v1413 = vand.u32 %v1412, 4294901760
    %1414 = vmatpush1.xpose.msra.mxu0 %v1413
    %1415 = vmatprep.subr.mxu0 0.0
    %1416 = vmatpush1.xpose.msra.mxu0 0.0
    %1417 = vmatprep.subr.mxu0 0.0
    %1418 = vmatpush1.xpose.msra.mxu0 0.0
    %1419 = vmatprep.subr.mxu0 0.0
    %1420 = vmatpush1.xpose.msra.mxu0 0.0
    %1421 = vmatprep.subr.mxu0 0.0
    %1422 = vmatpush1.xpose.msra.mxu0 0.0
    %1423 = vmatprep.subr.mxu0 0.0
    %1424 = vmatpush1.xpose.msra.mxu0 0.0
    %1425 = vmatprep.subr.mxu0 0.0
    %1426 = vmatpush1.xpose.msra.mxu0 0.0
    %1427 = vmatprep.subr.mxu0 0.0
    %1428 = vmatpush1.xpose.msra.mxu0 0.0
    %1429 = vmatprep.subr.mxu0 0.0
    %1430 = vmatpush1.xpose.msra.mxu0 0.0
    %1431 = vmatprep.subr.mxu0 0.0
    %1432 = vmatpush1.xpose.msra.mxu0 0.0
    %1433 = vmatprep.subr.mxu0 0.0
    %1434 = vmatpush1.xpose.msra.mxu0 0.0
    %1435 = vmatprep.subr.mxu0 0.0
    %1436 = vmatpush1.xpose.msra.mxu0 0.0
    %1437 = vmatprep.subr.mxu0 0.0
    %1438 = vmatpush1.xpose.msra.mxu0 0.0
    %1439 = vmatprep.subr.mxu0 0.0
    %1440 = vmatpush1.xpose.msra.mxu0 0.0
    %1441 = vmatprep.subr.mxu0 0.0
    %1442 = vmatpush1.xpose.msra.mxu0 0.0
    %1443 = vmatprep.subr.mxu0 0.0
    %1444 = vmatpush1.xpose.msra.mxu0 0.0
    %1445 = vmatprep.subr.mxu0 0.0
    %1446 = vmatpush1.xpose.msra.mxu0 0.0
    %1447 = vmatprep.subr.mxu0 0.0
    %1448 = vmatpush1.xpose.msra.mxu0 0.0
    %1449 = vmatprep.subr.mxu0 0.0
    %1450 = vmatpush1.xpose.msra.mxu0 0.0
    %1451 = vmatprep.subr.mxu0 0.0
    %1452 = vmatpush1.xpose.msra.mxu0 0.0
    %1453 = vmatprep.subr.mxu0 0.0
    %1454 = vmatpush1.xpose.msra.mxu0 0.0
    %1455 = vmatprep.subr.mxu0 0.0
    %1456 = vmatpush1.xpose.msra.mxu0 0.0
    %1457 = vmatprep.subr.mxu0 0.0
    %1458 = vmatpush1.xpose.msra.mxu0 0.0
    %1459 = vmatprep.subr.mxu0 0.0
    %1460 = vmatpush1.xpose.msra.mxu0 0.0
    %1461 = vmatprep.subr.mxu0 0.0
    %1462 = vmatpush1.xpose.msra.mxu0 0.0
    %1463 = vmatprep.subr.mxu0 0.0
    %1464 = vmatpush1.xpose.msra.mxu0 0.0
    %1465 = vmatprep.subr.mxu0 0.0
    %1466 = vmatpush1.xpose.msra.mxu0 0.0
    %1467 = vmatprep.subr.mxu0 0.0
    %1468 = vmatpush1.xpose.msra.mxu0 0.0
    %1469 = vmatprep.subr.mxu0 0.0
    %1470 = vmatpush1.xpose.msra.mxu0 0.0
    %1471 = vmatprep.subr.mxu0 0.0
    %1472 = vmatpush1.xpose.msra.mxu0 0.0
    %1473 = vmatprep.subr.mxu0 0.0
    %1474 = vmatpush1.xpose.msra.mxu0 0.0
    %1475 = vmatprep.subr.mxu0 0.0
    %1476 = vmatpush1.xpose.msra.mxu0 0.0
    %1477 = vmatprep.mubr.f32.mxu0 0.0
    %v1478 = vand.u32 %v1328, 4294901760
    %1479 = vmatmul.mubr.f32.gmra.mrb[0].mxu0 %v1478
    %v1480 = vpop.f32.mrb[0].mxu0
    %v1481 = vadd.f32 %v1405, %v1480
    %v1482 = vpop.f32.mrb[0].mxu0
    %1483 = vdwg.mxu0
    %1484 = vmatprep.subr.mxu0 0.0
    %v1485 = vand.u32 %v1330, 4294901760
    %v1486 = vsub.f32 %v1330, %v1485
    %1487 = vmatpush1.xpose.msra.mxu0 %v1486
    %1488 = vmatprep.subr.mxu0 0.0
    %1489 = vmatpush1.xpose.msra.mxu0 0.0
    %1490 = vmatprep.subr.mxu0 0.0
    %1491 = vmatpush1.xpose.msra.mxu0 0.0
    %1492 = vmatprep.subr.mxu0 0.0
    %1493 = vmatpush1.xpose.msra.mxu0 0.0
    %1494 = vmatprep.subr.mxu0 0.0
    %1495 = vmatpush1.xpose.msra.mxu0 0.0
    %1496 = vmatprep.subr.mxu0 0.0
    %1497 = vmatpush1.xpose.msra.mxu0 0.0
    %1498 = vmatprep.subr.mxu0 0.0
    %1499 = vmatpush1.xpose.msra.mxu0 0.0
    %1500 = vmatprep.subr.mxu0 0.0
    %1501 = vmatpush1.xpose.msra.mxu0 0.0
    %1502 = vmatprep.subr.mxu0 0.0
    %1503 = vmatpush1.xpose.msra.mxu0 0.0
    %1504 = vmatprep.subr.mxu0 0.0
    %1505 = vmatpush1.xpose.msra.mxu0 0.0
    %1506 = vmatprep.subr.mxu0 0.0
    %1507 = vmatpush1.xpose.msra.mxu0 0.0
    %1508 = vmatprep.subr.mxu0 0.0
    %1509 = vmatpush1.xpose.msra.mxu0 0.0
    %1510 = vmatprep.subr.mxu0 0.0
    %1511 = vmatpush1.xpose.msra.mxu0 0.0
    %1512 = vmatprep.subr.mxu0 0.0
    %1513 = vmatpush1.xpose.msra.mxu0 0.0
    %1514 = vmatprep.subr.mxu0 0.0
    %1515 = vmatpush1.xpose.msra.mxu0 0.0
    %1516 = vmatprep.subr.mxu0 0.0
    %1517 = vmatpush1.xpose.msra.mxu0 0.0
    %1518 = vmatprep.subr.mxu0 0.0
    %1519 = vmatpush1.xpose.msra.mxu0 0.0
    %1520 = vmatprep.subr.mxu0 0.0
    %1521 = vmatpush1.xpose.msra.mxu0 0.0
    %1522 = vmatprep.subr.mxu0 0.0
    %1523 = vmatpush1.xpose.msra.mxu0 0.0
    %1524 = vmatprep.subr.mxu0 0.0
    %1525 = vmatpush1.xpose.msra.mxu0 0.0
    %1526 = vmatprep.subr.mxu0 0.0
    %1527 = vmatpush1.xpose.msra.mxu0 0.0
    %1528 = vmatprep.subr.mxu0 0.0
    %1529 = vmatpush1.xpose.msra.mxu0 0.0
    %1530 = vmatprep.subr.mxu0 0.0
    %1531 = vmatpush1.xpose.msra.mxu0 0.0
    %1532 = vmatprep.subr.mxu0 0.0
    %1533 = vmatpush1.xpose.msra.mxu0 0.0
    %1534 = vmatprep.subr.mxu0 0.0
    %1535 = vmatpush1.xpose.msra.mxu0 0.0
    %1536 = vmatprep.subr.mxu0 0.0
    %1537 = vmatpush1.xpose.msra.mxu0 0.0
    %1538 = vmatprep.subr.mxu0 0.0
    %1539 = vmatpush1.xpose.msra.mxu0 0.0
    %1540 = vmatprep.subr.mxu0 0.0
    %1541 = vmatpush1.xpose.msra.mxu0 0.0
    %1542 = vmatprep.subr.mxu0 0.0
    %1543 = vmatpush1.xpose.msra.mxu0 0.0
    %1544 = vmatprep.subr.mxu0 0.0
    %1545 = vmatpush1.xpose.msra.mxu0 0.0
    %1546 = vmatprep.subr.mxu0 0.0
    %1547 = vmatpush1.xpose.msra.mxu0 0.0
    %1548 = vmatprep.subr.mxu0 0.0
    %1549 = vmatpush1.xpose.msra.mxu0 0.0
    %1550 = vmatprep.mubr.f32.mxu0 0.0
    %v1551 = vand.u32 %v1328, 4294901760
    %v1552 = vsub.f32 %v1328, %v1551
    %1553 = vmatmul.mubr.f32.gmra.mrb[0].mxu0 %v1552
    %v1554 = vpop.f32.mrb[0].mxu0
    %v1555 = vadd.f32 %v1481, %v1554
    %v1556 = vpop.f32.mrb[0].mxu0
    %1557 = vdwg.mxu0
    %1558 = vmatprep.subr.mxu0 0.0
    %v1559 = vand.u32 %v1330, 4294901760
    %1560 = vmatpush1.xpose.msra.mxu0 %v1559
    %1561 = vmatprep.subr.mxu0 0.0
    %1562 = vmatpush1.xpose.msra.mxu0 0.0
    %1563 = vmatprep.subr.mxu0 0.0
    %1564 = vmatpush1.xpose.msra.mxu0 0.0
    %1565 = vmatprep.subr.mxu0 0.0
    %1566 = vmatpush1.xpose.msra.mxu0 0.0
    %1567 = vmatprep.subr.mxu0 0.0
    %1568 = vmatpush1.xpose.msra.mxu0 0.0
    %1569 = vmatprep.subr.mxu0 0.0
    %1570 = vmatpush1.xpose.msra.mxu0 0.0
    %1571 = vmatprep.subr.mxu0 0.0
    %1572 = vmatpush1.xpose.msra.mxu0 0.0
    %1573 = vmatprep.subr.mxu0 0.0
    %1574 = vmatpush1.xpose.msra.mxu0 0.0
    %1575 = vmatprep.subr.mxu0 0.0
    %1576 = vmatpush1.xpose.msra.mxu0 0.0
    %1577 = vmatprep.subr.mxu0 0.0
    %1578 = vmatpush1.xpose.msra.mxu0 0.0
    %1579 = vmatprep.subr.mxu0 0.0
    %1580 = vmatpush1.xpose.msra.mxu0 0.0
    %1581 = vmatprep.subr.mxu0 0.0
    %1582 = vmatpush1.xpose.msra.mxu0 0.0
    %1583 = vmatprep.subr.mxu0 0.0
    %1584 = vmatpush1.xpose.msra.mxu0 0.0
    %1585 = vmatprep.subr.mxu0 0.0
    %1586 = vmatpush1.xpose.msra.mxu0 0.0
    %1587 = vmatprep.subr.mxu0 0.0
    %1588 = vmatpush1.xpose.msra.mxu0 0.0
    %1589 = vmatprep.subr.mxu0 0.0
    %1590 = vmatpush1.xpose.msra.mxu0 0.0
    %1591 = vmatprep.subr.mxu0 0.0
    %1592 = vmatpush1.xpose.msra.mxu0 0.0
    %1593 = vmatprep.subr.mxu0 0.0
    %1594 = vmatpush1.xpose.msra.mxu0 0.0
    %1595 = vmatprep.subr.mxu0 0.0
    %1596 = vmatpush1.xpose.msra.mxu0 0.0
    %1597 = vmatprep.subr.mxu0 0.0
    %1598 = vmatpush1.xpose.msra.mxu0 0.0
    %1599 = vmatprep.subr.mxu0 0.0
    %1600 = vmatpush1.xpose.msra.mxu0 0.0
    %1601 = vmatprep.subr.mxu0 0.0
    %1602 = vmatpush1.xpose.msra.mxu0 0.0
    %1603 = vmatprep.subr.mxu0 0.0
    %1604 = vmatpush1.xpose.msra.mxu0 0.0
    %1605 = vmatprep.subr.mxu0 0.0
    %1606 = vmatpush1.xpose.msra.mxu0 0.0
    %1607 = vmatprep.subr.mxu0 0.0
    %1608 = vmatpush1.xpose.msra.mxu0 0.0
    %1609 = vmatprep.subr.mxu0 0.0
    %1610 = vmatpush1.xpose.msra.mxu0 0.0
    %1611 = vmatprep.subr.mxu0 0.0
    %1612 = vmatpush1.xpose.msra.mxu0 0.0
    %1613 = vmatprep.subr.mxu0 0.0
    %1614 = vmatpush1.xpose.msra.mxu0 0.0
    %1615 = vmatprep.subr.mxu0 0.0
    %1616 = vmatpush1.xpose.msra.mxu0 0.0
    %1617 = vmatprep.subr.mxu0 0.0
    %1618 = vmatpush1.xpose.msra.mxu0 0.0
    %1619 = vmatprep.subr.mxu0 0.0
    %1620 = vmatpush1.xpose.msra.mxu0 0.0
    %1621 = vmatprep.subr.mxu0 0.0
    %1622 = vmatpush1.xpose.msra.mxu0 0.0
    %1623 = vmatprep.mubr.f32.mxu0 0.0
    %v1624 = vand.u32 %v1328, 4294901760
    %v1625 = vsub.f32 %v1328, %v1624
    %v1626 = vand.u32 %v1625, 4294901760
    %1627 = vmatmul.mubr.f32.gmra.mrb[0].mxu0 %v1626
    %v1628 = vpop.f32.mrb[0].mxu0
    %v1629 = vadd.f32 %v1555, %v1628
    %v1630 = vpop.f32.mrb[0].mxu0
    %1631 = vdwg.mxu0
    %1632 = vmatprep.subr.mxu0 0.0
    %v1633 = vand.u32 %v1330, 4294901760
    %v1634 = vsub.f32 %v1330, %v1633
    %v1635 = vand.u32 %v1634, 4294901760
    %1636 = vmatpush1.xpose.msra.mxu0 %v1635
    %1637 = vmatprep.subr.mxu0 0.0
    %1638 = vmatpush1.xpose.msra.mxu0 0.0
    %1639 = vmatprep.subr.mxu0 0.0
    %1640 = vmatpush1.xpose.msra.mxu0 0.0
    %1641 = vmatprep.subr.mxu0 0.0
    %1642 = vmatpush1.xpose.msra.mxu0 0.0
    %1643 = vmatprep.subr.mxu0 0.0
    %1644 = vmatpush1.xpose.msra.mxu0 0.0
    %1645 = vmatprep.subr.mxu0 0.0
    %1646 = vmatpush1.xpose.msra.mxu0 0.0
    %1647 = vmatprep.subr.mxu0 0.0
    %1648 = vmatpush1.xpose.msra.mxu0 0.0
    %1649 = vmatprep.subr.mxu0 0.0
    %1650 = vmatpush1.xpose.msra.mxu0 0.0
    %1651 = vmatprep.subr.mxu0 0.0
    %1652 = vmatpush1.xpose.msra.mxu0 0.0
    %1653 = vmatprep.subr.mxu0 0.0
    %1654 = vmatpush1.xpose.msra.mxu0 0.0
    %1655 = vmatprep.subr.mxu0 0.0
    %1656 = vmatpush1.xpose.msra.mxu0 0.0
    %1657 = vmatprep.subr.mxu0 0.0
    %1658 = vmatpush1.xpose.msra.mxu0 0.0
    %1659 = vmatprep.subr.mxu0 0.0
    %1660 = vmatpush1.xpose.msra.mxu0 0.0
    %1661 = vmatprep.subr.mxu0 0.0
    %1662 = vmatpush1.xpose.msra.mxu0 0.0
    %1663 = vmatprep.subr.mxu0 0.0
    %1664 = vmatpush1.xpose.msra.mxu0 0.0
    %1665 = vmatprep.subr.mxu0 0.0
    %1666 = vmatpush1.xpose.msra.mxu0 0.0
    %1667 = vmatprep.subr.mxu0 0.0
    %1668 = vmatpush1.xpose.msra.mxu0 0.0
    %1669 = vmatprep.subr.mxu0 0.0
    %1670 = vmatpush1.xpose.msra.mxu0 0.0
    %1671 = vmatprep.subr.mxu0 0.0
    %1672 = vmatpush1.xpose.msra.mxu0 0.0
    %1673 = vmatprep.subr.mxu0 0.0
    %1674 = vmatpush1.xpose.msra.mxu0 0.0
    %1675 = vmatprep.subr.mxu0 0.0
    %1676 = vmatpush1.xpose.msra.mxu0 0.0
    %1677 = vmatprep.subr.mxu0 0.0
    %1678 = vmatpush1.xpose.msra.mxu0 0.0
    %1679 = vmatprep.subr.mxu0 0.0
    %1680 = vmatpush1.xpose.msra.mxu0 0.0
    %1681 = vmatprep.subr.mxu0 0.0
    %1682 = vmatpush1.xpose.msra.mxu0 0.0
    %1683 = vmatprep.subr.mxu0 0.0
    %1684 = vmatpush1.xpose.msra.mxu0 0.0
    %1685 = vmatprep.subr.mxu0 0.0
    %1686 = vmatpush1.xpose.msra.mxu0 0.0
    %1687 = vmatprep.subr.mxu0 0.0
    %1688 = vmatpush1.xpose.msra.mxu0 0.0
    %1689 = vmatprep.subr.mxu0 0.0
    %1690 = vmatpush1.xpose.msra.mxu0 0.0
    %1691 = vmatprep.subr.mxu0 0.0
    %1692 = vmatpush1.xpose.msra.mxu0 0.0
    %1693 = vmatprep.subr.mxu0 0.0
    %1694 = vmatpush1.xpose.msra.mxu0 0.0
    %1695 = vmatprep.subr.mxu0 0.0
    %1696 = vmatpush1.xpose.msra.mxu0 0.0
    %1697 = vmatprep.subr.mxu0 0.0
    %1698 = vmatpush1.xpose.msra.mxu0 0.0
    %1699 = vmatprep.mubr.f32.mxu0 0.0
    %v1700 = vand.u32 %v1328, 4294901760
    %1701 = vmatmul.mubr.f32.gmra.mrb[0].mxu0 %v1700
    %v1702 = vpop.f32.mrb[0].mxu0
    %v1703 = vadd.f32 %v1629, %v1702
    %v1704 = vpop.f32.mrb[0].mxu0
    %1705 = vdwg.mxu0
    %1706 = vmatprep.subr.mxu0 0.0
    %v1707 = vand.u32 %v1330, 4294901760
    %1708 = vmatpush1.xpose.msra.mxu0 %v1707
    %1709 = vmatprep.subr.mxu0 0.0
    %1710 = vmatpush1.xpose.msra.mxu0 0.0
    %1711 = vmatprep.subr.mxu0 0.0
    %1712 = vmatpush1.xpose.msra.mxu0 0.0
    %1713 = vmatprep.subr.mxu0 0.0
    %1714 = vmatpush1.xpose.msra.mxu0 0.0
    %1715 = vmatprep.subr.mxu0 0.0
    %1716 = vmatpush1.xpose.msra.mxu0 0.0
    %1717 = vmatprep.subr.mxu0 0.0
    %1718 = vmatpush1.xpose.msra.mxu0 0.0
    %1719 = vmatprep.subr.mxu0 0.0
    %1720 = vmatpush1.xpose.msra.mxu0 0.0
    %1721 = vmatprep.subr.mxu0 0.0
    %1722 = vmatpush1.xpose.msra.mxu0 0.0
    %1723 = vmatprep.subr.mxu0 0.0
    %1724 = vmatpush1.xpose.msra.mxu0 0.0
    %1725 = vmatprep.subr.mxu0 0.0
    %1726 = vmatpush1.xpose.msra.mxu0 0.0
    %1727 = vmatprep.subr.mxu0 0.0
    %1728 = vmatpush1.xpose.msra.mxu0 0.0
    %1729 = vmatprep.subr.mxu0 0.0
    %1730 = vmatpush1.xpose.msra.mxu0 0.0
    %1731 = vmatprep.subr.mxu0 0.0
    %1732 = vmatpush1.xpose.msra.mxu0 0.0
    %1733 = vmatprep.subr.mxu0 0.0
    %1734 = vmatpush1.xpose.msra.mxu0 0.0
    %1735 = vmatprep.subr.mxu0 0.0
    %1736 = vmatpush1.xpose.msra.mxu0 0.0
    %1737 = vmatprep.subr.mxu0 0.0
    %1738 = vmatpush1.xpose.msra.mxu0 0.0
    %1739 = vmatprep.subr.mxu0 0.0
    %1740 = vmatpush1.xpose.msra.mxu0 0.0
    %1741 = vmatprep.subr.mxu0 0.0
    %1742 = vmatpush1.xpose.msra.mxu0 0.0
    %1743 = vmatprep.subr.mxu0 0.0
    %1744 = vmatpush1.xpose.msra.mxu0 0.0
    %1745 = vmatprep.subr.mxu0 0.0
    %1746 = vmatpush1.xpose.msra.mxu0 0.0
    %1747 = vmatprep.subr.mxu0 0.0
    %1748 = vmatpush1.xpose.msra.mxu0 0.0
    %1749 = vmatprep.subr.mxu0 0.0
    %1750 = vmatpush1.xpose.msra.mxu0 0.0
    %1751 = vmatprep.subr.mxu0 0.0
    %1752 = vmatpush1.xpose.msra.mxu0 0.0
    %1753 = vmatprep.subr.mxu0 0.0
    %1754 = vmatpush1.xpose.msra.mxu0 0.0
    %1755 = vmatprep.subr.mxu0 0.0
    %1756 = vmatpush1.xpose.msra.mxu0 0.0
    %1757 = vmatprep.subr.mxu0 0.0
    %1758 = vmatpush1.xpose.msra.mxu0 0.0
    %1759 = vmatprep.subr.mxu0 0.0
    %1760 = vmatpush1.xpose.msra.mxu0 0.0
    %1761 = vmatprep.subr.mxu0 0.0
    %1762 = vmatpush1.xpose.msra.mxu0 0.0
    %1763 = vmatprep.subr.mxu0 0.0
    %1764 = vmatpush1.xpose.msra.mxu0 0.0
    %1765 = vmatprep.subr.mxu0 0.0
    %1766 = vmatpush1.xpose.msra.mxu0 0.0
    %1767 = vmatprep.subr.mxu0 0.0
    %1768 = vmatpush1.xpose.msra.mxu0 0.0
    %1769 = vmatprep.subr.mxu0 0.0
    %1770 = vmatpush1.xpose.msra.mxu0 0.0
    %1771 = vmatprep.mubr.f32.mxu0 0.0
    %v1772 = vand.u32 %v1328, 4294901760
    %1773 = vmatmul.mubr.f32.gmra.mrb[0].mxu0 %v1772
    %v1774 = vpop.f32.mrb[0].mxu0
    %v1775 = vadd.f32 %v1703, %v1774
    %v1776 = vpop.f32.mrb[0].mxu0
    %1777 = vdwg.mxu0
    %v1778 = vrcp.pop 0.07
    %v1779 = vmul.f32 %v1775, %v1778
    %v1780 = vlaneseq
    %v1781 = vshrl.u32 %v1780, 7
    %v1782 = vlaneseq
    %v1783 = vand.u32 %v1782, 127
    %vm1784 = vcmp.eq.s32.totalorder %v1781, %v1783
    %v1785 = vadd.s32 %v1783, 4
    %vm1786 = vcmp.eq.s32.totalorder %v1781, %v1785
    %vm1787 = vmor %vm1784, %vm1786
    %v1788 = vsel %vm1787, %v1779, 0.0
    %vm1789 = vcmask 31744
    %v1790 = vsel %vm1789, %v1788, 0.0
    %1791 = vadd.xlane.f32.xlu0 %v1790
    %v1792 = vpop.xlane.xlu0 %1791
    %v1793 = vrot.slane %v1792, 4
    %v1794 = vadd.f32 %v1792, %v1793
    %v1795 = vrot.slane %v1794, 2
    %v1796 = vadd.f32 %v1794, %v1795
    %v1797 = vrot.slane %v1796, 1
    %v1798 = vadd.f32 %v1796, %v1797
    %s1799 = vtos %v1798
    %v1800 = vsel %vm1789, %v1779, -inf
    %1801 = vmax.xlane.f32.xlu0 %v1800
    %v1802 = vpop.xlane.xlu0 %1801
    %v1803 = vsub.f32 %v1779, %v1802
    %v1804 = vmul.f32 %v1803, 1.442695
    %v1805 = vpow.pop %v1804
    %v1806 = vsel %vm1789, %v1805, 0.0
    %1807 = vadd.xlane.f32.xlu0 %v1806
    %v1808 = vpop.xlane.xlu0 %1807
    %v1809 = vlog2.pop %v1808
    %v1810 = vmul.f32 %v1809, 0.6931472
    %v1811 = vadd.f32 %v1810, %v1802
    %vm1812 = vcmask 7168
    %v1813 = vsel %vm1812, %v1811, 0.0
    %1814 = vadd.xlane.f32.xlu0 %v1813
    %v1815 = vpop.xlane.xlu0 %1814
    %v1816 = vrot.slane %v1815, 4
    %v1817 = vadd.f32 %v1815, %v1816
    %v1818 = vrot.slane %v1817, 2
    %v1819 = vadd.f32 %v1817, %v1818
    %v1820 = vrot.slane %v1819, 1
    %v1821 = vadd.f32 %v1819, %v1820
    %s1822 = vtos %v1821
    %s1823 = ssub.f32 %s1822, %s1799
    %v1824 = vrcp.pop 8.0
    %s1825 = vtos %v1824
    %s1826 = smul.f32 %s1823, %s1825
    %vm1827 = vcmp.lt.s32.totalorder %v1781, 4
    %v1828 = vsel %vm1827, %v1779, -inf
    %v1829 = vsel %vm1827, -inf, %v1779
    %v1830 = vsel %vm1789, %v1828, -inf
    %v1831 = vrot.slane %v1830, 4
    %v1832 = vmax.f32 %v1830, %v1831
    %v1833 = vrot.slane %v1832, 2
    %v1834 = vmax.f32 %v1832, %v1833
    %v1835 = vrot.slane %v1834, 1
    %v1836 = vmax.f32 %v1834, %v1835
    %v1837 = vsel %vm1789, %v1829, -inf
    %v1838 = vrot.slane %v1837, 4
    %v1839 = vmax.f32 %v1837, %v1838
    %v1840 = vrot.slane %v1839, 2
    %v1841 = vmax.f32 %v1839, %v1840
    %v1842 = vrot.slane %v1841, 1
    %v1843 = vmax.f32 %v1841, %v1842
    %v1844 = vsub.f32 %v1828, %v1836
    %v1845 = vmul.f32 %v1844, 1.442695
    %v1846 = vpow.pop %v1845
    %v1847 = vsel %vm1789, %v1846, 0.0
    %v1848 = vrot.slane %v1847, 4
    %v1849 = vadd.f32 %v1847, %v1848
    %v1850 = vrot.slane %v1849, 2
    %v1851 = vadd.f32 %v1849, %v1850
    %v1852 = vrot.slane %v1851, 1
    %v1853 = vadd.f32 %v1851, %v1852
    %v1854 = vlog2.pop %v1853
    %v1855 = vmul.f32 %v1854, 0.6931472
    %v1856 = vadd.f32 %v1855, %v1836
    %v1857 = vsub.f32 %v1829, %v1843
    %v1858 = vmul.f32 %v1857, 1.442695
    %v1859 = vpow.pop %v1858
    %v1860 = vsel %vm1789, %v1859, 0.0
    %v1861 = vrot.slane %v1860, 4
    %v1862 = vadd.f32 %v1860, %v1861
    %v1863 = vrot.slane %v1862, 2
    %v1864 = vadd.f32 %v1862, %v1863
    %v1865 = vrot.slane %v1864, 1
    %v1866 = vadd.f32 %v1864, %v1865
    %v1867 = vlog2.pop %v1866
    %v1868 = vmul.f32 %v1867, 0.6931472
    %v1869 = vadd.f32 %v1868, %v1843
    %vm1870 = vcmask 24576
    %v1871 = vsel %vm1870, %v1856, 0.0
    %1872 = vadd.xlane.f32.xlu0 %v1871
    %v1873 = vpop.xlane.xlu0 %1872
    %v1874 = vrot.slane %v1873, 4
    %v1875 = vadd.f32 %v1873, %v1874
    %v1876 = vrot.slane %v1875, 2
    %v1877 = vadd.f32 %v1875, %v1876
    %v1878 = vrot.slane %v1877, 1
    %v1879 = vadd.f32 %v1877, %v1878
    %s1880 = vtos %v1879
    %v1881 = vsel %vm1870, %v1869, 0.0
    %1882 = vadd.xlane.f32.xlu0 %v1881
    %v1883 = vpop.xlane.xlu0 %1882
    %v1884 = vrot.slane %v1883, 4
    %v1885 = vadd.f32 %v1883, %v1884
    %v1886 = vrot.slane %v1885, 2
    %v1887 = vadd.f32 %v1885, %v1886
    %v1888 = vrot.slane %v1887, 1
    %v1889 = vadd.f32 %v1887, %v1888
    %s1890 = vtos %v1889
    %s1891 = sadd.f32 %s1880, %s1890
    %s1892 = ssub.f32 %s1891, %s1799
    %v1893 = vrcp.pop 8.0
    %s1894 = vtos %v1893
    %s1895 = smul.f32 %s1892, %s1894
    %s1896 = sadd.f32 %s1826, %s1895
    %s1897 = smul.f32 %s1896, 0.5
    %v1898 = vadd.s32 %v1781, 4
    %vm1899 = vcmp.eq.s32.totalorder %v1783, %v1898
    %v1900 = vsub.s32 %v1781, 4
    %vm1901 = vcmp.eq.s32.totalorder %v1783, %v1900
    %vm1902 = vmor %vm1899, %vm1901
    %v1903 = vsel %vm1902, 1.0, 0.0
    %vm1904 = vcmp.eq.s32.totalorder %v1783, %v1781
    %v1905 = vsel %vm1904, 1.0, 0.0
    %v1906 = vsub.f32 %v1903, %v1905
    %1908 = vrot.lane.b32.xlu0 %v1295, 112
    %v1909 = vpop.permute.xlu0 %1908
    %vm1911 = vcmask 64512
    %v1913 = vsel %vm1911, %v1906, 0
    %1915 = vmatprep.subr.mxu0 0.0
    %v1916 = vand.u32 %v1909, 4294901760
    %1917 = vmatpush1.msra.mxu0 %v1916
    %1918 = vmatprep.subr.mxu0 0.0
    %1919 = vmatpush1.msra.mxu0 0.0
    %1920 = vmatprep.subr.mxu0 0.0
    %1921 = vmatpush1.msra.mxu0 0.0
    %1922 = vmatprep.subr.mxu0 0.0
    %1923 = vmatpush1.msra.mxu0 0.0
    %1924 = vmatprep.subr.mxu0 0.0
    %1925 = vmatpush1.msra.mxu0 0.0
    %1926 = vmatprep.subr.mxu0 0.0
    %1927 = vmatpush1.msra.mxu0 0.0
    %1928 = vmatprep.subr.mxu0 0.0
    %1929 = vmatpush1.msra.mxu0 0.0
    %1930 = vmatprep.subr.mxu0 0.0
    %1931 = vmatpush1.msra.mxu0 0.0
    %1932 = vmatprep.subr.mxu0 0.0
    %1933 = vmatpush1.msra.mxu0 0.0
    %1934 = vmatprep.subr.mxu0 0.0
    %1935 = vmatpush1.msra.mxu0 0.0
    %1936 = vmatprep.subr.mxu0 0.0
    %1937 = vmatpush1.msra.mxu0 0.0
    %1938 = vmatprep.subr.mxu0 0.0
    %1939 = vmatpush1.msra.mxu0 0.0
    %1940 = vmatprep.subr.mxu0 0.0
    %1941 = vmatpush1.msra.mxu0 0.0
    %1942 = vmatprep.subr.mxu0 0.0
    %1943 = vmatpush1.msra.mxu0 0.0
    %1944 = vmatprep.subr.mxu0 0.0
    %1945 = vmatpush1.msra.mxu0 0.0
    %1946 = vmatprep.subr.mxu0 0.0
    %1947 = vmatpush1.msra.mxu0 0.0
    %1948 = vmatprep.subr.mxu0 0.0
    %1949 = vmatpush1.msra.mxu0 0.0
    %1950 = vmatprep.subr.mxu0 0.0
    %1951 = vmatpush1.msra.mxu0 0.0
    %1952 = vmatprep.subr.mxu0 0.0
    %1953 = vmatpush1.msra.mxu0 0.0
    %1954 = vmatprep.subr.mxu0 0.0
    %1955 = vmatpush1.msra.mxu0 0.0
    %1956 = vmatprep.subr.mxu0 0.0
    %1957 = vmatpush1.msra.mxu0 0.0
    %1958 = vmatprep.subr.mxu0 0.0
    %1959 = vmatpush1.msra.mxu0 0.0
    %1960 = vmatprep.subr.mxu0 0.0
    %1961 = vmatpush1.msra.mxu0 0.0
    %1962 = vmatprep.subr.mxu0 0.0
    %1963 = vmatpush1.msra.mxu0 0.0
    %1964 = vmatprep.subr.mxu0 0.0
    %1965 = vmatpush1.msra.mxu0 0.0
    %1966 = vmatprep.subr.mxu0 0.0
    %1967 = vmatpush1.msra.mxu0 0.0
    %1968 = vmatprep.subr.mxu0 0.0
    %1969 = vmatpush1.msra.mxu0 0.0
    %1970 = vmatprep.subr.mxu0 0.0
    %1971 = vmatpush1.msra.mxu0 0.0
    %1972 = vmatprep.subr.mxu0 0.0
    %1973 = vmatpush1.msra.mxu0 0.0
    %1974 = vmatprep.subr.mxu0 0.0
    %1975 = vmatpush1.msra.mxu0 0.0
    %1976 = vmatprep.subr.mxu0 0.0
    %1977 = vmatpush1.msra.mxu0 0.0
    %1978 = vmatprep.subr.mxu0 0.0
    %1979 = vmatpush1.msra.mxu0 0.0
    %1980 = vmatprep.mubr.f32.mxu0 0.0
    %v1981 = vand.u32 %v1913, 4294901760
    %v1982 = vsub.f32 %v1913, %v1981
    %v1983 = vand.u32 %v1982, 4294901760
    %v1984 = vsub.f32 %v1982, %v1983
    %v1985 = vand.u32 %v1984, 4294901760
    %1986 = vmatmul.mubr.f32.gmra.mrb[0].mxu0 %v1985
    %v1987 = vpop.f32.mrb[0].mxu0
    %v1988 = vadd.f32 0.0, %v1987
    %v1989 = vpop.f32.mrb[0].mxu0
    %1990 = vdwg.mxu0
    %1991 = vmatprep.subr.mxu0 0.0
    %v1992 = vand.u32 %v1909, 4294901760
    %v1993 = vsub.f32 %v1909, %v1992
    %v1994 = vand.u32 %v1993, 4294901760
    %v1995 = vsub.f32 %v1993, %v1994
    %v1996 = vand.u32 %v1995, 4294901760
    %1997 = vmatpush1.msra.mxu0 %v1996
    %1998 = vmatprep.subr.mxu0 0.0
    %1999 = vmatpush1.msra.mxu0 0.0
    %2000 = vmatprep.subr.mxu0 0.0
    %2001 = vmatpush1.msra.mxu0 0.0
    %2002 = vmatprep.subr.mxu0 0.0
    %2003 = vmatpush1.msra.mxu0 0.0
    %2004 = vmatprep.subr.mxu0 0.0
    %2005 = vmatpush1.msra.mxu0 0.0
    %2006 = vmatprep.subr.mxu0 0.0
    %2007 = vmatpush1.msra.mxu0 0.0
    %2008 = vmatprep.subr.mxu0 0.0
    %2009 = vmatpush1.msra.mxu0 0.0
    %2010 = vmatprep.subr.mxu0 0.0
    %2011 = vmatpush1.msra.mxu0 0.0
    %2012 = vmatprep.subr.mxu0 0.0
    %2013 = vmatpush1.msra.mxu0 0.0
    %2014 = vmatprep.subr.mxu0 0.0
    %2015 = vmatpush1.msra.mxu0 0.0
    %2016 = vmatprep.subr.mxu0 0.0
    %2017 = vmatpush1.msra.mxu0 0.0
    %2018 = vmatprep.subr.mxu0 0.0
    %2019 = vmatpush1.msra.mxu0 0.0
    %2020 = vmatprep.subr.mxu0 0.0
    %2021 = vmatpush1.msra.mxu0 0.0
    %2022 = vmatprep.subr.mxu0 0.0
    %2023 = vmatpush1.msra.mxu0 0.0
    %2024 = vmatprep.subr.mxu0 0.0
    %2025 = vmatpush1.msra.mxu0 0.0
    %2026 = vmatprep.subr.mxu0 0.0
    %2027 = vmatpush1.msra.mxu0 0.0
    %2028 = vmatprep.subr.mxu0 0.0
    %2029 = vmatpush1.msra.mxu0 0.0
    %2030 = vmatprep.subr.mxu0 0.0
    %2031 = vmatpush1.msra.mxu0 0.0
    %2032 = vmatprep.subr.mxu0 0.0
    %2033 = vmatpush1.msra.mxu0 0.0
    %2034 = vmatprep.subr.mxu0 0.0
    %2035 = vmatpush1.msra.mxu0 0.0
    %2036 = vmatprep.subr.mxu0 0.0
    %2037 = vmatpush1.msra.mxu0 0.0
    %2038 = vmatprep.subr.mxu0 0.0
    %2039 = vmatpush1.msra.mxu0 0.0
    %2040 = vmatprep.subr.mxu0 0.0
    %2041 = vmatpush1.msra.mxu0 0.0
    %2042 = vmatprep.subr.mxu0 0.0
    %2043 = vmatpush1.msra.mxu0 0.0
    %2044 = vmatprep.subr.mxu0 0.0
    %2045 = vmatpush1.msra.mxu0 0.0
    %2046 = vmatprep.subr.mxu0 0.0
    %2047 = vmatpush1.msra.mxu0 0.0
    %2048 = vmatprep.subr.mxu0 0.0
    %2049 = vmatpush1.msra.mxu0 0.0
    %2050 = vmatprep.subr.mxu0 0.0
    %2051 = vmatpush1.msra.mxu0 0.0
    %2052 = vmatprep.subr.mxu0 0.0
    %2053 = vmatpush1.msra.mxu0 0.0
    %2054 = vmatprep.subr.mxu0 0.0
    %2055 = vmatpush1.msra.mxu0 0.0
    %2056 = vmatprep.subr.mxu0 0.0
    %2057 = vmatpush1.msra.mxu0 0.0
    %2058 = vmatprep.subr.mxu0 0.0
    %2059 = vmatpush1.msra.mxu0 0.0
    %2060 = vmatprep.mubr.f32.mxu0 0.0
    %v2061 = vand.u32 %v1913, 4294901760
    %2062 = vmatmul.mubr.f32.gmra.mrb[0].mxu0 %v2061
    %v2063 = vpop.f32.mrb[0].mxu0
    %v2064 = vadd.f32 %v1988, %v2063
    %v2065 = vpop.f32.mrb[0].mxu0
    %2066 = vdwg.mxu0
    %2067 = vmatprep.subr.mxu0 0.0
    %v2068 = vand.u32 %v1909, 4294901760
    %v2069 = vsub.f32 %v1909, %v2068
    %2070 = vmatpush1.msra.mxu0 %v2069
    %2071 = vmatprep.subr.mxu0 0.0
    %2072 = vmatpush1.msra.mxu0 0.0
    %2073 = vmatprep.subr.mxu0 0.0
    %2074 = vmatpush1.msra.mxu0 0.0
    %2075 = vmatprep.subr.mxu0 0.0
    %2076 = vmatpush1.msra.mxu0 0.0
    %2077 = vmatprep.subr.mxu0 0.0
    %2078 = vmatpush1.msra.mxu0 0.0
    %2079 = vmatprep.subr.mxu0 0.0
    %2080 = vmatpush1.msra.mxu0 0.0
    %2081 = vmatprep.subr.mxu0 0.0
    %2082 = vmatpush1.msra.mxu0 0.0
    %2083 = vmatprep.subr.mxu0 0.0
    %2084 = vmatpush1.msra.mxu0 0.0
    %2085 = vmatprep.subr.mxu0 0.0
    %2086 = vmatpush1.msra.mxu0 0.0
    %2087 = vmatprep.subr.mxu0 0.0
    %2088 = vmatpush1.msra.mxu0 0.0
    %2089 = vmatprep.subr.mxu0 0.0
    %2090 = vmatpush1.msra.mxu0 0.0
    %2091 = vmatprep.subr.mxu0 0.0
    %2092 = vmatpush1.msra.mxu0 0.0
    %2093 = vmatprep.subr.mxu0 0.0
    %2094 = vmatpush1.msra.mxu0 0.0
    %2095 = vmatprep.subr.mxu0 0.0
    %2096 = vmatpush1.msra.mxu0 0.0
    %2097 = vmatprep.subr.mxu0 0.0
    %2098 = vmatpush1.msra.mxu0 0.0
    %2099 = vmatprep.subr.mxu0 0.0
    %2100 = vmatpush1.msra.mxu0 0.0
    %2101 = vmatprep.subr.mxu0 0.0
    %2102 = vmatpush1.msra.mxu0 0.0
    %2103 = vmatprep.subr.mxu0 0.0
    %2104 = vmatpush1.msra.mxu0 0.0
    %2105 = vmatprep.subr.mxu0 0.0
    %2106 = vmatpush1.msra.mxu0 0.0
    %2107 = vmatprep.subr.mxu0 0.0
    %2108 = vmatpush1.msra.mxu0 0.0
    %2109 = vmatprep.subr.mxu0 0.0
    %2110 = vmatpush1.msra.mxu0 0.0
    %2111 = vmatprep.subr.mxu0 0.0
    %2112 = vmatpush1.msra.mxu0 0.0
    %2113 = vmatprep.subr.mxu0 0.0
    %2114 = vmatpush1.msra.mxu0 0.0
    %2115 = vmatprep.subr.mxu0 0.0
    %2116 = vmatpush1.msra.mxu0 0.0
    %2117 = vmatprep.subr.mxu0 0.0
    %2118 = vmatpush1.msra.mxu0 0.0
    %2119 = vmatprep.subr.mxu0 0.0
    %2120 = vmatpush1.msra.mxu0 0.0
    %2121 = vmatprep.subr.mxu0 0.0
    %2122 = vmatpush1.msra.mxu0 0.0
    %2123 = vmatprep.subr.mxu0 0.0
    %2124 = vmatpush1.msra.mxu0 0.0
    %2125 = vmatprep.subr.mxu0 0.0
    %2126 = vmatpush1.msra.mxu0 0.0
    %2127 = vmatprep.subr.mxu0 0.0
    %2128 = vmatpush1.msra.mxu0 0.0
    %2129 = vmatprep.subr.mxu0 0.0
    %2130 = vmatpush1.msra.mxu0 0.0
    %2131 = vmatprep.subr.mxu0 0.0
    %2132 = vmatpush1.msra.mxu0 0.0
    %2133 = vmatprep.mubr.f32.mxu0 0.0
    %v2134 = vand.u32 %v1913, 4294901760
    %v2135 = vsub.f32 %v1913, %v2134
    %2136 = vmatmul.mubr.f32.gmra.mrb[0].mxu0 %v2135
    %v2137 = vpop.f32.mrb[0].mxu0
    %v2138 = vadd.f32 %v2064, %v2137
    %v2139 = vpop.f32.mrb[0].mxu0
    %2140 = vdwg.mxu0
    %2141 = vmatprep.subr.mxu0 0.0
    %v2142 = vand.u32 %v1909, 4294901760
    %2143 = vmatpush1.msra.mxu0 %v2142
    %2144 = vmatprep.subr.mxu0 0.0
    %2145 = vmatpush1.msra.mxu0 0.0
    %2146 = vmatprep.subr.mxu0 0.0
    %2147 = vmatpush1.msra.mxu0 0.0
    %2148 = vmatprep.subr.mxu0 0.0
    %2149 = vmatpush1.msra.mxu0 0.0
    %2150 = vmatprep.subr.mxu0 0.0
    %2151 = vmatpush1.msra.mxu0 0.0
    %2152 = vmatprep.subr.mxu0 0.0
    %2153 = vmatpush1.msra.mxu0 0.0
    %2154 = vmatprep.subr.mxu0 0.0
    %2155 = vmatpush1.msra.mxu0 0.0
    %2156 = vmatprep.subr.mxu0 0.0
    %2157 = vmatpush1.msra.mxu0 0.0
    %2158 = vmatprep.subr.mxu0 0.0
    %2159 = vmatpush1.msra.mxu0 0.0
    %2160 = vmatprep.subr.mxu0 0.0
    %2161 = vmatpush1.msra.mxu0 0.0
    %2162 = vmatprep.subr.mxu0 0.0
    %2163 = vmatpush1.msra.mxu0 0.0
    %2164 = vmatprep.subr.mxu0 0.0
    %2165 = vmatpush1.msra.mxu0 0.0
    %2166 = vmatprep.subr.mxu0 0.0
    %2167 = vmatpush1.msra.mxu0 0.0
    %2168 = vmatprep.subr.mxu0 0.0
    %2169 = vmatpush1.msra.mxu0 0.0
    %2170 = vmatprep.subr.mxu0 0.0
    %2171 = vmatpush1.msra.mxu0 0.0
    %2172 = vmatprep.subr.mxu0 0.0
    %2173 = vmatpush1.msra.mxu0 0.0
    %2174 = vmatprep.subr.mxu0 0.0
    %2175 = vmatpush1.msra.mxu0 0.0
    %2176 = vmatprep.subr.mxu0 0.0
    %2177 = vmatpush1.msra.mxu0 0.0
    %2178 = vmatprep.subr.mxu0 0.0
    %2179 = vmatpush1.msra.mxu0 0.0
    %2180 = vmatprep.subr.mxu0 0.0
    %2181 = vmatpush1.msra.mxu0 0.0
    %2182 = vmatprep.subr.mxu0 0.0
    %2183 = vmatpush1.msra.mxu0 0.0
    %2184 = vmatprep.subr.mxu0 0.0
    %2185 = vmatpush1.msra.mxu0 0.0
    %2186 = vmatprep.subr.mxu0 0.0
    %2187 = vmatpush1.msra.mxu0 0.0
    %2188 = vmatprep.subr.mxu0 0.0
    %2189 = vmatpush1.msra.mxu0 0.0
    %2190 = vmatprep.subr.mxu0 0.0
    %2191 = vmatpush1.msra.mxu0 0.0
    %2192 = vmatprep.subr.mxu0 0.0
    %2193 = vmatpush1.msra.mxu0 0.0
    %2194 = vmatprep.subr.mxu0 0.0
    %2195 = vmatpush1.msra.mxu0 0.0
    %2196 = vmatprep.subr.mxu0 0.0
    %2197 = vmatpush1.msra.mxu0 0.0
    %2198 = vmatprep.subr.mxu0 0.0
    %2199 = vmatpush1.msra.mxu0 0.0
    %2200 = vmatprep.subr.mxu0 0.0
    %2201 = vmatpush1.msra.mxu0 0.0
    %2202 = vmatprep.subr.mxu0 0.0
    %2203 = vmatpush1.msra.mxu0 0.0
    %2204 = vmatprep.subr.mxu0 0.0
    %2205 = vmatpush1.msra.mxu0 0.0
    %2206 = vmatprep.mubr.f32.mxu0 0.0
    %v2207 = vand.u32 %v1913, 4294901760
    %v2208 = vsub.f32 %v1913, %v2207
    %v2209 = vand.u32 %v2208, 4294901760
    %2210 = vmatmul.mubr.f32.gmra.mrb[0].mxu0 %v2209
    %v2211 = vpop.f32.mrb[0].mxu0
    %v2212 = vadd.f32 %v2138, %v2211
    %v2213 = vpop.f32.mrb[0].mxu0
    %2214 = vdwg.mxu0
    %2215 = vmatprep.subr.mxu0 0.0
    %v2216 = vand.u32 %v1909, 4294901760
    %v2217 = vsub.f32 %v1909, %v2216
    %v2218 = vand.u32 %v2217, 4294901760
    %2219 = vmatpush1.msra.mxu0 %v2218
    %2220 = vmatprep.subr.mxu0 0.0
    %2221 = vmatpush1.msra.mxu0 0.0
    %2222 = vmatprep.subr.mxu0 0.0
    %2223 = vmatpush1.msra.mxu0 0.0
    %2224 = vmatprep.subr.mxu0 0.0
    %2225 = vmatpush1.msra.mxu0 0.0
    %2226 = vmatprep.subr.mxu0 0.0
    %2227 = vmatpush1.msra.mxu0 0.0
    %2228 = vmatprep.subr.mxu0 0.0
    %2229 = vmatpush1.msra.mxu0 0.0
    %2230 = vmatprep.subr.mxu0 0.0
    %2231 = vmatpush1.msra.mxu0 0.0
    %2232 = vmatprep.subr.mxu0 0.0
    %2233 = vmatpush1.msra.mxu0 0.0
    %2234 = vmatprep.subr.mxu0 0.0
    %2235 = vmatpush1.msra.mxu0 0.0
    %2236 = vmatprep.subr.mxu0 0.0
    %2237 = vmatpush1.msra.mxu0 0.0
    %2238 = vmatprep.subr.mxu0 0.0
    %2239 = vmatpush1.msra.mxu0 0.0
    %2240 = vmatprep.subr.mxu0 0.0
    %2241 = vmatpush1.msra.mxu0 0.0
    %2242 = vmatprep.subr.mxu0 0.0
    %2243 = vmatpush1.msra.mxu0 0.0
    %2244 = vmatprep.subr.mxu0 0.0
    %2245 = vmatpush1.msra.mxu0 0.0
    %2246 = vmatprep.subr.mxu0 0.0
    %2247 = vmatpush1.msra.mxu0 0.0
    %2248 = vmatprep.subr.mxu0 0.0
    %2249 = vmatpush1.msra.mxu0 0.0
    %2250 = vmatprep.subr.mxu0 0.0
    %2251 = vmatpush1.msra.mxu0 0.0
    %2252 = vmatprep.subr.mxu0 0.0
    %2253 = vmatpush1.msra.mxu0 0.0
    %2254 = vmatprep.subr.mxu0 0.0
    %2255 = vmatpush1.msra.mxu0 0.0
    %2256 = vmatprep.subr.mxu0 0.0
    %2257 = vmatpush1.msra.mxu0 0.0
    %2258 = vmatprep.subr.mxu0 0.0
    %2259 = vmatpush1.msra.mxu0 0.0
    %2260 = vmatprep.subr.mxu0 0.0
    %2261 = vmatpush1.msra.mxu0 0.0
    %2262 = vmatprep.subr.mxu0 0.0
    %2263 = vmatpush1.msra.mxu0 0.0
    %2264 = vmatprep.subr.mxu0 0.0
    %2265 = vmatpush1.msra.mxu0 0.0
    %2266 = vmatprep.subr.mxu0 0.0
    %2267 = vmatpush1.msra.mxu0 0.0
    %2268 = vmatprep.subr.mxu0 0.0
    %2269 = vmatpush1.msra.mxu0 0.0
    %2270 = vmatprep.subr.mxu0 0.0
    %2271 = vmatpush1.msra.mxu0 0.0
    %2272 = vmatprep.subr.mxu0 0.0
    %2273 = vmatpush1.msra.mxu0 0.0
    %2274 = vmatprep.subr.mxu0 0.0
    %2275 = vmatpush1.msra.mxu0 0.0
    %2276 = vmatprep.subr.mxu0 0.0
    %2277 = vmatpush1.msra.mxu0 0.0
    %2278 = vmatprep.subr.mxu0 0.0
    %2279 = vmatpush1.msra.mxu0 0.0
    %2280 = vmatprep.subr.mxu0 0.0
    %2281 = vmatpush1.msra.mxu0 0.0
    %2282 = vmatprep.mubr.f32.mxu0 0.0
    %v2283 = vand.u32 %v1913, 4294901760
    %2284 = vmatmul.mubr.f32.gmra.mrb[0].mxu0 %v2283
    %v2285 = vpop.f32.mrb[0].mxu0
    %v2286 = vadd.f32 %v2212, %v2285
    %v2287 = vpop.f32.mrb[0].mxu0
    %2288 = vdwg.mxu0
    %2289 = vmatprep.subr.mxu0 0.0
    %v2290 = vand.u32 %v1909, 4294901760
    %2291 = vmatpush1.msra.mxu0 %v2290
    %2292 = vmatprep.subr.mxu0 0.0
    %2293 = vmatpush1.msra.mxu0 0.0
    %2294 = vmatprep.subr.mxu0 0.0
    %2295 = vmatpush1.msra.mxu0 0.0
    %2296 = vmatprep.subr.mxu0 0.0
    %2297 = vmatpush1.msra.mxu0 0.0
    %2298 = vmatprep.subr.mxu0 0.0
    %2299 = vmatpush1.msra.mxu0 0.0
    %2300 = vmatprep.subr.mxu0 0.0
    %2301 = vmatpush1.msra.mxu0 0.0
    %2302 = vmatprep.subr.mxu0 0.0
    %2303 = vmatpush1.msra.mxu0 0.0
    %2304 = vmatprep.subr.mxu0 0.0
    %2305 = vmatpush1.msra.mxu0 0.0
    %2306 = vmatprep.subr.mxu0 0.0
    %2307 = vmatpush1.msra.mxu0 0.0
    %2308 = vmatprep.subr.mxu0 0.0
    %2309 = vmatpush1.msra.mxu0 0.0
    %2310 = vmatprep.subr.mxu0 0.0
    %2311 = vmatpush1.msra.mxu0 0.0
    %2312 = vmatprep.subr.mxu0 0.0
    %2313 = vmatpush1.msra.mxu0 0.0
    %2314 = vmatprep.subr.mxu0 0.0
    %2315 = vmatpush1.msra.mxu0 0.0
    %2316 = vmatprep.subr.mxu0 0.0
    %2317 = vmatpush1.msra.mxu0 0.0
    %2318 = vmatprep.subr.mxu0 0.0
    %2319 = vmatpush1.msra.mxu0 0.0
    %2320 = vmatprep.subr.mxu0 0.0
    %2321 = vmatpush1.msra.mxu0 0.0
    %2322 = vmatprep.subr.mxu0 0.0
    %2323 = vmatpush1.msra.mxu0 0.0
    %2324 = vmatprep.subr.mxu0 0.0
    %2325 = vmatpush1.msra.mxu0 0.0
    %2326 = vmatprep.subr.mxu0 0.0
    %2327 = vmatpush1.msra.mxu0 0.0
    %2328 = vmatprep.subr.mxu0 0.0
    %2329 = vmatpush1.msra.mxu0 0.0
    %2330 = vmatprep.subr.mxu0 0.0
    %2331 = vmatpush1.msra.mxu0 0.0
    %2332 = vmatprep.subr.mxu0 0.0
    %2333 = vmatpush1.msra.mxu0 0.0
    %2334 = vmatprep.subr.mxu0 0.0
    %2335 = vmatpush1.msra.mxu0 0.0
    %2336 = vmatprep.subr.mxu0 0.0
    %2337 = vmatpush1.msra.mxu0 0.0
    %2338 = vmatprep.subr.mxu0 0.0
    %2339 = vmatpush1.msra.mxu0 0.0
    %2340 = vmatprep.subr.mxu0 0.0
    %2341 = vmatpush1.msra.mxu0 0.0
    %2342 = vmatprep.subr.mxu0 0.0
    %2343 = vmatpush1.msra.mxu0 0.0
    %2344 = vmatprep.subr.mxu0 0.0
    %2345 = vmatpush1.msra.mxu0 0.0
    %2346 = vmatprep.subr.mxu0 0.0
    %2347 = vmatpush1.msra.mxu0 0.0
    %2348 = vmatprep.subr.mxu0 0.0
    %2349 = vmatpush1.msra.mxu0 0.0
    %2350 = vmatprep.subr.mxu0 0.0
    %2351 = vmatpush1.msra.mxu0 0.0
    %2352 = vmatprep.subr.mxu0 0.0
    %2353 = vmatpush1.msra.mxu0 0.0
    %2354 = vmatprep.mubr.f32.mxu0 0.0
    %v2355 = vand.u32 %v1913, 4294901760
    %2356 = vmatmul.mubr.f32.gmra.mrb[0].mxu0 %v2355
    %v2357 = vpop.f32.mrb[0].mxu0
    %v2358 = vadd.f32 %v2286, %v2357
    %v2359 = vpop.f32.mrb[0].mxu0
    %2360 = vdwg.mxu0
    %v2361 = vlaneseq
    %v2362 = vshrl.u32 %v2361, 7
    %v2363 = vsub.s32 0, %v2362
    %v2364 = vrot.slane %v73, %v2363
    %v2366 = vsel %vm1305, %v2358, 0
    %2368 = vmatprep.subr.mxu0 0.0
    %v2369 = vand.u32 %v65, 4294901760
    %2370 = vmatpush1.msra.mxu0 %v2369
    %2371 = vmatprep.subr.mxu0 0.0
    %v2372 = vand.u32 %v66, 4294901760
    %2373 = vmatpush1.msra.mxu0 %v2372
    %2374 = vmatprep.subr.mxu0 0.0
    %2375 = vmatpush1.msra.mxu0 0.0
    %2376 = vmatprep.subr.mxu0 0.0
    %2377 = vmatpush1.msra.mxu0 0.0
    %2378 = vmatprep.subr.mxu0 0.0
    %2379 = vmatpush1.msra.mxu0 0.0
    %2380 = vmatprep.subr.mxu0 0.0
    %2381 = vmatpush1.msra.mxu0 0.0
    %2382 = vmatprep.subr.mxu0 0.0
    %2383 = vmatpush1.msra.mxu0 0.0
    %2384 = vmatprep.subr.mxu0 0.0
    %2385 = vmatpush1.msra.mxu0 0.0
    %2386 = vmatprep.subr.mxu0 0.0
    %2387 = vmatpush1.msra.mxu0 0.0
    %2388 = vmatprep.subr.mxu0 0.0
    %2389 = vmatpush1.msra.mxu0 0.0
    %2390 = vmatprep.subr.mxu0 0.0
    %2391 = vmatpush1.msra.mxu0 0.0
    %2392 = vmatprep.subr.mxu0 0.0
    %2393 = vmatpush1.msra.mxu0 0.0
    %2394 = vmatprep.subr.mxu0 0.0
    %2395 = vmatpush1.msra.mxu0 0.0
    %2396 = vmatprep.subr.mxu0 0.0
    %2397 = vmatpush1.msra.mxu0 0.0
    %2398 = vmatprep.subr.mxu0 0.0
    %2399 = vmatpush1.msra.mxu0 0.0
    %2400 = vmatprep.subr.mxu0 0.0
    %2401 = vmatpush1.msra.mxu0 0.0
    %2402 = vmatprep.subr.mxu0 0.0
    %2403 = vmatpush1.msra.mxu0 0.0
    %2404 = vmatprep.subr.mxu0 0.0
    %2405 = vmatpush1.msra.mxu0 0.0
    %2406 = vmatprep.subr.mxu0 0.0
    %2407 = vmatpush1.msra.mxu0 0.0
    %2408 = vmatprep.subr.mxu0 0.0
    %2409 = vmatpush1.msra.mxu0 0.0
    %2410 = vmatprep.subr.mxu0 0.0
    %2411 = vmatpush1.msra.mxu0 0.0
    %2412 = vmatprep.subr.mxu0 0.0
    %2413 = vmatpush1.msra.mxu0 0.0
    %2414 = vmatprep.subr.mxu0 0.0
    %2415 = vmatpush1.msra.mxu0 0.0
    %2416 = vmatprep.subr.mxu0 0.0
    %2417 = vmatpush1.msra.mxu0 0.0
    %2418 = vmatprep.subr.mxu0 0.0
    %2419 = vmatpush1.msra.mxu0 0.0
    %2420 = vmatprep.subr.mxu0 0.0
    %2421 = vmatpush1.msra.mxu0 0.0
    %2422 = vmatprep.subr.mxu0 0.0
    %2423 = vmatpush1.msra.mxu0 0.0
    %2424 = vmatprep.subr.mxu0 0.0
    %2425 = vmatpush1.msra.mxu0 0.0
    %2426 = vmatprep.subr.mxu0 0.0
    %2427 = vmatpush1.msra.mxu0 0.0
    %2428 = vmatprep.subr.mxu0 0.0
    %2429 = vmatpush1.msra.mxu0 0.0
    %2430 = vmatprep.subr.mxu0 0.0
    %2431 = vmatpush1.msra.mxu0 0.0
    %2432 = vmatprep.subr.mxu0 0.0
    %2433 = vmatpush1.msra.mxu0 0.0
    %2434 = vmatprep.mubr.f32.mxu0 0.0
    %v2435 = vand.u32 %v2366, 4294901760
    %v2436 = vsub.f32 %v2366, %v2435
    %v2437 = vand.u32 %v2436, 4294901760
    %v2438 = vsub.f32 %v2436, %v2437
    %v2439 = vand.u32 %v2438, 4294901760
    %2440 = vmatmul.mubr.f32.gmra.mrb[0].mxu0 %v2439
    %v2441 = vpop.f32.mrb[0].mxu0
    %v2442 = vadd.f32 %v2364, %v2441
    %v2443 = vpop.f32.mrb[0].mxu0
    %2444 = vdwg.mxu0
    %2445 = vmatprep.subr.mxu0 0.0
    %v2446 = vand.u32 %v65, 4294901760
    %v2447 = vsub.f32 %v65, %v2446
    %v2448 = vand.u32 %v2447, 4294901760
    %v2449 = vsub.f32 %v2447, %v2448
    %v2450 = vand.u32 %v2449, 4294901760
    %2451 = vmatpush1.msra.mxu0 %v2450
    %2452 = vmatprep.subr.mxu0 0.0
    %v2453 = vand.u32 %v66, 4294901760
    %v2454 = vsub.f32 %v66, %v2453
    %v2455 = vand.u32 %v2454, 4294901760
    %v2456 = vsub.f32 %v2454, %v2455
    %v2457 = vand.u32 %v2456, 4294901760
    %2458 = vmatpush1.msra.mxu0 %v2457
    %2459 = vmatprep.subr.mxu0 0.0
    %2460 = vmatpush1.msra.mxu0 0.0
    %2461 = vmatprep.subr.mxu0 0.0
    %2462 = vmatpush1.msra.mxu0 0.0
    %2463 = vmatprep.subr.mxu0 0.0
    %2464 = vmatpush1.msra.mxu0 0.0
    %2465 = vmatprep.subr.mxu0 0.0
    %2466 = vmatpush1.msra.mxu0 0.0
    %2467 = vmatprep.subr.mxu0 0.0
    %2468 = vmatpush1.msra.mxu0 0.0
    %2469 = vmatprep.subr.mxu0 0.0
    %2470 = vmatpush1.msra.mxu0 0.0
    %2471 = vmatprep.subr.mxu0 0.0
    %2472 = vmatpush1.msra.mxu0 0.0
    %2473 = vmatprep.subr.mxu0 0.0
    %2474 = vmatpush1.msra.mxu0 0.0
    %2475 = vmatprep.subr.mxu0 0.0
    %2476 = vmatpush1.msra.mxu0 0.0
    %2477 = vmatprep.subr.mxu0 0.0
    %2478 = vmatpush1.msra.mxu0 0.0
    %2479 = vmatprep.subr.mxu0 0.0
    %2480 = vmatpush1.msra.mxu0 0.0
    %2481 = vmatprep.subr.mxu0 0.0
    %2482 = vmatpush1.msra.mxu0 0.0
    %2483 = vmatprep.subr.mxu0 0.0
    %2484 = vmatpush1.msra.mxu0 0.0
    %2485 = vmatprep.subr.mxu0 0.0
    %2486 = vmatpush1.msra.mxu0 0.0
    %2487 = vmatprep.subr.mxu0 0.0
    %2488 = vmatpush1.msra.mxu0 0.0
    %2489 = vmatprep.subr.mxu0 0.0
    %2490 = vmatpush1.msra.mxu0 0.0
    %2491 = vmatprep.subr.mxu0 0.0
    %2492 = vmatpush1.msra.mxu0 0.0
    %2493 = vmatprep.subr.mxu0 0.0
    %2494 = vmatpush1.msra.mxu0 0.0
    %2495 = vmatprep.subr.mxu0 0.0
    %2496 = vmatpush1.msra.mxu0 0.0
    %2497 = vmatprep.subr.mxu0 0.0
    %2498 = vmatpush1.msra.mxu0 0.0
    %2499 = vmatprep.subr.mxu0 0.0
    %2500 = vmatpush1.msra.mxu0 0.0
    %2501 = vmatprep.subr.mxu0 0.0
    %2502 = vmatpush1.msra.mxu0 0.0
    %2503 = vmatprep.subr.mxu0 0.0
    %2504 = vmatpush1.msra.mxu0 0.0
    %2505 = vmatprep.subr.mxu0 0.0
    %2506 = vmatpush1.msra.mxu0 0.0
    %2507 = vmatprep.subr.mxu0 0.0
    %2508 = vmatpush1.msra.mxu0 0.0
    %2509 = vmatprep.subr.mxu0 0.0
    %2510 = vmatpush1.msra.mxu0 0.0
    %2511 = vmatprep.subr.mxu0 0.0
    %2512 = vmatpush1.msra.mxu0 0.0
    %2513 = vmatprep.subr.mxu0 0.0
    %2514 = vmatpush1.msra.mxu0 0.0
    %2515 = vmatprep.subr.mxu0 0.0
    %2516 = vmatpush1.msra.mxu0 0.0
    %2517 = vmatprep.subr.mxu0 0.0
    %2518 = vmatpush1.msra.mxu0 0.0
    %2519 = vmatprep.mubr.f32.mxu0 0.0
    %v2520 = vand.u32 %v2366, 4294901760
    %2521 = vmatmul.mubr.f32.gmra.mrb[0].mxu0 %v2520
    %v2522 = vpop.f32.mrb[0].mxu0
    %v2523 = vadd.f32 %v2442, %v2522
    %v2524 = vpop.f32.mrb[0].mxu0
    %2525 = vdwg.mxu0
    %2526 = vmatprep.subr.mxu0 0.0
    %v2527 = vand.u32 %v65, 4294901760
    %v2528 = vsub.f32 %v65, %v2527
    %2529 = vmatpush1.msra.mxu0 %v2528
    %2530 = vmatprep.subr.mxu0 0.0
    %v2531 = vand.u32 %v66, 4294901760
    %v2532 = vsub.f32 %v66, %v2531
    %2533 = vmatpush1.msra.mxu0 %v2532
    %2534 = vmatprep.subr.mxu0 0.0
    %2535 = vmatpush1.msra.mxu0 0.0
    %2536 = vmatprep.subr.mxu0 0.0
    %2537 = vmatpush1.msra.mxu0 0.0
    %2538 = vmatprep.subr.mxu0 0.0
    %2539 = vmatpush1.msra.mxu0 0.0
    %2540 = vmatprep.subr.mxu0 0.0
    %2541 = vmatpush1.msra.mxu0 0.0
    %2542 = vmatprep.subr.mxu0 0.0
    %2543 = vmatpush1.msra.mxu0 0.0
    %2544 = vmatprep.subr.mxu0 0.0
    %2545 = vmatpush1.msra.mxu0 0.0
    %2546 = vmatprep.subr.mxu0 0.0
    %2547 = vmatpush1.msra.mxu0 0.0
    %2548 = vmatprep.subr.mxu0 0.0
    %2549 = vmatpush1.msra.mxu0 0.0
    %2550 = vmatprep.subr.mxu0 0.0
    %2551 = vmatpush1.msra.mxu0 0.0
    %2552 = vmatprep.subr.mxu0 0.0
    %2553 = vmatpush1.msra.mxu0 0.0
    %2554 = vmatprep.subr.mxu0 0.0
    %2555 = vmatpush1.msra.mxu0 0.0
    %2556 = vmatprep.subr.mxu0 0.0
    %2557 = vmatpush1.msra.mxu0 0.0
    %2558 = vmatprep.subr.mxu0 0.0
    %2559 = vmatpush1.msra.mxu0 0.0
    %2560 = vmatprep.subr.mxu0 0.0
    %2561 = vmatpush1.msra.mxu0 0.0
    %2562 = vmatprep.subr.mxu0 0.0
    %2563 = vmatpush1.msra.mxu0 0.0
    %2564 = vmatprep.subr.mxu0 0.0
    %2565 = vmatpush1.msra.mxu0 0.0
    %2566 = vmatprep.subr.mxu0 0.0
    %2567 = vmatpush1.msra.mxu0 0.0
    %2568 = vmatprep.subr.mxu0 0.0
    %2569 = vmatpush1.msra.mxu0 0.0
    %2570 = vmatprep.subr.mxu0 0.0
    %2571 = vmatpush1.msra.mxu0 0.0
    %2572 = vmatprep.subr.mxu0 0.0
    %2573 = vmatpush1.msra.mxu0 0.0
    %2574 = vmatprep.subr.mxu0 0.0
    %2575 = vmatpush1.msra.mxu0 0.0
    %2576 = vmatprep.subr.mxu0 0.0
    %2577 = vmatpush1.msra.mxu0 0.0
    %2578 = vmatprep.subr.mxu0 0.0
    %2579 = vmatpush1.msra.mxu0 0.0
    %2580 = vmatprep.subr.mxu0 0.0
    %2581 = vmatpush1.msra.mxu0 0.0
    %2582 = vmatprep.subr.mxu0 0.0
    %2583 = vmatpush1.msra.mxu0 0.0
    %2584 = vmatprep.subr.mxu0 0.0
    %2585 = vmatpush1.msra.mxu0 0.0
    %2586 = vmatprep.subr.mxu0 0.0
    %2587 = vmatpush1.msra.mxu0 0.0
    %2588 = vmatprep.subr.mxu0 0.0
    %2589 = vmatpush1.msra.mxu0 0.0
    %2590 = vmatprep.subr.mxu0 0.0
    %2591 = vmatpush1.msra.mxu0 0.0
    %2592 = vmatprep.subr.mxu0 0.0
    %2593 = vmatpush1.msra.mxu0 0.0
    %2594 = vmatprep.mubr.f32.mxu0 0.0
    %v2595 = vand.u32 %v2366, 4294901760
    %v2596 = vsub.f32 %v2366, %v2595
    %2597 = vmatmul.mubr.f32.gmra.mrb[0].mxu0 %v2596
    %v2598 = vpop.f32.mrb[0].mxu0
    %v2599 = vadd.f32 %v2523, %v2598
    %v2600 = vpop.f32.mrb[0].mxu0
    %2601 = vdwg.mxu0
    %2602 = vmatprep.subr.mxu0 0.0
    %v2603 = vand.u32 %v65, 4294901760
    %2604 = vmatpush1.msra.mxu0 %v2603
    %2605 = vmatprep.subr.mxu0 0.0
    %v2606 = vand.u32 %v66, 4294901760
    %2607 = vmatpush1.msra.mxu0 %v2606
    %2608 = vmatprep.subr.mxu0 0.0
    %2609 = vmatpush1.msra.mxu0 0.0
    %2610 = vmatprep.subr.mxu0 0.0
    %2611 = vmatpush1.msra.mxu0 0.0
    %2612 = vmatprep.subr.mxu0 0.0
    %2613 = vmatpush1.msra.mxu0 0.0
    %2614 = vmatprep.subr.mxu0 0.0
    %2615 = vmatpush1.msra.mxu0 0.0
    %2616 = vmatprep.subr.mxu0 0.0
    %2617 = vmatpush1.msra.mxu0 0.0
    %2618 = vmatprep.subr.mxu0 0.0
    %2619 = vmatpush1.msra.mxu0 0.0
    %2620 = vmatprep.subr.mxu0 0.0
    %2621 = vmatpush1.msra.mxu0 0.0
    %2622 = vmatprep.subr.mxu0 0.0
    %2623 = vmatpush1.msra.mxu0 0.0
    %2624 = vmatprep.subr.mxu0 0.0
    %2625 = vmatpush1.msra.mxu0 0.0
    %2626 = vmatprep.subr.mxu0 0.0
    %2627 = vmatpush1.msra.mxu0 0.0
    %2628 = vmatprep.subr.mxu0 0.0
    %2629 = vmatpush1.msra.mxu0 0.0
    %2630 = vmatprep.subr.mxu0 0.0
    %2631 = vmatpush1.msra.mxu0 0.0
    %2632 = vmatprep.subr.mxu0 0.0
    %2633 = vmatpush1.msra.mxu0 0.0
    %2634 = vmatprep.subr.mxu0 0.0
    %2635 = vmatpush1.msra.mxu0 0.0
    %2636 = vmatprep.subr.mxu0 0.0
    %2637 = vmatpush1.msra.mxu0 0.0
    %2638 = vmatprep.subr.mxu0 0.0
    %2639 = vmatpush1.msra.mxu0 0.0
    %2640 = vmatprep.subr.mxu0 0.0
    %2641 = vmatpush1.msra.mxu0 0.0
    %2642 = vmatprep.subr.mxu0 0.0
    %2643 = vmatpush1.msra.mxu0 0.0
    %2644 = vmatprep.subr.mxu0 0.0
    %2645 = vmatpush1.msra.mxu0 0.0
    %2646 = vmatprep.subr.mxu0 0.0
    %2647 = vmatpush1.msra.mxu0 0.0
    %2648 = vmatprep.subr.mxu0 0.0
    %2649 = vmatpush1.msra.mxu0 0.0
    %2650 = vmatprep.subr.mxu0 0.0
    %2651 = vmatpush1.msra.mxu0 0.0
    %2652 = vmatprep.subr.mxu0 0.0
    %2653 = vmatpush1.msra.mxu0 0.0
    %2654 = vmatprep.subr.mxu0 0.0
    %2655 = vmatpush1.msra.mxu0 0.0
    %2656 = vmatprep.subr.mxu0 0.0
    %2657 = vmatpush1.msra.mxu0 0.0
    %2658 = vmatprep.subr.mxu0 0.0
    %2659 = vmatpush1.msra.mxu0 0.0
    %2660 = vmatprep.subr.mxu0 0.0
    %2661 = vmatpush1.msra.mxu0 0.0
    %2662 = vmatprep.subr.mxu0 0.0
    %2663 = vmatpush1.msra.mxu0 0.0
    %2664 = vmatprep.subr.mxu0 0.0
    %2665 = vmatpush1.msra.mxu0 0.0
    %2666 = vmatprep.subr.mxu0 0.0
    %2667 = vmatpush1.msra.mxu0 0.0
    %2668 = vmatprep.mubr.f32.mxu0 0.0
    %v2669 = vand.u32 %v2366, 4294901760
    %v2670 = vsub.f32 %v2366, %v2669
    %v2671 = vand.u32 %v2670, 4294901760
    %2672 = vmatmul.mubr.f32.gmra.mrb[0].mxu0 %v2671
    %v2673 = vpop.f32.mrb[0].mxu0
    %v2674 = vadd.f32 %v2599, %v2673
    %v2675 = vpop.f32.mrb[0].mxu0
    %2676 = vdwg.mxu0
    %2677 = vmatprep.subr.mxu0 0.0
    %v2678 = vand.u32 %v65, 4294901760
    %v2679 = vsub.f32 %v65, %v2678
    %v2680 = vand.u32 %v2679, 4294901760
    %2681 = vmatpush1.msra.mxu0 %v2680
    %2682 = vmatprep.subr.mxu0 0.0
    %v2683 = vand.u32 %v66, 4294901760
    %v2684 = vsub.f32 %v66, %v2683
    %v2685 = vand.u32 %v2684, 4294901760
    %2686 = vmatpush1.msra.mxu0 %v2685
    %2687 = vmatprep.subr.mxu0 0.0
    %2688 = vmatpush1.msra.mxu0 0.0
    %2689 = vmatprep.subr.mxu0 0.0
    %2690 = vmatpush1.msra.mxu0 0.0
    %2691 = vmatprep.subr.mxu0 0.0
    %2692 = vmatpush1.msra.mxu0 0.0
    %2693 = vmatprep.subr.mxu0 0.0
    %2694 = vmatpush1.msra.mxu0 0.0
    %2695 = vmatprep.subr.mxu0 0.0
    %2696 = vmatpush1.msra.mxu0 0.0
    %2697 = vmatprep.subr.mxu0 0.0
    %2698 = vmatpush1.msra.mxu0 0.0
    %2699 = vmatprep.subr.mxu0 0.0
    %2700 = vmatpush1.msra.mxu0 0.0
    %2701 = vmatprep.subr.mxu0 0.0
    %2702 = vmatpush1.msra.mxu0 0.0
    %2703 = vmatprep.subr.mxu0 0.0
    %2704 = vmatpush1.msra.mxu0 0.0
    %2705 = vmatprep.subr.mxu0 0.0
    %2706 = vmatpush1.msra.mxu0 0.0
    %2707 = vmatprep.subr.mxu0 0.0
    %2708 = vmatpush1.msra.mxu0 0.0
    %2709 = vmatprep.subr.mxu0 0.0
    %2710 = vmatpush1.msra.mxu0 0.0
    %2711 = vmatprep.subr.mxu0 0.0
    %2712 = vmatpush1.msra.mxu0 0.0
    %2713 = vmatprep.subr.mxu0 0.0
    %2714 = vmatpush1.msra.mxu0 0.0
    %2715 = vmatprep.subr.mxu0 0.0
    %2716 = vmatpush1.msra.mxu0 0.0
    %2717 = vmatprep.subr.mxu0 0.0
    %2718 = vmatpush1.msra.mxu0 0.0
    %2719 = vmatprep.subr.mxu0 0.0
    %2720 = vmatpush1.msra.mxu0 0.0
    %2721 = vmatprep.subr.mxu0 0.0
    %2722 = vmatpush1.msra.mxu0 0.0
    %2723 = vmatprep.subr.mxu0 0.0
    %2724 = vmatpush1.msra.mxu0 0.0
    %2725 = vmatprep.subr.mxu0 0.0
    %2726 = vmatpush1.msra.mxu0 0.0
    %2727 = vmatprep.subr.mxu0 0.0
    %2728 = vmatpush1.msra.mxu0 0.0
    %2729 = vmatprep.subr.mxu0 0.0
    %2730 = vmatpush1.msra.mxu0 0.0
    %2731 = vmatprep.subr.mxu0 0.0
    %2732 = vmatpush1.msra.mxu0 0.0
    %2733 = vmatprep.subr.mxu0 0.0
    %2734 = vmatpush1.msra.mxu0 0.0
    %2735 = vmatprep.subr.mxu0 0.0
    %2736 = vmatpush1.msra.mxu0 0.0
    %2737 = vmatprep.subr.mxu0 0.0
    %2738 = vmatpush1.msra.mxu0 0.0
    %2739 = vmatprep.subr.mxu0 0.0
    %2740 = vmatpush1.msra.mxu0 0.0
    %2741 = vmatprep.subr.mxu0 0.0
    %2742 = vmatpush1.msra.mxu0 0.0
    %2743 = vmatprep.subr.mxu0 0.0
    %2744 = vmatpush1.msra.mxu0 0.0
    %2745 = vmatprep.subr.mxu0 0.0
    %2746 = vmatpush1.msra.mxu0 0.0
    %2747 = vmatprep.mubr.f32.mxu0 0.0
    %v2748 = vand.u32 %v2366, 4294901760
    %2749 = vmatmul.mubr.f32.gmra.mrb[0].mxu0 %v2748
    %v2750 = vpop.f32.mrb[0].mxu0
    %v2751 = vadd.f32 %v2674, %v2750
    %v2752 = vpop.f32.mrb[0].mxu0
    %2753 = vdwg.mxu0
    %2754 = vmatprep.subr.mxu0 0.0
    %v2755 = vand.u32 %v65, 4294901760
    %2756 = vmatpush1.msra.mxu0 %v2755
    %2757 = vmatprep.subr.mxu0 0.0
    %v2758 = vand.u32 %v66, 4294901760
    %2759 = vmatpush1.msra.mxu0 %v2758
    %2760 = vmatprep.subr.mxu0 0.0
    %2761 = vmatpush1.msra.mxu0 0.0
    %2762 = vmatprep.subr.mxu0 0.0
    %2763 = vmatpush1.msra.mxu0 0.0
    %2764 = vmatprep.subr.mxu0 0.0
    %2765 = vmatpush1.msra.mxu0 0.0
    %2766 = vmatprep.subr.mxu0 0.0
    %2767 = vmatpush1.msra.mxu0 0.0
    %2768 = vmatprep.subr.mxu0 0.0
    %2769 = vmatpush1.msra.mxu0 0.0
    %2770 = vmatprep.subr.mxu0 0.0
    %2771 = vmatpush1.msra.mxu0 0.0
    %2772 = vmatprep.subr.mxu0 0.0
    %2773 = vmatpush1.msra.mxu0 0.0
    %2774 = vmatprep.subr.mxu0 0.0
    %2775 = vmatpush1.msra.mxu0 0.0
    %2776 = vmatprep.subr.mxu0 0.0
    %2777 = vmatpush1.msra.mxu0 0.0
    %2778 = vmatprep.subr.mxu0 0.0
    %2779 = vmatpush1.msra.mxu0 0.0
    %2780 = vmatprep.subr.mxu0 0.0
    %2781 = vmatpush1.msra.mxu0 0.0
    %2782 = vmatprep.subr.mxu0 0.0
    %2783 = vmatpush1.msra.mxu0 0.0
    %2784 = vmatprep.subr.mxu0 0.0
    %2785 = vmatpush1.msra.mxu0 0.0
    %2786 = vmatprep.subr.mxu0 0.0
    %2787 = vmatpush1.msra.mxu0 0.0
    %2788 = vmatprep.subr.mxu0 0.0
    %2789 = vmatpush1.msra.mxu0 0.0
    %2790 = vmatprep.subr.mxu0 0.0
    %2791 = vmatpush1.msra.mxu0 0.0
    %2792 = vmatprep.subr.mxu0 0.0
    %2793 = vmatpush1.msra.mxu0 0.0
    %2794 = vmatprep.subr.mxu0 0.0
    %2795 = vmatpush1.msra.mxu0 0.0
    %2796 = vmatprep.subr.mxu0 0.0
    %2797 = vmatpush1.msra.mxu0 0.0
    %2798 = vmatprep.subr.mxu0 0.0
    %2799 = vmatpush1.msra.mxu0 0.0
    %2800 = vmatprep.subr.mxu0 0.0
    %2801 = vmatpush1.msra.mxu0 0.0
    %2802 = vmatprep.subr.mxu0 0.0
    %2803 = vmatpush1.msra.mxu0 0.0
    %2804 = vmatprep.subr.mxu0 0.0
    %2805 = vmatpush1.msra.mxu0 0.0
    %2806 = vmatprep.subr.mxu0 0.0
    %2807 = vmatpush1.msra.mxu0 0.0
    %2808 = vmatprep.subr.mxu0 0.0
    %2809 = vmatpush1.msra.mxu0 0.0
    %2810 = vmatprep.subr.mxu0 0.0
    %2811 = vmatpush1.msra.mxu0 0.0
    %2812 = vmatprep.subr.mxu0 0.0
    %2813 = vmatpush1.msra.mxu0 0.0
    %2814 = vmatprep.subr.mxu0 0.0
    %2815 = vmatpush1.msra.mxu0 0.0
    %2816 = vmatprep.subr.mxu0 0.0
    %2817 = vmatpush1.msra.mxu0 0.0
    %2818 = vmatprep.subr.mxu0 0.0
    %2819 = vmatpush1.msra.mxu0 0.0
    %2820 = vmatprep.mubr.f32.mxu0 0.0
    %v2821 = vand.u32 %v2366, 4294901760
    %2822 = vmatmul.mubr.f32.gmra.mrb[0].mxu0 %v2821
    %v2823 = vpop.f32.mrb[0].mxu0
    %v2824 = vadd.f32 %v2751, %v2823
    %v2825 = vpop.f32.mrb[0].mxu0
    %2826 = vdwg.mxu0
    %v2827 = vmax.f32 %v2824, 0.0
    %v2828 = vlaneseq
    %v2829 = vshrl.u32 %v2828, 7
    %v2830 = vsub.s32 0, %v2829
    %v2831 = vrot.slane %v74, %v2830
    %v2833 = vsel %vm79, %v2827, 0
    %2835 = vmatprep.subr.mxu0 0.0
    %v2836 = vand.u32 %v67, 4294901760
    %2837 = vmatpush1.msra.mxu0 %v2836
    %2838 = vmatprep.subr.mxu0 0.0
    %v2839 = vand.u32 %v68, 4294901760
    %2840 = vmatpush1.msra.mxu0 %v2839
    %2841 = vmatprep.subr.mxu0 0.0
    %v2842 = vand.u32 %v69, 4294901760
    %2843 = vmatpush1.msra.mxu0 %v2842
    %2844 = vmatprep.subr.mxu0 0.0
    %v2845 = vand.u32 %v70, 4294901760
    %2846 = vmatpush1.msra.mxu0 %v2845
    %2847 = vmatprep.subr.mxu0 0.0
    %2848 = vmatpush1.msra.mxu0 0.0
    %2849 = vmatprep.subr.mxu0 0.0
    %2850 = vmatpush1.msra.mxu0 0.0
    %2851 = vmatprep.subr.mxu0 0.0
    %2852 = vmatpush1.msra.mxu0 0.0
    %2853 = vmatprep.subr.mxu0 0.0
    %2854 = vmatpush1.msra.mxu0 0.0
    %2855 = vmatprep.subr.mxu0 0.0
    %2856 = vmatpush1.msra.mxu0 0.0
    %2857 = vmatprep.subr.mxu0 0.0
    %2858 = vmatpush1.msra.mxu0 0.0
    %2859 = vmatprep.subr.mxu0 0.0
    %2860 = vmatpush1.msra.mxu0 0.0
    %2861 = vmatprep.subr.mxu0 0.0
    %2862 = vmatpush1.msra.mxu0 0.0
    %2863 = vmatprep.subr.mxu0 0.0
    %2864 = vmatpush1.msra.mxu0 0.0
    %2865 = vmatprep.subr.mxu0 0.0
    %2866 = vmatpush1.msra.mxu0 0.0
    %2867 = vmatprep.subr.mxu0 0.0
    %2868 = vmatpush1.msra.mxu0 0.0
    %2869 = vmatprep.subr.mxu0 0.0
    %2870 = vmatpush1.msra.mxu0 0.0
    %2871 = vmatprep.subr.mxu0 0.0
    %2872 = vmatpush1.msra.mxu0 0.0
    %2873 = vmatprep.subr.mxu0 0.0
    %2874 = vmatpush1.msra.mxu0 0.0
    %2875 = vmatprep.subr.mxu0 0.0
    %2876 = vmatpush1.msra.mxu0 0.0
    %2877 = vmatprep.subr.mxu0 0.0
    %2878 = vmatpush1.msra.mxu0 0.0
    %2879 = vmatprep.subr.mxu0 0.0
    %2880 = vmatpush1.msra.mxu0 0.0
    %2881 = vmatprep.subr.mxu0 0.0
    %2882 = vmatpush1.msra.mxu0 0.0
    %2883 = vmatprep.subr.mxu0 0.0
    %2884 = vmatpush1.msra.mxu0 0.0
    %2885 = vmatprep.subr.mxu0 0.0
    %2886 = vmatpush1.msra.mxu0 0.0
    %2887 = vmatprep.subr.mxu0 0.0
    %2888 = vmatpush1.msra.mxu0 0.0
    %2889 = vmatprep.subr.mxu0 0.0
    %2890 = vmatpush1.msra.mxu0 0.0
    %2891 = vmatprep.subr.mxu0 0.0
    %2892 = vmatpush1.msra.mxu0 0.0
    %2893 = vmatprep.subr.mxu0 0.0
    %2894 = vmatpush1.msra.mxu0 0.0
    %2895 = vmatprep.subr.mxu0 0.0
    %2896 = vmatpush1.msra.mxu0 0.0
    %2897 = vmatprep.subr.mxu0 0.0
    %2898 = vmatpush1.msra.mxu0 0.0
    %2899 = vmatprep.subr.mxu0 0.0
    %2900 = vmatpush1.msra.mxu0 0.0
    %2901 = vmatprep.subr.mxu0 0.0
    %2902 = vmatpush1.msra.mxu0 0.0
    %2903 = vmatprep.mubr.f32.mxu0 0.0
    %v2904 = vand.u32 %v2833, 4294901760
    %v2905 = vsub.f32 %v2833, %v2904
    %v2906 = vand.u32 %v2905, 4294901760
    %v2907 = vsub.f32 %v2905, %v2906
    %v2908 = vand.u32 %v2907, 4294901760
    %2909 = vmatmul.mubr.f32.gmra.mrb[0].mxu0 %v2908
    %v2910 = vpop.f32.mrb[0].mxu0
    %v2911 = vadd.f32 %v2831, %v2910
    %v2912 = vpop.f32.mrb[0].mxu0
    %2913 = vdwg.mxu0
    %2914 = vmatprep.subr.mxu0 0.0
    %v2915 = vand.u32 %v67, 4294901760
    %v2916 = vsub.f32 %v67, %v2915
    %v2917 = vand.u32 %v2916, 4294901760
    %v2918 = vsub.f32 %v2916, %v2917
    %v2919 = vand.u32 %v2918, 4294901760
    %2920 = vmatpush1.msra.mxu0 %v2919
    %2921 = vmatprep.subr.mxu0 0.0
    %v2922 = vand.u32 %v68, 4294901760
    %v2923 = vsub.f32 %v68, %v2922
    %v2924 = vand.u32 %v2923, 4294901760
    %v2925 = vsub.f32 %v2923, %v2924
    %v2926 = vand.u32 %v2925, 4294901760
    %2927 = vmatpush1.msra.mxu0 %v2926
    %2928 = vmatprep.subr.mxu0 0.0
    %v2929 = vand.u32 %v69, 4294901760
    %v2930 = vsub.f32 %v69, %v2929
    %v2931 = vand.u32 %v2930, 4294901760
    %v2932 = vsub.f32 %v2930, %v2931
    %v2933 = vand.u32 %v2932, 4294901760
    %2934 = vmatpush1.msra.mxu0 %v2933
    %2935 = vmatprep.subr.mxu0 0.0
    %v2936 = vand.u32 %v70, 4294901760
    %v2937 = vsub.f32 %v70, %v2936
    %v2938 = vand.u32 %v2937, 4294901760
    %v2939 = vsub.f32 %v2937, %v2938
    %v2940 = vand.u32 %v2939, 4294901760
    %2941 = vmatpush1.msra.mxu0 %v2940
    %2942 = vmatprep.subr.mxu0 0.0
    %2943 = vmatpush1.msra.mxu0 0.0
    %2944 = vmatprep.subr.mxu0 0.0
    %2945 = vmatpush1.msra.mxu0 0.0
    %2946 = vmatprep.subr.mxu0 0.0
    %2947 = vmatpush1.msra.mxu0 0.0
    %2948 = vmatprep.subr.mxu0 0.0
    %2949 = vmatpush1.msra.mxu0 0.0
    %2950 = vmatprep.subr.mxu0 0.0
    %2951 = vmatpush1.msra.mxu0 0.0
    %2952 = vmatprep.subr.mxu0 0.0
    %2953 = vmatpush1.msra.mxu0 0.0
    %2954 = vmatprep.subr.mxu0 0.0
    %2955 = vmatpush1.msra.mxu0 0.0
    %2956 = vmatprep.subr.mxu0 0.0
    %2957 = vmatpush1.msra.mxu0 0.0
    %2958 = vmatprep.subr.mxu0 0.0
    %2959 = vmatpush1.msra.mxu0 0.0
    %2960 = vmatprep.subr.mxu0 0.0
    %2961 = vmatpush1.msra.mxu0 0.0
    %2962 = vmatprep.subr.mxu0 0.0
    %2963 = vmatpush1.msra.mxu0 0.0
    %2964 = vmatprep.subr.mxu0 0.0
    %2965 = vmatpush1.msra.mxu0 0.0
    %2966 = vmatprep.subr.mxu0 0.0
    %2967 = vmatpush1.msra.mxu0 0.0
    %2968 = vmatprep.subr.mxu0 0.0
    %2969 = vmatpush1.msra.mxu0 0.0
    %2970 = vmatprep.subr.mxu0 0.0
    %2971 = vmatpush1.msra.mxu0 0.0
    %2972 = vmatprep.subr.mxu0 0.0
    %2973 = vmatpush1.msra.mxu0 0.0
    %2974 = vmatprep.subr.mxu0 0.0
    %2975 = vmatpush1.msra.mxu0 0.0
    %2976 = vmatprep.subr.mxu0 0.0
    %2977 = vmatpush1.msra.mxu0 0.0
    %2978 = vmatprep.subr.mxu0 0.0
    %2979 = vmatpush1.msra.mxu0 0.0
    %2980 = vmatprep.subr.mxu0 0.0
    %2981 = vmatpush1.msra.mxu0 0.0
    %2982 = vmatprep.subr.mxu0 0.0
    %2983 = vmatpush1.msra.mxu0 0.0
    %2984 = vmatprep.subr.mxu0 0.0
    %2985 = vmatpush1.msra.mxu0 0.0
    %2986 = vmatprep.subr.mxu0 0.0
    %2987 = vmatpush1.msra.mxu0 0.0
    %2988 = vmatprep.subr.mxu0 0.0
    %2989 = vmatpush1.msra.mxu0 0.0
    %2990 = vmatprep.subr.mxu0 0.0
    %2991 = vmatpush1.msra.mxu0 0.0
    %2992 = vmatprep.subr.mxu0 0.0
    %2993 = vmatpush1.msra.mxu0 0.0
    %2994 = vmatprep.subr.mxu0 0.0
    %2995 = vmatpush1.msra.mxu0 0.0
    %2996 = vmatprep.subr.mxu0 0.0
    %2997 = vmatpush1.msra.mxu0 0.0
    %2998 = vmatprep.mubr.f32.mxu0 0.0
    %v2999 = vand.u32 %v2833, 4294901760
    %3000 = vmatmul.mubr.f32.gmra.mrb[0].mxu0 %v2999
    %v3001 = vpop.f32.mrb[0].mxu0
    %v3002 = vadd.f32 %v2911, %v3001
    %v3003 = vpop.f32.mrb[0].mxu0
    %3004 = vdwg.mxu0
    %3005 = vmatprep.subr.mxu0 0.0
    %v3006 = vand.u32 %v67, 4294901760
    %v3007 = vsub.f32 %v67, %v3006
    %3008 = vmatpush1.msra.mxu0 %v3007
    %3009 = vmatprep.subr.mxu0 0.0
    %v3010 = vand.u32 %v68, 4294901760
    %v3011 = vsub.f32 %v68, %v3010
    %3012 = vmatpush1.msra.mxu0 %v3011
    %3013 = vmatprep.subr.mxu0 0.0
    %v3014 = vand.u32 %v69, 4294901760
    %v3015 = vsub.f32 %v69, %v3014
    %3016 = vmatpush1.msra.mxu0 %v3015
    %3017 = vmatprep.subr.mxu0 0.0
    %v3018 = vand.u32 %v70, 4294901760
    %v3019 = vsub.f32 %v70, %v3018
    %3020 = vmatpush1.msra.mxu0 %v3019
    %3021 = vmatprep.subr.mxu0 0.0
    %3022 = vmatpush1.msra.mxu0 0.0
    %3023 = vmatprep.subr.mxu0 0.0
    %3024 = vmatpush1.msra.mxu0 0.0
    %3025 = vmatprep.subr.mxu0 0.0
    %3026 = vmatpush1.msra.mxu0 0.0
    %3027 = vmatprep.subr.mxu0 0.0
    %3028 = vmatpush1.msra.mxu0 0.0
    %3029 = vmatprep.subr.mxu0 0.0
    %3030 = vmatpush1.msra.mxu0 0.0
    %3031 = vmatprep.subr.mxu0 0.0
    %3032 = vmatpush1.msra.mxu0 0.0
    %3033 = vmatprep.subr.mxu0 0.0
    %3034 = vmatpush1.msra.mxu0 0.0
    %3035 = vmatprep.subr.mxu0 0.0
    %3036 = vmatpush1.msra.mxu0 0.0
    %3037 = vmatprep.subr.mxu0 0.0
    %3038 = vmatpush1.msra.mxu0 0.0
    %3039 = vmatprep.subr.mxu0 0.0
    %3040 = vmatpush1.msra.mxu0 0.0
    %3041 = vmatprep.subr.mxu0 0.0
    %3042 = vmatpush1.msra.mxu0 0.0
    %3043 = vmatprep.subr.mxu0 0.0
    %3044 = vmatpush1.msra.mxu0 0.0
    %3045 = vmatprep.subr.mxu0 0.0
    %3046 = vmatpush1.msra.mxu0 0.0
    %3047 = vmatprep.subr.mxu0 0.0
    %3048 = vmatpush1.msra.mxu0 0.0
    %3049 = vmatprep.subr.mxu0 0.0
    %3050 = vmatpush1.msra.mxu0 0.0
    %3051 = vmatprep.subr.mxu0 0.0
    %3052 = vmatpush1.msra.mxu0 0.0
    %3053 = vmatprep.subr.mxu0 0.0
    %3054 = vmatpush1.msra.mxu0 0.0
    %3055 = vmatprep.subr.mxu0 0.0
    %3056 = vmatpush1.msra.mxu0 0.0
    %3057 = vmatprep.subr.mxu0 0.0
    %3058 = vmatpush1.msra.mxu0 0.0
    %3059 = vmatprep.subr.mxu0 0.0
    %3060 = vmatpush1.msra.mxu0 0.0
    %3061 = vmatprep.subr.mxu0 0.0
    %3062 = vmatpush1.msra.mxu0 0.0
    %3063 = vmatprep.subr.mxu0 0.0
    %3064 = vmatpush1.msra.mxu0 0.0
    %3065 = vmatprep.subr.mxu0 0.0
    %3066 = vmatpush1.msra.mxu0 0.0
    %3067 = vmatprep.subr.mxu0 0.0
    %3068 = vmatpush1.msra.mxu0 0.0
    %3069 = vmatprep.subr.mxu0 0.0
    %3070 = vmatpush1.msra.mxu0 0.0
    %3071 = vmatprep.subr.mxu0 0.0
    %3072 = vmatpush1.msra.mxu0 0.0
    %3073 = vmatprep.subr.mxu0 0.0
    %3074 = vmatpush1.msra.mxu0 0.0
    %3075 = vmatprep.subr.mxu0 0.0
    %3076 = vmatpush1.msra.mxu0 0.0
    %3077 = vmatprep.mubr.f32.mxu0 0.0
    %v3078 = vand.u32 %v2833, 4294901760
    %v3079 = vsub.f32 %v2833, %v3078
    %3080 = vmatmul.mubr.f32.gmra.mrb[0].mxu0 %v3079
    %v3081 = vpop.f32.mrb[0].mxu0
    %v3082 = vadd.f32 %v3002, %v3081
    %v3083 = vpop.f32.mrb[0].mxu0
    %3084 = vdwg.mxu0
    %3085 = vmatprep.subr.mxu0 0.0
    %v3086 = vand.u32 %v67, 4294901760
    %3087 = vmatpush1.msra.mxu0 %v3086
    %3088 = vmatprep.subr.mxu0 0.0
    %v3089 = vand.u32 %v68, 4294901760
    %3090 = vmatpush1.msra.mxu0 %v3089
    %3091 = vmatprep.subr.mxu0 0.0
    %v3092 = vand.u32 %v69, 4294901760
    %3093 = vmatpush1.msra.mxu0 %v3092
    %3094 = vmatprep.subr.mxu0 0.0
    %v3095 = vand.u32 %v70, 4294901760
    %3096 = vmatpush1.msra.mxu0 %v3095
    %3097 = vmatprep.subr.mxu0 0.0
    %3098 = vmatpush1.msra.mxu0 0.0
    %3099 = vmatprep.subr.mxu0 0.0
    %3100 = vmatpush1.msra.mxu0 0.0
    %3101 = vmatprep.subr.mxu0 0.0
    %3102 = vmatpush1.msra.mxu0 0.0
    %3103 = vmatprep.subr.mxu0 0.0
    %3104 = vmatpush1.msra.mxu0 0.0
    %3105 = vmatprep.subr.mxu0 0.0
    %3106 = vmatpush1.msra.mxu0 0.0
    %3107 = vmatprep.subr.mxu0 0.0
    %3108 = vmatpush1.msra.mxu0 0.0
    %3109 = vmatprep.subr.mxu0 0.0
    %3110 = vmatpush1.msra.mxu0 0.0
    %3111 = vmatprep.subr.mxu0 0.0
    %3112 = vmatpush1.msra.mxu0 0.0
    %3113 = vmatprep.subr.mxu0 0.0
    %3114 = vmatpush1.msra.mxu0 0.0
    %3115 = vmatprep.subr.mxu0 0.0
    %3116 = vmatpush1.msra.mxu0 0.0
    %3117 = vmatprep.subr.mxu0 0.0
    %3118 = vmatpush1.msra.mxu0 0.0
    %3119 = vmatprep.subr.mxu0 0.0
    %3120 = vmatpush1.msra.mxu0 0.0
    %3121 = vmatprep.subr.mxu0 0.0
    %3122 = vmatpush1.msra.mxu0 0.0
    %3123 = vmatprep.subr.mxu0 0.0
    %3124 = vmatpush1.msra.mxu0 0.0
    %3125 = vmatprep.subr.mxu0 0.0
    %3126 = vmatpush1.msra.mxu0 0.0
    %3127 = vmatprep.subr.mxu0 0.0
    %3128 = vmatpush1.msra.mxu0 0.0
    %3129 = vmatprep.subr.mxu0 0.0
    %3130 = vmatpush1.msra.mxu0 0.0
    %3131 = vmatprep.subr.mxu0 0.0
    %3132 = vmatpush1.msra.mxu0 0.0
    %3133 = vmatprep.subr.mxu0 0.0
    %3134 = vmatpush1.msra.mxu0 0.0
    %3135 = vmatprep.subr.mxu0 0.0
    %3136 = vmatpush1.msra.mxu0 0.0
    %3137 = vmatprep.subr.mxu0 0.0
    %3138 = vmatpush1.msra.mxu0 0.0
    %3139 = vmatprep.subr.mxu0 0.0
    %3140 = vmatpush1.msra.mxu0 0.0
    %3141 = vmatprep.subr.mxu0 0.0
    %3142 = vmatpush1.msra.mxu0 0.0
    %3143 = vmatprep.subr.mxu0 0.0
    %3144 = vmatpush1.msra.mxu0 0.0
    %3145 = vmatprep.subr.mxu0 0.0
    %3146 = vmatpush1.msra.mxu0 0.0
    %3147 = vmatprep.subr.mxu0 0.0
    %3148 = vmatpush1.msra.mxu0 0.0
    %3149 = vmatprep.subr.mxu0 0.0
    %3150 = vmatpush1.msra.mxu0 0.0
    %3151 = vmatprep.subr.mxu0 0.0
    %3152 = vmatpush1.msra.mxu0 0.0
    %3153 = vmatprep.mubr.f32.mxu0 0.0
    %v3154 = vand.u32 %v2833, 4294901760
    %v3155 = vsub.f32 %v2833, %v3154
    %v3156 = vand.u32 %v3155, 4294901760
    %3157 = vmatmul.mubr.f32.gmra.mrb[0].mxu0 %v3156
    %v3158 = vpop.f32.mrb[0].mxu0
    %v3159 = vadd.f32 %v3082, %v3158
    %v3160 = vpop.f32.mrb[0].mxu0
    %3161 = vdwg.mxu0
    %3162 = vmatprep.subr.mxu0 0.0
    %v3163 = vand.u32 %v67, 4294901760
    %v3164 = vsub.f32 %v67, %v3163
    %v3165 = vand.u32 %v3164, 4294901760
    %3166 = vmatpush1.msra.mxu0 %v3165
    %3167 = vmatprep.subr.mxu0 0.0
    %v3168 = vand.u32 %v68, 4294901760
    %v3169 = vsub.f32 %v68, %v3168
    %v3170 = vand.u32 %v3169, 4294901760
    %3171 = vmatpush1.msra.mxu0 %v3170
    %3172 = vmatprep.subr.mxu0 0.0
    %v3173 = vand.u32 %v69, 4294901760
    %v3174 = vsub.f32 %v69, %v3173
    %v3175 = vand.u32 %v3174, 4294901760
    %3176 = vmatpush1.msra.mxu0 %v3175
    %3177 = vmatprep.subr.mxu0 0.0
    %v3178 = vand.u32 %v70, 4294901760
    %v3179 = vsub.f32 %v70, %v3178
    %v3180 = vand.u32 %v3179, 4294901760
    %3181 = vmatpush1.msra.mxu0 %v3180
    %3182 = vmatprep.subr.mxu0 0.0
    %3183 = vmatpush1.msra.mxu0 0.0
    %3184 = vmatprep.subr.mxu0 0.0
    %3185 = vmatpush1.msra.mxu0 0.0
    %3186 = vmatprep.subr.mxu0 0.0
    %3187 = vmatpush1.msra.mxu0 0.0
    %3188 = vmatprep.subr.mxu0 0.0
    %3189 = vmatpush1.msra.mxu0 0.0
    %3190 = vmatprep.subr.mxu0 0.0
    %3191 = vmatpush1.msra.mxu0 0.0
    %3192 = vmatprep.subr.mxu0 0.0
    %3193 = vmatpush1.msra.mxu0 0.0
    %3194 = vmatprep.subr.mxu0 0.0
    %3195 = vmatpush1.msra.mxu0 0.0
    %3196 = vmatprep.subr.mxu0 0.0
    %3197 = vmatpush1.msra.mxu0 0.0
    %3198 = vmatprep.subr.mxu0 0.0
    %3199 = vmatpush1.msra.mxu0 0.0
    %3200 = vmatprep.subr.mxu0 0.0
    %3201 = vmatpush1.msra.mxu0 0.0
    %3202 = vmatprep.subr.mxu0 0.0
    %3203 = vmatpush1.msra.mxu0 0.0
    %3204 = vmatprep.subr.mxu0 0.0
    %3205 = vmatpush1.msra.mxu0 0.0
    %3206 = vmatprep.subr.mxu0 0.0
    %3207 = vmatpush1.msra.mxu0 0.0
    %3208 = vmatprep.subr.mxu0 0.0
    %3209 = vmatpush1.msra.mxu0 0.0
    %3210 = vmatprep.subr.mxu0 0.0
    %3211 = vmatpush1.msra.mxu0 0.0
    %3212 = vmatprep.subr.mxu0 0.0
    %3213 = vmatpush1.msra.mxu0 0.0
    %3214 = vmatprep.subr.mxu0 0.0
    %3215 = vmatpush1.msra.mxu0 0.0
    %3216 = vmatprep.subr.mxu0 0.0
    %3217 = vmatpush1.msra.mxu0 0.0
    %3218 = vmatprep.subr.mxu0 0.0
    %3219 = vmatpush1.msra.mxu0 0.0
    %3220 = vmatprep.subr.mxu0 0.0
    %3221 = vmatpush1.msra.mxu0 0.0
    %3222 = vmatprep.subr.mxu0 0.0
    %3223 = vmatpush1.msra.mxu0 0.0
    %3224 = vmatprep.subr.mxu0 0.0
    %3225 = vmatpush1.msra.mxu0 0.0
    %3226 = vmatprep.subr.mxu0 0.0
    %3227 = vmatpush1.msra.mxu0 0.0
    %3228 = vmatprep.subr.mxu0 0.0
    %3229 = vmatpush1.msra.mxu0 0.0
    %3230 = vmatprep.subr.mxu0 0.0
    %3231 = vmatpush1.msra.mxu0 0.0
    %3232 = vmatprep.subr.mxu0 0.0
    %3233 = vmatpush1.msra.mxu0 0.0
    %3234 = vmatprep.subr.mxu0 0.0
    %3235 = vmatpush1.msra.mxu0 0.0
    %3236 = vmatprep.subr.mxu0 0.0
    %3237 = vmatpush1.msra.mxu0 0.0
    %3238 = vmatprep.mubr.f32.mxu0 0.0
    %v3239 = vand.u32 %v2833, 4294901760
    %3240 = vmatmul.mubr.f32.gmra.mrb[0].mxu0 %v3239
    %v3241 = vpop.f32.mrb[0].mxu0
    %v3242 = vadd.f32 %v3159, %v3241
    %v3243 = vpop.f32.mrb[0].mxu0
    %3244 = vdwg.mxu0
    %3245 = vmatprep.subr.mxu0 0.0
    %v3246 = vand.u32 %v67, 4294901760
    %3247 = vmatpush1.msra.mxu0 %v3246
    %3248 = vmatprep.subr.mxu0 0.0
    %v3249 = vand.u32 %v68, 4294901760
    %3250 = vmatpush1.msra.mxu0 %v3249
    %3251 = vmatprep.subr.mxu0 0.0
    %v3252 = vand.u32 %v69, 4294901760
    %3253 = vmatpush1.msra.mxu0 %v3252
    %3254 = vmatprep.subr.mxu0 0.0
    %v3255 = vand.u32 %v70, 4294901760
    %3256 = vmatpush1.msra.mxu0 %v3255
    %3257 = vmatprep.subr.mxu0 0.0
    %3258 = vmatpush1.msra.mxu0 0.0
    %3259 = vmatprep.subr.mxu0 0.0
    %3260 = vmatpush1.msra.mxu0 0.0
    %3261 = vmatprep.subr.mxu0 0.0
    %3262 = vmatpush1.msra.mxu0 0.0
    %3263 = vmatprep.subr.mxu0 0.0
    %3264 = vmatpush1.msra.mxu0 0.0
    %3265 = vmatprep.subr.mxu0 0.0
    %3266 = vmatpush1.msra.mxu0 0.0
    %3267 = vmatprep.subr.mxu0 0.0
    %3268 = vmatpush1.msra.mxu0 0.0
    %3269 = vmatprep.subr.mxu0 0.0
    %3270 = vmatpush1.msra.mxu0 0.0
    %3271 = vmatprep.subr.mxu0 0.0
    %3272 = vmatpush1.msra.mxu0 0.0
    %3273 = vmatprep.subr.mxu0 0.0
    %3274 = vmatpush1.msra.mxu0 0.0
    %3275 = vmatprep.subr.mxu0 0.0
    %3276 = vmatpush1.msra.mxu0 0.0
    %3277 = vmatprep.subr.mxu0 0.0
    %3278 = vmatpush1.msra.mxu0 0.0
    %3279 = vmatprep.subr.mxu0 0.0
    %3280 = vmatpush1.msra.mxu0 0.0
    %3281 = vmatprep.subr.mxu0 0.0
    %3282 = vmatpush1.msra.mxu0 0.0
    %3283 = vmatprep.subr.mxu0 0.0
    %3284 = vmatpush1.msra.mxu0 0.0
    %3285 = vmatprep.subr.mxu0 0.0
    %3286 = vmatpush1.msra.mxu0 0.0
    %3287 = vmatprep.subr.mxu0 0.0
    %3288 = vmatpush1.msra.mxu0 0.0
    %3289 = vmatprep.subr.mxu0 0.0
    %3290 = vmatpush1.msra.mxu0 0.0
    %3291 = vmatprep.subr.mxu0 0.0
    %3292 = vmatpush1.msra.mxu0 0.0
    %3293 = vmatprep.subr.mxu0 0.0
    %3294 = vmatpush1.msra.mxu0 0.0
    %3295 = vmatprep.subr.mxu0 0.0
    %3296 = vmatpush1.msra.mxu0 0.0
    %3297 = vmatprep.subr.mxu0 0.0
    %3298 = vmatpush1.msra.mxu0 0.0
    %3299 = vmatprep.subr.mxu0 0.0
    %3300 = vmatpush1.msra.mxu0 0.0
    %3301 = vmatprep.subr.mxu0 0.0
    %3302 = vmatpush1.msra.mxu0 0.0
    %3303 = vmatprep.subr.mxu0 0.0
    %3304 = vmatpush1.msra.mxu0 0.0
    %3305 = vmatprep.subr.mxu0 0.0
    %3306 = vmatpush1.msra.mxu0 0.0
    %3307 = vmatprep.subr.mxu0 0.0
    %3308 = vmatpush1.msra.mxu0 0.0
    %3309 = vmatprep.subr.mxu0 0.0
    %3310 = vmatpush1.msra.mxu0 0.0
    %3311 = vmatprep.subr.mxu0 0.0
    %3312 = vmatpush1.msra.mxu0 0.0
    %3313 = vmatprep.mubr.f32.mxu0 0.0
    %v3314 = vand.u32 %v2833, 4294901760
    %3315 = vmatmul.mubr.f32.gmra.mrb[0].mxu0 %v3314
    %v3316 = vpop.f32.mrb[0].mxu0
    %v3317 = vadd.f32 %v3242, %v3316
    %v3318 = vpop.f32.mrb[0].mxu0
    %3319 = vdwg.mxu0
    %v3320 = vmul.f32 %v3317, %v3317
    %v3321 = vsel %vm1305, %v3320, 0.0
    %3322 = vadd.xlane.f32.xlu0 %v3321
    %v3323 = vpop.xlane.xlu0 %3322
    %v3324 = vmax.f32 %v3323, 1e-24
    %v3325 = vrsqrt.pop %v3324
    %v3326 = vmul.f32 %v3317, %v3325
    %3327 = vrot.lane.b32.xlu0 %v1312, 80
    %v3328 = vpop.permute.xlu0 %3327
    %v3330 = vsel %vm1317, %v3328, 0.0
    %3331 = vadd.xlane.f32.xlu0 %v3330
    %v3332 = vpop.xlane.xlu0 %3331
    %v3333 = vmax.f32 %v3332, 1e-24
    %v3334 = vrsqrt.pop %v3333
    %v3335 = vmul.f32 %v1301, %v3334
    %3337 = vrot.lane.b32.xlu0 %v3335, 80
    %v3338 = vpop.permute.xlu0 %3337
    %v3340 = vsel %vm1305, %v3326, 0
    %v3342 = vsel %vm1305, %v3338, 0
    %3344 = vmatprep.subr.mxu0 0.0
    %v3345 = vand.u32 %v3342, 4294901760
    %3346 = vmatpush1.xpose.msra.mxu0 %v3345
    %3347 = vmatprep.subr.mxu0 0.0
    %3348 = vmatpush1.xpose.msra.mxu0 0.0
    %3349 = vmatprep.subr.mxu0 0.0
    %3350 = vmatpush1.xpose.msra.mxu0 0.0
    %3351 = vmatprep.subr.mxu0 0.0
    %3352 = vmatpush1.xpose.msra.mxu0 0.0
    %3353 = vmatprep.subr.mxu0 0.0
    %3354 = vmatpush1.xpose.msra.mxu0 0.0
    %3355 = vmatprep.subr.mxu0 0.0
    %3356 = vmatpush1.xpose.msra.mxu0 0.0
    %3357 = vmatprep.subr.mxu0 0.0
    %3358 = vmatpush1.xpose.msra.mxu0 0.0
    %3359 = vmatprep.subr.mxu0 0.0
    %3360 = vmatpush1.xpose.msra.mxu0 0.0
    %3361 = vmatprep.subr.mxu0 0.0
    %3362 = vmatpush1.xpose.msra.mxu0 0.0
    %3363 = vmatprep.subr.mxu0 0.0
    %3364 = vmatpush1.xpose.msra.mxu0 0.0
    %3365 = vmatprep.subr.mxu0 0.0
    %3366 = vmatpush1.xpose.msra.mxu0 0.0
    %3367 = vmatprep.subr.mxu0 0.0
    %3368 = vmatpush1.xpose.msra.mxu0 0.0
    %3369 = vmatprep.subr.mxu0 0.0
    %3370 = vmatpush1.xpose.msra.mxu0 0.0
    %3371 = vmatprep.subr.mxu0 0.0
    %3372 = vmatpush1.xpose.msra.mxu0 0.0
    %3373 = vmatprep.subr.mxu0 0.0
    %3374 = vmatpush1.xpose.msra.mxu0 0.0
    %3375 = vmatprep.subr.mxu0 0.0
    %3376 = vmatpush1.xpose.msra.mxu0 0.0
    %3377 = vmatprep.subr.mxu0 0.0
    %3378 = vmatpush1.xpose.msra.mxu0 0.0
    %3379 = vmatprep.subr.mxu0 0.0
    %3380 = vmatpush1.xpose.msra.mxu0 0.0
    %3381 = vmatprep.subr.mxu0 0.0
    %3382 = vmatpush1.xpose.msra.mxu0 0.0
    %3383 = vmatprep.subr.mxu0 0.0
    %3384 = vmatpush1.xpose.msra.mxu0 0.0
    %3385 = vmatprep.subr.mxu0 0.0
    %3386 = vmatpush1.xpose.msra.mxu0 0.0
    %3387 = vmatprep.subr.mxu0 0.0
    %3388 = vmatpush1.xpose.msra.mxu0 0.0
    %3389 = vmatprep.subr.mxu0 0.0
    %3390 = vmatpush1.xpose.msra.mxu0 0.0
    %3391 = vmatprep.subr.mxu0 0.0
    %3392 = vmatpush1.xpose.msra.mxu0 0.0
    %3393 = vmatprep.subr.mxu0 0.0
    %3394 = vmatpush1.xpose.msra.mxu0 0.0
    %3395 = vmatprep.subr.mxu0 0.0
    %3396 = vmatpush1.xpose.msra.mxu0 0.0
    %3397 = vmatprep.subr.mxu0 0.0
    %3398 = vmatpush1.xpose.msra.mxu0 0.0
    %3399 = vmatprep.subr.mxu0 0.0
    %3400 = vmatpush1.xpose.msra.mxu0 0.0
    %3401 = vmatprep.subr.mxu0 0.0
    %3402 = vmatpush1.xpose.msra.mxu0 0.0
    %3403 = vmatprep.subr.mxu0 0.0
    %3404 = vmatpush1.xpose.msra.mxu0 0.0
    %3405 = vmatprep.subr.mxu0 0.0
    %3406 = vmatpush1.xpose.msra.mxu0 0.0
    %3407 = vmatprep.subr.mxu0 0.0
    %3408 = vmatpush1.xpose.msra.mxu0 0.0
    %3409 = vmatprep.mubr.f32.mxu0 0.0
    %v3410 = vand.u32 %v3340, 4294901760
    %v3411 = vsub.f32 %v3340, %v3410
    %v3412 = vand.u32 %v3411, 4294901760
    %v3413 = vsub.f32 %v3411, %v3412
    %v3414 = vand.u32 %v3413, 4294901760
    %3415 = vmatmul.mubr.f32.gmra.mrb[0].mxu0 %v3414
    %v3416 = vpop.f32.mrb[0].mxu0
    %v3417 = vadd.f32 0.0, %v3416
    %v3418 = vpop.f32.mrb[0].mxu0
    %3419 = vdwg.mxu0
    %3420 = vmatprep.subr.mxu0 0.0
    %v3421 = vand.u32 %v3342, 4294901760
    %v3422 = vsub.f32 %v3342, %v3421
    %v3423 = vand.u32 %v3422, 4294901760
    %v3424 = vsub.f32 %v3422, %v3423
    %v3425 = vand.u32 %v3424, 4294901760
    %3426 = vmatpush1.xpose.msra.mxu0 %v3425
    %3427 = vmatprep.subr.mxu0 0.0
    %3428 = vmatpush1.xpose.msra.mxu0 0.0
    %3429 = vmatprep.subr.mxu0 0.0
    %3430 = vmatpush1.xpose.msra.mxu0 0.0
    %3431 = vmatprep.subr.mxu0 0.0
    %3432 = vmatpush1.xpose.msra.mxu0 0.0
    %3433 = vmatprep.subr.mxu0 0.0
    %3434 = vmatpush1.xpose.msra.mxu0 0.0
    %3435 = vmatprep.subr.mxu0 0.0
    %3436 = vmatpush1.xpose.msra.mxu0 0.0
    %3437 = vmatprep.subr.mxu0 0.0
    %3438 = vmatpush1.xpose.msra.mxu0 0.0
    %3439 = vmatprep.subr.mxu0 0.0
    %3440 = vmatpush1.xpose.msra.mxu0 0.0
    %3441 = vmatprep.subr.mxu0 0.0
    %3442 = vmatpush1.xpose.msra.mxu0 0.0
    %3443 = vmatprep.subr.mxu0 0.0
    %3444 = vmatpush1.xpose.msra.mxu0 0.0
    %3445 = vmatprep.subr.mxu0 0.0
    %3446 = vmatpush1.xpose.msra.mxu0 0.0
    %3447 = vmatprep.subr.mxu0 0.0
    %3448 = vmatpush1.xpose.msra.mxu0 0.0
    %3449 = vmatprep.subr.mxu0 0.0
    %3450 = vmatpush1.xpose.msra.mxu0 0.0
    %3451 = vmatprep.subr.mxu0 0.0
    %3452 = vmatpush1.xpose.msra.mxu0 0.0
    %3453 = vmatprep.subr.mxu0 0.0
    %3454 = vmatpush1.xpose.msra.mxu0 0.0
    %3455 = vmatprep.subr.mxu0 0.0
    %3456 = vmatpush1.xpose.msra.mxu0 0.0
    %3457 = vmatprep.subr.mxu0 0.0
    %3458 = vmatpush1.xpose.msra.mxu0 0.0
    %3459 = vmatprep.subr.mxu0 0.0
    %3460 = vmatpush1.xpose.msra.mxu0 0.0
    %3461 = vmatprep.subr.mxu0 0.0
    %3462 = vmatpush1.xpose.msra.mxu0 0.0
    %3463 = vmatprep.subr.mxu0 0.0
    %3464 = vmatpush1.xpose.msra.mxu0 0.0
    %3465 = vmatprep.subr.mxu0 0.0
    %3466 = vmatpush1.xpose.msra.mxu0 0.0
    %3467 = vmatprep.subr.mxu0 0.0
    %3468 = vmatpush1.xpose.msra.mxu0 0.0
    %3469 = vmatprep.subr.mxu0 0.0
    %3470 = vmatpush1.xpose.msra.mxu0 0.0
    %3471 = vmatprep.subr.mxu0 0.0
    %3472 = vmatpush1.xpose.msra.mxu0 0.0
    %3473 = vmatprep.subr.mxu0 0.0
    %3474 = vmatpush1.xpose.msra.mxu0 0.0
    %3475 = vmatprep.subr.mxu0 0.0
    %3476 = vmatpush1.xpose.msra.mxu0 0.0
    %3477 = vmatprep.subr.mxu0 0.0
    %3478 = vmatpush1.xpose.msra.mxu0 0.0
    %3479 = vmatprep.subr.mxu0 0.0
    %3480 = vmatpush1.xpose.msra.mxu0 0.0
    %3481 = vmatprep.subr.mxu0 0.0
    %3482 = vmatpush1.xpose.msra.mxu0 0.0
    %3483 = vmatprep.subr.mxu0 0.0
    %3484 = vmatpush1.xpose.msra.mxu0 0.0
    %3485 = vmatprep.subr.mxu0 0.0
    %3486 = vmatpush1.xpose.msra.mxu0 0.0
    %3487 = vmatprep.subr.mxu0 0.0
    %3488 = vmatpush1.xpose.msra.mxu0 0.0
    %3489 = vmatprep.mubr.f32.mxu0 0.0
    %v3490 = vand.u32 %v3340, 4294901760
    %3491 = vmatmul.mubr.f32.gmra.mrb[0].mxu0 %v3490
    %v3492 = vpop.f32.mrb[0].mxu0
    %v3493 = vadd.f32 %v3417, %v3492
    %v3494 = vpop.f32.mrb[0].mxu0
    %3495 = vdwg.mxu0
    %3496 = vmatprep.subr.mxu0 0.0
    %v3497 = vand.u32 %v3342, 4294901760
    %v3498 = vsub.f32 %v3342, %v3497
    %3499 = vmatpush1.xpose.msra.mxu0 %v3498
    %3500 = vmatprep.subr.mxu0 0.0
    %3501 = vmatpush1.xpose.msra.mxu0 0.0
    %3502 = vmatprep.subr.mxu0 0.0
    %3503 = vmatpush1.xpose.msra.mxu0 0.0
    %3504 = vmatprep.subr.mxu0 0.0
    %3505 = vmatpush1.xpose.msra.mxu0 0.0
    %3506 = vmatprep.subr.mxu0 0.0
    %3507 = vmatpush1.xpose.msra.mxu0 0.0
    %3508 = vmatprep.subr.mxu0 0.0
    %3509 = vmatpush1.xpose.msra.mxu0 0.0
    %3510 = vmatprep.subr.mxu0 0.0
    %3511 = vmatpush1.xpose.msra.mxu0 0.0
    %3512 = vmatprep.subr.mxu0 0.0
    %3513 = vmatpush1.xpose.msra.mxu0 0.0
    %3514 = vmatprep.subr.mxu0 0.0
    %3515 = vmatpush1.xpose.msra.mxu0 0.0
    %3516 = vmatprep.subr.mxu0 0.0
    %3517 = vmatpush1.xpose.msra.mxu0 0.0
    %3518 = vmatprep.subr.mxu0 0.0
    %3519 = vmatpush1.xpose.msra.mxu0 0.0
    %3520 = vmatprep.subr.mxu0 0.0
    %3521 = vmatpush1.xpose.msra.mxu0 0.0
    %3522 = vmatprep.subr.mxu0 0.0
    %3523 = vmatpush1.xpose.msra.mxu0 0.0
    %3524 = vmatprep.subr.mxu0 0.0
    %3525 = vmatpush1.xpose.msra.mxu0 0.0
    %3526 = vmatprep.subr.mxu0 0.0
    %3527 = vmatpush1.xpose.msra.mxu0 0.0
    %3528 = vmatprep.subr.mxu0 0.0
    %3529 = vmatpush1.xpose.msra.mxu0 0.0
    %3530 = vmatprep.subr.mxu0 0.0
    %3531 = vmatpush1.xpose.msra.mxu0 0.0
    %3532 = vmatprep.subr.mxu0 0.0
    %3533 = vmatpush1.xpose.msra.mxu0 0.0
    %3534 = vmatprep.subr.mxu0 0.0
    %3535 = vmatpush1.xpose.msra.mxu0 0.0
    %3536 = vmatprep.subr.mxu0 0.0
    %3537 = vmatpush1.xpose.msra.mxu0 0.0
    %3538 = vmatprep.subr.mxu0 0.0
    %3539 = vmatpush1.xpose.msra.mxu0 0.0
    %3540 = vmatprep.subr.mxu0 0.0
    %3541 = vmatpush1.xpose.msra.mxu0 0.0
    %3542 = vmatprep.subr.mxu0 0.0
    %3543 = vmatpush1.xpose.msra.mxu0 0.0
    %3544 = vmatprep.subr.mxu0 0.0
    %3545 = vmatpush1.xpose.msra.mxu0 0.0
    %3546 = vmatprep.subr.mxu0 0.0
    %3547 = vmatpush1.xpose.msra.mxu0 0.0
    %3548 = vmatprep.subr.mxu0 0.0
    %3549 = vmatpush1.xpose.msra.mxu0 0.0
    %3550 = vmatprep.subr.mxu0 0.0
    %3551 = vmatpush1.xpose.msra.mxu0 0.0
    %3552 = vmatprep.subr.mxu0 0.0
    %3553 = vmatpush1.xpose.msra.mxu0 0.0
    %3554 = vmatprep.subr.mxu0 0.0
    %3555 = vmatpush1.xpose.msra.mxu0 0.0
    %3556 = vmatprep.subr.mxu0 0.0
    %3557 = vmatpush1.xpose.msra.mxu0 0.0
    %3558 = vmatprep.subr.mxu0 0.0
    %3559 = vmatpush1.xpose.msra.mxu0 0.0
    %3560 = vmatprep.subr.mxu0 0.0
    %3561 = vmatpush1.xpose.msra.mxu0 0.0
    %3562 = vmatprep.mubr.f32.mxu0 0.0
    %v3563 = vand.u32 %v3340, 4294901760
    %v3564 = vsub.f32 %v3340, %v3563
    %3565 = vmatmul.mubr.f32.gmra.mrb[0].mxu0 %v3564
    %v3566 = vpop.f32.mrb[0].mxu0
    %v3567 = vadd.f32 %v3493, %v3566
    %v3568 = vpop.f32.mrb[0].mxu0
    %3569 = vdwg.mxu0
    %3570 = vmatprep.subr.mxu0 0.0
    %v3571 = vand.u32 %v3342, 4294901760
    %3572 = vmatpush1.xpose.msra.mxu0 %v3571
    %3573 = vmatprep.subr.mxu0 0.0
    %3574 = vmatpush1.xpose.msra.mxu0 0.0
    %3575 = vmatprep.subr.mxu0 0.0
    %3576 = vmatpush1.xpose.msra.mxu0 0.0
    %3577 = vmatprep.subr.mxu0 0.0
    %3578 = vmatpush1.xpose.msra.mxu0 0.0
    %3579 = vmatprep.subr.mxu0 0.0
    %3580 = vmatpush1.xpose.msra.mxu0 0.0
    %3581 = vmatprep.subr.mxu0 0.0
    %3582 = vmatpush1.xpose.msra.mxu0 0.0
    %3583 = vmatprep.subr.mxu0 0.0
    %3584 = vmatpush1.xpose.msra.mxu0 0.0
    %3585 = vmatprep.subr.mxu0 0.0
    %3586 = vmatpush1.xpose.msra.mxu0 0.0
    %3587 = vmatprep.subr.mxu0 0.0
    %3588 = vmatpush1.xpose.msra.mxu0 0.0
    %3589 = vmatprep.subr.mxu0 0.0
    %3590 = vmatpush1.xpose.msra.mxu0 0.0
    %3591 = vmatprep.subr.mxu0 0.0
    %3592 = vmatpush1.xpose.msra.mxu0 0.0
    %3593 = vmatprep.subr.mxu0 0.0
    %3594 = vmatpush1.xpose.msra.mxu0 0.0
    %3595 = vmatprep.subr.mxu0 0.0
    %3596 = vmatpush1.xpose.msra.mxu0 0.0
    %3597 = vmatprep.subr.mxu0 0.0
    %3598 = vmatpush1.xpose.msra.mxu0 0.0
    %3599 = vmatprep.subr.mxu0 0.0
    %3600 = vmatpush1.xpose.msra.mxu0 0.0
    %3601 = vmatprep.subr.mxu0 0.0
    %3602 = vmatpush1.xpose.msra.mxu0 0.0
    %3603 = vmatprep.subr.mxu0 0.0
    %3604 = vmatpush1.xpose.msra.mxu0 0.0
    %3605 = vmatprep.subr.mxu0 0.0
    %3606 = vmatpush1.xpose.msra.mxu0 0.0
    %3607 = vmatprep.subr.mxu0 0.0
    %3608 = vmatpush1.xpose.msra.mxu0 0.0
    %3609 = vmatprep.subr.mxu0 0.0
    %3610 = vmatpush1.xpose.msra.mxu0 0.0
    %3611 = vmatprep.subr.mxu0 0.0
    %3612 = vmatpush1.xpose.msra.mxu0 0.0
    %3613 = vmatprep.subr.mxu0 0.0
    %3614 = vmatpush1.xpose.msra.mxu0 0.0
    %3615 = vmatprep.subr.mxu0 0.0
    %3616 = vmatpush1.xpose.msra.mxu0 0.0
    %3617 = vmatprep.subr.mxu0 0.0
    %3618 = vmatpush1.xpose.msra.mxu0 0.0
    %3619 = vmatprep.subr.mxu0 0.0
    %3620 = vmatpush1.xpose.msra.mxu0 0.0
    %3621 = vmatprep.subr.mxu0 0.0
    %3622 = vmatpush1.xpose.msra.mxu0 0.0
    %3623 = vmatprep.subr.mxu0 0.0
    %3624 = vmatpush1.xpose.msra.mxu0 0.0
    %3625 = vmatprep.subr.mxu0 0.0
    %3626 = vmatpush1.xpose.msra.mxu0 0.0
    %3627 = vmatprep.subr.mxu0 0.0
    %3628 = vmatpush1.xpose.msra.mxu0 0.0
    %3629 = vmatprep.subr.mxu0 0.0
    %3630 = vmatpush1.xpose.msra.mxu0 0.0
    %3631 = vmatprep.subr.mxu0 0.0
    %3632 = vmatpush1.xpose.msra.mxu0 0.0
    %3633 = vmatprep.subr.mxu0 0.0
    %3634 = vmatpush1.xpose.msra.mxu0 0.0
    %3635 = vmatprep.mubr.f32.mxu0 0.0
    %v3636 = vand.u32 %v3340, 4294901760
    %v3637 = vsub.f32 %v3340, %v3636
    %v3638 = vand.u32 %v3637, 4294901760
    %3639 = vmatmul.mubr.f32.gmra.mrb[0].mxu0 %v3638
    %v3640 = vpop.f32.mrb[0].mxu0
    %v3641 = vadd.f32 %v3567, %v3640
    %v3642 = vpop.f32.mrb[0].mxu0
    %3643 = vdwg.mxu0
    %3644 = vmatprep.subr.mxu0 0.0
    %v3645 = vand.u32 %v3342, 4294901760
    %v3646 = vsub.f32 %v3342, %v3645
    %v3647 = vand.u32 %v3646, 4294901760
    %3648 = vmatpush1.xpose.msra.mxu0 %v3647
    %3649 = vmatprep.subr.mxu0 0.0
    %3650 = vmatpush1.xpose.msra.mxu0 0.0
    %3651 = vmatprep.subr.mxu0 0.0
    %3652 = vmatpush1.xpose.msra.mxu0 0.0
    %3653 = vmatprep.subr.mxu0 0.0
    %3654 = vmatpush1.xpose.msra.mxu0 0.0
    %3655 = vmatprep.subr.mxu0 0.0
    %3656 = vmatpush1.xpose.msra.mxu0 0.0
    %3657 = vmatprep.subr.mxu0 0.0
    %3658 = vmatpush1.xpose.msra.mxu0 0.0
    %3659 = vmatprep.subr.mxu0 0.0
    %3660 = vmatpush1.xpose.msra.mxu0 0.0
    %3661 = vmatprep.subr.mxu0 0.0
    %3662 = vmatpush1.xpose.msra.mxu0 0.0
    %3663 = vmatprep.subr.mxu0 0.0
    %3664 = vmatpush1.xpose.msra.mxu0 0.0
    %3665 = vmatprep.subr.mxu0 0.0
    %3666 = vmatpush1.xpose.msra.mxu0 0.0
    %3667 = vmatprep.subr.mxu0 0.0
    %3668 = vmatpush1.xpose.msra.mxu0 0.0
    %3669 = vmatprep.subr.mxu0 0.0
    %3670 = vmatpush1.xpose.msra.mxu0 0.0
    %3671 = vmatprep.subr.mxu0 0.0
    %3672 = vmatpush1.xpose.msra.mxu0 0.0
    %3673 = vmatprep.subr.mxu0 0.0
    %3674 = vmatpush1.xpose.msra.mxu0 0.0
    %3675 = vmatprep.subr.mxu0 0.0
    %3676 = vmatpush1.xpose.msra.mxu0 0.0
    %3677 = vmatprep.subr.mxu0 0.0
    %3678 = vmatpush1.xpose.msra.mxu0 0.0
    %3679 = vmatprep.subr.mxu0 0.0
    %3680 = vmatpush1.xpose.msra.mxu0 0.0
    %3681 = vmatprep.subr.mxu0 0.0
    %3682 = vmatpush1.xpose.msra.mxu0 0.0
    %3683 = vmatprep.subr.mxu0 0.0
    %3684 = vmatpush1.xpose.msra.mxu0 0.0
    %3685 = vmatprep.subr.mxu0 0.0
    %3686 = vmatpush1.xpose.msra.mxu0 0.0
    %3687 = vmatprep.subr.mxu0 0.0
    %3688 = vmatpush1.xpose.msra.mxu0 0.0
    %3689 = vmatprep.subr.mxu0 0.0
    %3690 = vmatpush1.xpose.msra.mxu0 0.0
    %3691 = vmatprep.subr.mxu0 0.0
    %3692 = vmatpush1.xpose.msra.mxu0 0.0
    %3693 = vmatprep.subr.mxu0 0.0
    %3694 = vmatpush1.xpose.msra.mxu0 0.0
    %3695 = vmatprep.subr.mxu0 0.0
    %3696 = vmatpush1.xpose.msra.mxu0 0.0
    %3697 = vmatprep.subr.mxu0 0.0
    %3698 = vmatpush1.xpose.msra.mxu0 0.0
    %3699 = vmatprep.subr.mxu0 0.0
    %3700 = vmatpush1.xpose.msra.mxu0 0.0
    %3701 = vmatprep.subr.mxu0 0.0
    %3702 = vmatpush1.xpose.msra.mxu0 0.0
    %3703 = vmatprep.subr.mxu0 0.0
    %3704 = vmatpush1.xpose.msra.mxu0 0.0
    %3705 = vmatprep.subr.mxu0 0.0
    %3706 = vmatpush1.xpose.msra.mxu0 0.0
    %3707 = vmatprep.subr.mxu0 0.0
    %3708 = vmatpush1.xpose.msra.mxu0 0.0
    %3709 = vmatprep.subr.mxu0 0.0
    %3710 = vmatpush1.xpose.msra.mxu0 0.0
    %3711 = vmatprep.mubr.f32.mxu0 0.0
    %v3712 = vand.u32 %v3340, 4294901760
    %3713 = vmatmul.mubr.f32.gmra.mrb[0].mxu0 %v3712
    %v3714 = vpop.f32.mrb[0].mxu0
    %v3715 = vadd.f32 %v3641, %v3714
    %v3716 = vpop.f32.mrb[0].mxu0
    %3717 = vdwg.mxu0
    %3718 = vmatprep.subr.mxu0 0.0
    %v3719 = vand.u32 %v3342, 4294901760
    %3720 = vmatpush1.xpose.msra.mxu0 %v3719
    %3721 = vmatprep.subr.mxu0 0.0
    %3722 = vmatpush1.xpose.msra.mxu0 0.0
    %3723 = vmatprep.subr.mxu0 0.0
    %3724 = vmatpush1.xpose.msra.mxu0 0.0
    %3725 = vmatprep.subr.mxu0 0.0
    %3726 = vmatpush1.xpose.msra.mxu0 0.0
    %3727 = vmatprep.subr.mxu0 0.0
    %3728 = vmatpush1.xpose.msra.mxu0 0.0
    %3729 = vmatprep.subr.mxu0 0.0
    %3730 = vmatpush1.xpose.msra.mxu0 0.0
    %3731 = vmatprep.subr.mxu0 0.0
    %3732 = vmatpush1.xpose.msra.mxu0 0.0
    %3733 = vmatprep.subr.mxu0 0.0
    %3734 = vmatpush1.xpose.msra.mxu0 0.0
    %3735 = vmatprep.subr.mxu0 0.0
    %3736 = vmatpush1.xpose.msra.mxu0 0.0
    %3737 = vmatprep.subr.mxu0 0.0
    %3738 = vmatpush1.xpose.msra.mxu0 0.0
    %3739 = vmatprep.subr.mxu0 0.0
    %3740 = vmatpush1.xpose.msra.mxu0 0.0
    %3741 = vmatprep.subr.mxu0 0.0
    %3742 = vmatpush1.xpose.msra.mxu0 0.0
    %3743 = vmatprep.subr.mxu0 0.0
    %3744 = vmatpush1.xpose.msra.mxu0 0.0
    %3745 = vmatprep.subr.mxu0 0.0
    %3746 = vmatpush1.xpose.msra.mxu0 0.0
    %3747 = vmatprep.subr.mxu0 0.0
    %3748 = vmatpush1.xpose.msra.mxu0 0.0
    %3749 = vmatprep.subr.mxu0 0.0
    %3750 = vmatpush1.xpose.msra.mxu0 0.0
    %3751 = vmatprep.subr.mxu0 0.0
    %3752 = vmatpush1.xpose.msra.mxu0 0.0
    %3753 = vmatprep.subr.mxu0 0.0
    %3754 = vmatpush1.xpose.msra.mxu0 0.0
    %3755 = vmatprep.subr.mxu0 0.0
    %3756 = vmatpush1.xpose.msra.mxu0 0.0
    %3757 = vmatprep.subr.mxu0 0.0
    %3758 = vmatpush1.xpose.msra.mxu0 0.0
    %3759 = vmatprep.subr.mxu0 0.0
    %3760 = vmatpush1.xpose.msra.mxu0 0.0
    %3761 = vmatprep.subr.mxu0 0.0
    %3762 = vmatpush1.xpose.msra.mxu0 0.0
    %3763 = vmatprep.subr.mxu0 0.0
    %3764 = vmatpush1.xpose.msra.mxu0 0.0
    %3765 = vmatprep.subr.mxu0 0.0
    %3766 = vmatpush1.xpose.msra.mxu0 0.0
    %3767 = vmatprep.subr.mxu0 0.0
    %3768 = vmatpush1.xpose.msra.mxu0 0.0
    %3769 = vmatprep.subr.mxu0 0.0
    %3770 = vmatpush1.xpose.msra.mxu0 0.0
    %3771 = vmatprep.subr.mxu0 0.0
    %3772 = vmatpush1.xpose.msra.mxu0 0.0
    %3773 = vmatprep.subr.mxu0 0.0
    %3774 = vmatpush1.xpose.msra.mxu0 0.0
    %3775 = vmatprep.subr.mxu0 0.0
    %3776 = vmatpush1.xpose.msra.mxu0 0.0
    %3777 = vmatprep.subr.mxu0 0.0
    %3778 = vmatpush1.xpose.msra.mxu0 0.0
    %3779 = vmatprep.subr.mxu0 0.0
    %3780 = vmatpush1.xpose.msra.mxu0 0.0
    %3781 = vmatprep.subr.mxu0 0.0
    %3782 = vmatpush1.xpose.msra.mxu0 0.0
    %3783 = vmatprep.mubr.f32.mxu0 0.0
    %v3784 = vand.u32 %v3340, 4294901760
    %3785 = vmatmul.mubr.f32.gmra.mrb[0].mxu0 %v3784
    %v3786 = vpop.f32.mrb[0].mxu0
    %v3787 = vadd.f32 %v3715, %v3786
    %v3788 = vpop.f32.mrb[0].mxu0
    %3789 = vdwg.mxu0
    %v3790 = vsel %vm1787, %v3787, 0.0
    %v3791 = vsel %vm1789, %v3790, 0.0
    %3792 = vadd.xlane.f32.xlu0 %v3791
    %v3793 = vpop.xlane.xlu0 %3792
    %v3794 = vmul.f32 %v3793, 5.0
    %v3795 = vsel %vm1827, -1.0, 1.0
    %v3796 = vmul.f32 %v3795, %v3794
    %v3797 = vmax.f32 %v3796, 0.0
    %v3798 = vsub.f32 0.0, %v3796
    %vm3799 = vcmp.ne.f32.partialorder %v3798, %v3798
    %v3800 = vadd.f32 %v3796, 0.0
    %v3801 = vand.u32 2147483647, %v3798
    %v3802 = vsub.f32 0.0, %v3801
    %v3803 = vmul.f32 %v3802, 1.442695
    %v3804 = vpow.pop %v3803
    %v3805 = vadd.f32 %v3804, 1.0
    %v3806 = vlog2.pop %v3805
    %v3807 = vmul.f32 %v3806, 0.6931472
    %v3808 = vmul.f32 -0.5, %v3804
    %v3809 = vadd.f32 %v3808, 1.0
    %v3810 = vmul.f32 %v3809, %v3804
    %v3811 = vand.u32 2147483647, %v3804
    %vm3812 = vcmp.lt.f32.partialorder %v3811, 0.0004427343
    %v3813 = vsel %vm3812, %v3810, %v3807
    %v3814 = vadd.f32 %v3797, %v3813
    %v3815 = vsel %vm3799, %v3800, %v3814
    %v3816 = vsel %vm1812, %v3815, 0.0
    %3817 = vadd.xlane.f32.xlu0 %v3816
    %v3818 = vpop.xlane.xlu0 %3817
    %v3819 = vrot.slane %v3818, 4
    %v3820 = vadd.f32 %v3818, %v3819
    %v3821 = vrot.slane %v3820, 2
    %v3822 = vadd.f32 %v3820, %v3821
    %v3823 = vrot.slane %v3822, 1
    %v3824 = vadd.f32 %v3822, %v3823
    %s3825 = vtos %v3824
    %v3826 = vrcp.pop 8.0
    %s3827 = vtos %v3826
    %s3828 = smul.f32 %s3825, %s3827
    %s3829 = smul.f32 %s3828, 0.5
    %s3830 = smul.f32 %s1897, 0.5
    %s3831 = sadd.f32 %s3829, %s3830
    %vm3832 = vcmp.eq.s32.totalorder %v1783, 0
    %v3833 = vstv %s3831
    %v3834 = vsel %vm3832, %v3833, 0.0
    %vm3835 = vcmp.eq.s32.totalorder %v1783, 1
    %v3836 = vstv %s1897
    %v3837 = vsel %vm3835, %v3836, 0.0
    %v3838 = vadd.f32 %v3834, %v3837
    %vm3839 = vcmp.eq.s32.totalorder %v1783, 2
    %v3840 = vstv %s3828
    %v3841 = vsel %vm3839, %v3840, 0.0
    %v3842 = vadd.f32 %v3838, %v3841
    %3843 = vst [vmem:[#allocation7] sm:$0x1] %v3842
    // Predicated region
    $region22: #{tpu_custom_call.1} parent=1 // pred_check
      _
    $region23: #{tpu_custom_call.1} parent=1 // pred_check_branch
      %3845 = sbr.rel (0) target = $region25
    $region24: #{tpu_custom_call.1} parent=1 // pred_region
      %s3847 = ssub.s32 16, 16
      %3848 = vsyncadd [#allocation4], %s3847
      %s3850 = sshll.u32 [#allocation7], 4
      %s3851 = int_to_ptr.vmem [resolvable:$true] %s3850
      %3853 = dma.vmem_to_hbm [thread:$0]  %s3851, 16, %s3, [#allocation4]
    $region25: #{tpu_custom_call.1} parent=1 // pred_fallthru
      _
    // Predicated region
    $region26: #{tpu_custom_call.1} parent=1 // pred_check
      _
    $region27: #{tpu_custom_call.1} parent=1 // pred_check_branch
      %3855 = sbr.rel (0) target = $region29
    $region28: #{tpu_custom_call.1} parent=1 // pred_region
      %3856 = dma.done [#allocation4], 16
    $region29: #{tpu_custom_call.1} parent=1 // pred_fallthru
      _
    %3857 = vsyncpa [#allocation3], 1
    %3858 = vsyncpa [#allocation6], 1
    %3859 = vsyncpa [#allocation4], 1

</llo_original>
